<compile_context>
chip_gen: v7x
topology: tpu7x:2x2x1
jax: 0.10.0
libtpu: 0.0.40
codegen_flags: <defaults>
</compile_context>

<pallas_src>
import functools

import jax
import jax.numpy as jnp
import numpy as np
from jax.experimental import pallas as pl
from jax.experimental.pallas import tpu as pltpu

EPS = 1e-6  # CausalNormalize / nn.GroupNorm eps used in cosmos


# ----------------------------- in-kernel helpers ---------------------------------

def _mean_var_keep_axis0(x):
    """Biased mean/var per axis-0 slice over all remaining axes (single-axis reduces)."""
    n = x.size // x.shape[0]
    s = x
    for ax in range(x.ndim - 1, 0, -1):
        s = jnp.sum(s, axis=ax, keepdims=True)
    mean = s / n
    d2 = jnp.square(x - mean)
    for ax in range(x.ndim - 1, 0, -1):
        d2 = jnp.sum(d2, axis=ax, keepdims=True)
    return mean, d2 / n


def _spatial_conv_tail(h, w_ref, bias_ref, mxu_dtype):
    """3x3 spatial conv of h:(tT,H,W,Ci) with the zero halo built in VMEM.
    w_ref:(9*Ci,Co) (taps row-major, channel fastest).  Returns f32 (tT,H,W,Co)."""
    tT, H, W, Ci = h.shape
    Co = bias_ref.shape[-1]
    hc = h.astype(mxu_dtype)
    # zero halo in VMEM (no HBM pad): 1 row top/bottom on the untiled H axis,
    # 8 columns left/right on the sublane W axis (8-wide pads keep the concat tile-aligned)
    zrow = jnp.zeros((tT, 1, W, Ci), mxu_dtype)
    hp = jnp.concatenate([zrow, hc, zrow], axis=1)           # (tT, H+2, W, Ci)
    zcol = jnp.zeros((tT, H + 2, 8, Ci), mxu_dtype)
    hp = jnp.concatenate([zcol, hp, zcol], axis=2)           # (tT, H+2, W+16, Ci)
    M = tT * H * W
    w = w_ref[...].astype(mxu_dtype)                         # (9*Ci, Co)
    acc = jnp.zeros((M, Co), jnp.float32)
    for kh in range(3):
        for kw in range(3):
            patch = hp[:, kh:kh + H, 7 + kw:7 + kw + W, :].reshape(M, Ci)
            wk = w[(kh * 3 + kw) * Ci:(kh * 3 + kw + 1) * Ci, :]
            acc = acc + jnp.dot(patch, wk, preferred_element_type=jnp.float32)
    acc = acc + bias_ref[...].astype(jnp.float32)
    return acc.reshape(tT, H, W, Co)


def _temporal_conv_core(x_ref, w_ref, bias_ref, mxu_dtype):
    """Causal temporal conv (k=3); replicate-pad of the first frame done in VMEM.
    x_ref:(1,T,hh,W,Ci), w_ref:(3*Ci,Co).  Returns f32 (T*hh*W, Co)."""
    _, T, hh, W, Ci = x_ref.shape
    Co = bias_ref.shape[-1]
    x = x_ref[...].astype(mxu_dtype)
    first = x[:, :1]
    xp = jnp.concatenate([first, first, x], axis=1)          # (1, T+2, hh, W, Ci), untiled-axis concat
    M = T * hh * W
    w = w_ref[...].astype(mxu_dtype)
    acc = jnp.zeros((M, Co), jnp.float32)
    for k in range(3):
        patch = xp[:, k:k + T].reshape(M, Ci)
        acc = acc + jnp.dot(patch, w[k * Ci:(k + 1) * Ci, :],
                            preferred_element_type=jnp.float32)
    return acc + bias_ref[...].astype(jnp.float32)


# ----------------------------- Pallas kernels ---------------------------------

def _gn_silu_conv_s_kernel(x_ref, g_ref, b_ref, w_ref, bias_ref, o_ref, *, mxu_dtype):
    # per-frame GroupNorm(1 group) + SiLU + spatial 3x3 conv, fused (norm1 + nonlinearity + conv1[0])
    x = x_ref[...].astype(jnp.float32)                       # (tT, H, W, Ci)
    Ci = x.shape[-1]
    mean, var = _mean_var_keep_axis0(x)                      # per-frame stats over (H, W, Ci)
    y = (x - mean) * jax.lax.rsqrt(var + EPS)
    y = (y * g_ref[...].astype(jnp.float32).reshape(1, 1, 1, Ci)
         + b_ref[...].astype(jnp.float32).reshape(1, 1, 1, Ci))
    h = y * jax.nn.sigmoid(y)                                # SiLU in f32
    o_ref[...] = _spatial_conv_tail(h, w_ref, bias_ref, mxu_dtype).astype(o_ref.dtype)


def _conv_s_kernel(x_ref, w_ref, bias_ref, o_ref, *, mxu_dtype):
    # plain spatial 3x3 conv (conv2[0])
    h = x_ref[...].astype(jnp.float32)
    o_ref[...] = _spatial_conv_tail(h, w_ref, bias_ref, mxu_dtype).astype(o_ref.dtype)


def _conv_t_gn_silu_kernel(x_ref, w_ref, bias_ref, g_ref, b_ref, o_ref, *,
                           num_groups, mxu_dtype):
    # causal temporal conv (conv1[1]) with GN2 + SiLU fused into the epilogue
    _, T, H, W, Co = o_ref.shape
    y = _temporal_conv_core(x_ref, w_ref, bias_ref, mxu_dtype)   # (T*H*W, Co) f32
    gamma = g_ref[...].astype(jnp.float32)                       # (1, Co)
    beta = b_ref[...].astype(jnp.float32)
    if num_groups == 1:
        # CausalNormalize(num_groups=1): per-(b, t) frame stats over (H, W, C)
        y3 = y.reshape(T, H * W, Co)
        mean, var = _mean_var_keep_axis0(y3)                     # (T, 1, 1)
        yn = (y3 - mean) * jax.lax.rsqrt(var + EPS)
        yn = yn * gamma.reshape(1, 1, Co) + beta.reshape(1, 1, Co)
        h = yn * jax.nn.sigmoid(yn)
        h = h.reshape(1, T, H, W, Co)
    else:
        # GroupNorm: per-group stats over (T, H, W, Cg) for this sample
        G = num_groups
        Cg = Co // G
        ch_group = jax.lax.broadcasted_iota(jnp.int32, (1, Co), 1) // Cg
        mean_c = jnp.zeros((1, Co), jnp.float32)
        inv_c = jnp.zeros((1, Co), jnp.float32)
        for g in range(G):
            seg = y[:, g * Cg:(g + 1) * Cg]
            m = jnp.mean(seg)
            v = jnp.mean(jnp.square(seg - m))
            mean_c = jnp.where(ch_group == g, m, mean_c)
            inv_c = jnp.where(ch_group == g, jax.lax.rsqrt(v + EPS), inv_c)
        yn = (y - mean_c) * inv_c * gamma + beta
        h = yn * jax.nn.sigmoid(yn)
        h = h.reshape(1, T, H, W, Co)
    # TODO(synk): dropout is identity here (eval mode); train-mode dropout would use pltpu.prng_*.
    o_ref[...] = h.astype(o_ref.dtype)


def _conv_t_nin_res_kernel(h_ref, x_ref, wt_ref, bt_ref, wn_ref, bn_ref, o_ref, *, mxu_dtype):
    # causal temporal conv (conv2[1]) + 1x1x1 nin_shortcut(x) + residual add, fused
    _, T, hh, W, Co = o_ref.shape
    y = _temporal_conv_core(h_ref, wt_ref, bt_ref, mxu_dtype)    # (M, Co)
    Cin = x_ref.shape[-1]
    xs = x_ref[...].astype(mxu_dtype).reshape(T * hh * W, Cin)
    sc = jnp.dot(xs, wn_ref[...].astype(mxu_dtype), preferred_element_type=jnp.float32)
    sc = sc + bn_ref[...].astype(jnp.float32)
    o_ref[...] = (y + sc).reshape(1, T, hh, W, Co).astype(o_ref.dtype)


def _conv_t_res_kernel(h_ref, x_ref, wt_ref, bt_ref, o_ref, *, mxu_dtype):
    # causal temporal conv (conv2[1]) + identity-shortcut residual add
    _, T, hh, W, Co = o_ref.shape
    y = _temporal_conv_core(h_ref, wt_ref, bt_ref, mxu_dtype)
    sc = x_ref[...].astype(jnp.float32).reshape(T * hh * W, Co)
    o_ref[...] = (y + sc).reshape(1, T, hh, W, Co).astype(o_ref.dtype)


# ----------------------------- wrappers (glue) ---------------------------------

def _largest_divisor_leq(n, target):
    t = int(max(1, min(n, target)))
    while n % t:
        t -= 1
    return t


def _spatial_frames_per_block(n_frames, H, W, Ci, Co, budget_bytes=4 * 1024 * 1024):
    # rough f32 VMEM footprint per frame inside the fused spatial kernel
    per_frame = 4 * ((H + 2) * (W + 16) * Ci + 2 * H * W * (2 * Ci + Co))
    budget_frames = max(1, budget_bytes // max(per_frame, 1))
    # keep at least 2 grid steps when possible (pipelining / megacore)
    target = min(budget_frames, max(1, n_frames // 2))
    return _largest_divisor_leq(n_frames, target)


def spatial_conv3x3(x, w, b, gn=None, *, mxu_dtype=jnp.float32):
    """CausalConv3d kernel (1,3,3), zero spatial pad.  gn=(gamma, beta) fuses a per-frame
    GroupNorm(1 group) + SiLU in front of the conv (zero halo built in-kernel)."""
    B, T, H, W, Ci = x.shape
    Co = w.shape[-1]
    N = B * T
    tT = _spatial_frames_per_block(N, H, W, Ci, Co)
    xr = x.reshape(N, H, W, Ci)                      # merges leading dims only (no data movement)
    w2 = w.reshape(9 * Ci, Co)
    bias = b.reshape(1, Co)
    act_spec = pl.BlockSpec((tT, H, W, Ci), lambda i: (i, 0, 0, 0))
    out_spec = pl.BlockSpec((tT, H, W, Co), lambda i: (i, 0, 0, 0))
    w_spec = pl.BlockSpec((9 * Ci, Co), lambda i: (0, 0))
    b_spec = pl.BlockSpec((1, Co), lambda i: (0, 0))
    cparams = pltpu.CompilerParams(dimension_semantics=("parallel",))
    out_shape = jax.ShapeDtypeStruct((N, H, W, Co), x.dtype)
    if gn is None:
        out = pl.pallas_call(
            functools.partial(_conv_s_kernel, mxu_dtype=mxu_dtype),
            out_shape=out_shape, grid=(N // tT,),
            in_specs=[act_spec, w_spec, b_spec],
            out_specs=out_spec, compiler_params=cparams,
        )(xr, w2, bias)
    else:
        gamma, beta = gn
        g_spec = pl.BlockSpec((1, Ci), lambda i: (0, 0))
        out = pl.pallas_call(
            functools.partial(_gn_silu_conv_s_kernel, mxu_dtype=mxu_dtype),
            out_shape=out_shape, grid=(N // tT,),
            in_specs=[act_spec, g_spec, g_spec, w_spec, b_spec],
            out_specs=out_spec, compiler_params=cparams,
        )(xr, gamma.reshape(1, Ci), beta.reshape(1, Ci), w2, bias)
    return out.reshape(B, T, H, W, Co)


def temporal_conv3_gn_silu(x, w, b, gamma, beta, num_groups, *, mxu_dtype=jnp.float32):
    """CausalConv3d kernel (3,1,1) (replicate past pad done in-kernel) with GN2 + SiLU fused
    into the epilogue.  One sample per grid step so the whole group's stats are resident."""
    B, T, H, W, Ci = x.shape
    Co = w.shape[-1]
    assert Co % num_groups == 0
    return pl.pallas_call(
        functools.partial(_conv_t_gn_silu_kernel, num_groups=num_groups, mxu_dtype=mxu_dtype),
        out_shape=jax.ShapeDtypeStruct((B, T, H, W, Co), x.dtype),
        grid=(B,),
        in_specs=[
            pl.BlockSpec((1, T, H, W, Ci), lambda bq: (bq, 0, 0, 0, 0)),
            pl.BlockSpec((3 * Ci, Co), lambda bq: (0, 0)),
            pl.BlockSpec((1, Co), lambda bq: (0, 0)),
            pl.BlockSpec((1, Co), lambda bq: (0, 0)),
            pl.BlockSpec((1, Co), lambda bq: (0, 0)),
        ],
        out_specs=pl.BlockSpec((1, T, H, W, Co), lambda bq: (bq, 0, 0, 0, 0)),
        compiler_params=pltpu.CompilerParams(dimension_semantics=("parallel",)),
    )(x, w.reshape(3 * Ci, Co), b.reshape(1, Co), gamma.reshape(1, Co), beta.reshape(1, Co))


def temporal_conv3_shortcut_residual(h, x, w, b, nin_w=None, nin_b=None, *,
                                     mxu_dtype=jnp.float32):
    """CausalConv3d kernel (3,1,1) + nin_shortcut(x) (or identity) + residual add, fused.
    Grid (B, H-tiles): this stage is pointwise in space, so H is tiled for megacore
    parallelism and VMEM headroom."""
    B, T, H, W, Ci = h.shape
    Co = w.shape[-1]
    Cx = x.shape[-1]
    tH = _largest_divisor_leq(H, max(1, H // 2))
    grid = (B, H // tH)
    h_spec = pl.BlockSpec((1, T, tH, W, Ci), lambda bq, hi: (bq, 0, hi, 0, 0))
    x_spec = pl.BlockSpec((1, T, tH, W, Cx), lambda bq, hi: (bq, 0, hi, 0, 0))
    o_spec = pl.BlockSpec((1, T, tH, W, Co), lambda bq, hi: (bq, 0, hi, 0, 0))
    w_spec = pl.BlockSpec((3 * Ci, Co), lambda bq, hi: (0, 0))
    b_spec = pl.BlockSpec((1, Co), lambda bq, hi: (0, 0))
    cparams = pltpu.CompilerParams(dimension_semantics=("parallel", "parallel"))
    out_shape = jax.ShapeDtypeStruct((B, T, H, W, Co), h.dtype)
    if nin_w is None:
        assert Cx == Co
        return pl.pallas_call(
            functools.partial(_conv_t_res_kernel, mxu_dtype=mxu_dtype),
            out_shape=out_shape, grid=grid,
            in_specs=[h_spec, x_spec, w_spec, b_spec],
            out_specs=o_spec, compiler_params=cparams,
        )(h, x, w.reshape(3 * Ci, Co), b.reshape(1, Co))
    wn_spec = pl.BlockSpec((Cx, Co), lambda bq, hi: (0, 0))
    return pl.pallas_call(
        functools.partial(_conv_t_nin_res_kernel, mxu_dtype=mxu_dtype),
        out_shape=out_shape, grid=grid,
        in_specs=[h_spec, x_spec, w_spec, b_spec, wn_spec, b_spec],
        out_specs=o_spec, compiler_params=cparams,
    )(h, x, w.reshape(3 * Ci, Co), b.reshape(1, Co), nin_w, nin_b.reshape(1, Co))


def causal_resnet_block_factorized3d(x, params, num_groups, *, mxu_bf16=False):
    """Pallas forward of CausalResnetBlockFactorized3d.  x: (B, T, H, W, C_in) channels-last."""
    mxu_dtype = jnp.bfloat16 if mxu_bf16 else jnp.float32
    # norm1 (per-frame) + SiLU + conv1 spatial, fused
    h = spatial_conv3x3(x, params["conv1_s_w"], params["conv1_s_b"],
                        gn=(params["gn1_gamma"], params["gn1_beta"]), mxu_dtype=mxu_dtype)
    # conv1 temporal + norm2 + SiLU, fused (dropout = identity in eval)
    h = temporal_conv3_gn_silu(h, params["conv1_t_w"], params["conv1_t_b"],
                               params["gn2_gamma"], params["gn2_beta"], num_groups,
                               mxu_dtype=mxu_dtype)
    # conv2 spatial
    h = spatial_conv3x3(h, params["conv2_s_w"], params["conv2_s_b"], mxu_dtype=mxu_dtype)
    # conv2 temporal + nin_shortcut + residual add, fused
    return temporal_conv3_shortcut_residual(h, x, params["conv2_t_w"], params["conv2_t_b"],
                                            params.get("nin_w"), params.get("nin_b"),
                                            mxu_dtype=mxu_dtype)


# ----------------------------- pure-JAX reference ---------------------------------

def _ref_gn_silu(x, gamma, beta, G):
    B, T, H, W, C = x.shape
    if G == 1:
        xr = x.reshape(B * T, -1)
        mean = xr.mean(axis=1, keepdims=True)
        var = xr.var(axis=1, keepdims=True)
        xn = ((xr - mean) / jnp.sqrt(var + EPS)).reshape(B, T, H, W, C)
    else:
        xg = x.reshape(B, T, H, W, G, C // G)
        mean = xg.mean(axis=(1, 2, 3, 5), keepdims=True)
        var = xg.var(axis=(1, 2, 3, 5), keepdims=True)
        xn = ((xg - mean) / jnp.sqrt(var + EPS)).reshape(B, T, H, W, C)
    y = xn * gamma + beta
    return y * jax.nn.sigmoid(y)


def _ref_conv_s(x, w, b):
    B, T, H, W, Ci = x.shape
    xr = x.reshape(B * T, H, W, Ci)
    y = jax.lax.conv_general_dilated(
        xr, w, window_strides=(1, 1), padding=((1, 1), (1, 1)),
        dimension_numbers=("NHWC", "HWIO", "NHWC"))
    return y.reshape(B, T, H, W, -1) + b


def _ref_conv_t(x, w, b):
    T = x.shape[1]
    xp = jnp.concatenate([x[:, :1], x[:, :1], x], axis=1)
    y = sum(jnp.einsum("bthwc,co->bthwo", xp[:, k:k + T], w[k]) for k in range(3))
    return y + b


def ref_forward(x, params, num_groups):
    h = _ref_gn_silu(x, params["gn1_gamma"], params["gn1_beta"], 1)
    h = _ref_conv_s(h, params["conv1_s_w"], params["conv1_s_b"])
    h = _ref_conv_t(h, params["conv1_t_w"], params["conv1_t_b"])
    h = _ref_gn_silu(h, params["gn2_gamma"], params["gn2_beta"], num_groups)
    h = _ref_conv_s(h, params["conv2_s_w"], params["conv2_s_b"])
    h = _ref_conv_t(h, params["conv2_t_w"], params["conv2_t_b"])
    if "nin_w" in params:
        sc = jnp.einsum("bthwc,co->bthwo", x, params["nin_w"]) + params["nin_b"]
    else:
        sc = x
    return sc + h


# ----------------------------- main ---------------------------------

def make_params(key, C_in, C_out):
    keys = jax.random.split(key, 16)

    def winit(k, shape, scale=0.05):
        return scale * jax.random.normal(k, shape, jnp.float32)

    p = dict(
        gn1_gamma=1.0 + 0.1 * jax.random.normal(keys[1], (C_in,), jnp.float32),
        gn1_beta=0.1 * jax.random.normal(keys[2], (C_in,), jnp.float32),
        conv1_s_w=winit(keys[3], (3, 3, C_in, C_out)),   # kernel (1,3,3): (kh, kw, Cin, Cout)
        conv1_s_b=winit(keys[4], (C_out,)),
        conv1_t_w=winit(keys[5], (3, C_out, C_out)),     # kernel (3,1,1): (kt, Cin, Cout)
        conv1_t_b=winit(keys[6], (C_out,)),
        gn2_gamma=1.0 + 0.1 * jax.random.normal(keys[7], (C_out,), jnp.float32),
        gn2_beta=0.1 * jax.random.normal(keys[8], (C_out,), jnp.float32),
        conv2_s_w=winit(keys[9], (3, 3, C_out, C_out)),
        conv2_s_b=winit(keys[10], (C_out,)),
        conv2_t_w=winit(keys[11], (3, C_out, C_out)),
        conv2_t_b=winit(keys[12], (C_out,)),
    )
    if C_in != C_out:
        p["nin_w"] = winit(keys[13], (C_in, C_out))      # 1x1x1 shortcut
        p["nin_b"] = winit(keys[14], (C_out,))
    return p


if __name__ == "__main__":
    B, T, H, W = 2, 4, 8, 8
    key = jax.random.PRNGKey(0)
    kx, kp1, kp2 = jax.random.split(key, 3)

    # channel-changing block (nin_shortcut path); num_groups=1 as used inside DecoderFactorized
    C_in, C_out = 16, 32
    x_ncthw = jax.random.normal(kx, (B, C_in, T, H, W), jnp.float32)  # PyTorch (B,C,T,H,W)
    x = jnp.transpose(x_ncthw, (0, 2, 3, 4, 1))                        # channels-last (B,T,H,W,C)
    params = make_params(kp1, C_in, C_out)

    out = jax.block_until_ready(causal_resnet_block_factorized3d(x, params, num_groups=1))
    assert out.shape == (B, T, H, W, C_out)
    ref = ref_forward(x, params, 1)
    np.testing.assert_allclose(np.asarray(out), np.asarray(ref), rtol=2e-3, atol=2e-3)

    # grouped norm2 path (num_groups > 1)
    out_g = jax.block_until_ready(causal_resnet_block_factorized3d(x, params, num_groups=4))
    ref_g = ref_forward(x, params, 4)
    np.testing.assert_allclose(np.asarray(out_g), np.asarray(ref_g), rtol=2e-3, atol=2e-3)

    # bf16 MXU operands (f32 accumulation, f32 GN/SiLU) -- looser tolerance
    out_bf = jax.block_until_ready(
        causal_resnet_block_factorized3d(x, params, num_groups=1, mxu_bf16=True))
    np.testing.assert_allclose(np.asarray(out_bf), np.asarray(ref), rtol=5e-2, atol=5e-2)

    # identity-shortcut path (in_channels == out_channels)
    params_id = make_params(kp2, C_in, C_in)
    out_id = jax.block_until_ready(causal_resnet_block_factorized3d(x, params_id, num_groups=1))
    ref_id = ref_forward(x, params_id, 1)
    np.testing.assert_allclose(np.asarray(out_id), np.asarray(ref_id), rtol=2e-3, atol=2e-3)

    print("KERNEL_OK")
</pallas_src>

<mosaic_0001>
module attributes {stable_mosaic.version = 11 : i64} {
  func.func @_gn_silu_conv_s_kernel(%arg0: i32, %arg1: memref<4x8x8x16xf32, #tpu.memory_space<vmem>>, %arg2: memref<1x16xf32, #tpu.memory_space<vmem>>, %arg3: memref<1x16xf32, #tpu.memory_space<vmem>>, %arg4: memref<144x32xf32, #tpu.memory_space<vmem>>, %arg5: memref<1x32xf32, #tpu.memory_space<vmem>>, %arg6: memref<4x8x8x32xf32, #tpu.memory_space<vmem>>) attributes {dimension_semantics = [#tpu.dimension_semantics<parallel>], iteration_bounds = array<i64: 2>, scalar_prefetch = 0 : i64, scratch_operands = 0 : i64, tpu.core_type = #tpu.core_type<tc>, window_params = [{transform_indices = @transform_0, window_bounds = array<i64: 4, 8, 8, 16>}, {pipeline_mode = #tpu.pipeline_mode<synchronous>, transform_indices = @transform_1, window_bounds = array<i64: 1, 16>}, {pipeline_mode = #tpu.pipeline_mode<synchronous>, transform_indices = @transform_2, window_bounds = array<i64: 1, 16>}, {pipeline_mode = #tpu.pipeline_mode<synchronous>, transform_indices = @transform_3, window_bounds = array<i64: 144, 32>}, {pipeline_mode = #tpu.pipeline_mode<synchronous>, transform_indices = @transform_4, window_bounds = array<i64: 1, 32>}, {transform_indices = @transform_5, window_bounds = array<i64: 4, 8, 8, 32>}]} {
    %c0 = arith.constant 0 : index
    %c0_0 = arith.constant 0 : index
    %c0_1 = arith.constant 0 : index
    %c0_2 = arith.constant 0 : index
    %0 = vector.load %arg1[%c0, %c0_0, %c0_1, %c0_2] : memref<4x8x8x16xf32, #tpu.memory_space<vmem>>, vector<4x8x8x16xf32>
    %cst = arith.constant dense<0.000000e+00> : vector<4x8x8xf32>
    %1 = vector.multi_reduction <add>, %0, %cst [3] : vector<4x8x8x16xf32> to vector<4x8x8xf32>
    %2 = vector.shape_cast %1 : vector<4x8x8xf32> to vector<4x8x8x1xf32>
    %cst_3 = arith.constant dense<0.000000e+00> : vector<4x8x1xf32>
    %3 = vector.multi_reduction <add>, %2, %cst_3 [2] : vector<4x8x8x1xf32> to vector<4x8x1xf32>
    %4 = vector.shape_cast %3 : vector<4x8x1xf32> to vector<4x8x1x1xf32>
    %cst_4 = arith.constant dense<0.000000e+00> : vector<4x1x1xf32>
    %5 = vector.multi_reduction <add>, %4, %cst_4 [1] : vector<4x8x1x1xf32> to vector<4x1x1xf32>
    %6 = vector.shape_cast %5 : vector<4x1x1xf32> to vector<4x1x1x1xf32>
    %cst_5 = arith.constant 1.024000e+03 : f32
    %7 = vector.broadcast %cst_5 : f32 to vector<4x1x1x1xf32>
    %8 = arith.divf %6, %7 : vector<4x1x1x1xf32>
    %9 = vector.broadcast %8 : vector<4x1x1x1xf32> to vector<4x8x8x16xf32>
    %10 = arith.subf %0, %9 : vector<4x8x8x16xf32>
    %11 = arith.mulf %10, %10 : vector<4x8x8x16xf32>
    %cst_6 = arith.constant dense<0.000000e+00> : vector<4x8x8xf32>
    %12 = vector.multi_reduction <add>, %11, %cst_6 [3] : vector<4x8x8x16xf32> to vector<4x8x8xf32>
    %13 = vector.shape_cast %12 : vector<4x8x8xf32> to vector<4x8x8x1xf32>
    %cst_7 = arith.constant dense<0.000000e+00> : vector<4x8x1xf32>
    %14 = vector.multi_reduction <add>, %13, %cst_7 [2] : vector<4x8x8x1xf32> to vector<4x8x1xf32>
    %15 = vector.shape_cast %14 : vector<4x8x1xf32> to vector<4x8x1x1xf32>
    %cst_8 = arith.constant dense<0.000000e+00> : vector<4x1x1xf32>
    %16 = vector.multi_reduction <add>, %15, %cst_8 [1] : vector<4x8x1x1xf32> to vector<4x1x1xf32>
    %17 = vector.shape_cast %16 : vector<4x1x1xf32> to vector<4x1x1x1xf32>
    %cst_9 = arith.constant 1.024000e+03 : f32
    %18 = vector.broadcast %cst_9 : f32 to vector<4x1x1x1xf32>
    %19 = arith.divf %17, %18 : vector<4x1x1x1xf32>
    %20 = vector.broadcast %8 : vector<4x1x1x1xf32> to vector<4x8x8x16xf32>
    %21 = arith.subf %0, %20 : vector<4x8x8x16xf32>
    %cst_10 = arith.constant 9.99999997E-7 : f32
    %22 = vector.broadcast %cst_10 : f32 to vector<4x1x1x1xf32>
    %23 = arith.addf %19, %22 : vector<4x1x1x1xf32>
    %24 = math.rsqrt %23 : vector<4x1x1x1xf32>
    %25 = vector.broadcast %24 : vector<4x1x1x1xf32> to vector<4x8x8x16xf32>
    %26 = arith.mulf %21, %25 : vector<4x8x8x16xf32>
    %c0_11 = arith.constant 0 : index
    %c0_12 = arith.constant 0 : index
    %27 = vector.load %arg2[%c0_11, %c0_12] : memref<1x16xf32, #tpu.memory_space<vmem>>, vector<1x16xf32>
    %28 = vector.shape_cast %27 : vector<1x16xf32> to vector<1x1x1x16xf32>
    %29 = vector.broadcast %28 : vector<1x1x1x16xf32> to vector<4x8x8x16xf32>
    %30 = arith.mulf %26, %29 : vector<4x8x8x16xf32>
    %c0_13 = arith.constant 0 : index
    %c0_14 = arith.constant 0 : index
    %31 = vector.load %arg3[%c0_13, %c0_14] : memref<1x16xf32, #tpu.memory_space<vmem>>, vector<1x16xf32>
    %32 = vector.shape_cast %31 : vector<1x16xf32> to vector<1x1x1x16xf32>
    %33 = vector.broadcast %32 : vector<1x1x1x16xf32> to vector<4x8x8x16xf32>
    %34 = arith.addf %30, %33 : vector<4x8x8x16xf32>
    %35 = arith.negf %34 : vector<4x8x8x16xf32>
    %36 = math.exp %35 : vector<4x8x8x16xf32>
    %cst_15 = arith.constant 1.000000e+00 : f32
    %37 = vector.broadcast %cst_15 : f32 to vector<4x8x8x16xf32>
    %38 = arith.addf %37, %36 : vector<4x8x8x16xf32>
    %39 = arith.divf %37, %38 : vector<4x8x8x16xf32>
    %40 = arith.mulf %34, %39 : vector<4x8x8x16xf32>
    %cst_16 = arith.constant 0.000000e+00 : f32
    %41 = vector.broadcast %cst_16 : f32 to vector<4x1x8x16xf32>
    %42 = tpu.concatenate %41, %40, %41 in 1 : vector<4x1x8x16xf32>, vector<4x8x8x16xf32>, vector<4x1x8x16xf32> -> vector<4x10x8x16xf32>
    %cst_17 = arith.constant 0.000000e+00 : f32
    %43 = vector.broadcast %cst_17 : f32 to vector<4x10x8x16xf32>
    %44 = tpu.concatenate %43, %42, %43 in 2 : vector<4x10x8x16xf32>, vector<4x10x8x16xf32>, vector<4x10x8x16xf32> -> vector<4x10x24x16xf32>
    %c0_18 = arith.constant 0 : index
    %c0_19 = arith.constant 0 : index
    %45 = vector.load %arg4[%c0_18, %c0_19] : memref<144x32xf32, #tpu.memory_space<vmem>>, vector<144x32xf32>
    %cst_20 = arith.constant 0.000000e+00 : f32
    %46 = vector.broadcast %cst_20 : f32 to vector<256x32xf32>
    %47 = vector.extract_strided_slice %44 {offsets = [0, 0, 7, 0], sizes = [4, 8, 8, 16], strides = [1, 1, 1, 1]} : vector<4x10x24x16xf32> to vector<4x8x8x16xf32>
    %48 = vector.shape_cast %47 : vector<4x8x8x16xf32> to vector<256x16xf32>
    %49 = vector.extract_strided_slice %45 {offsets = [0, 0], sizes = [16, 32], strides = [1, 1]} : vector<144x32xf32> to vector<16x32xf32>
    %cst_21 = arith.constant dense<0.000000e+00> : vector<256x32xf32>
    %50 = tpu.matmul %48, %49, %cst_21 {dimension_numbers = #tpu.dot_dimension_numbers<[1], [0], [0], [1], [0, 0, 1, 1], [], []>} : vector<256x16xf32>, vector<16x32xf32>, vector<256x32xf32> -> vector<256x32xf32>
    %51 = arith.addf %46, %50 : vector<256x32xf32>
    %52 = vector.extract_strided_slice %44 {offsets = [0, 0, 8, 0], sizes = [4, 8, 8, 16], strides = [1, 1, 1, 1]} : vector<4x10x24x16xf32> to vector<4x8x8x16xf32>
    %53 = vector.shape_cast %52 : vector<4x8x8x16xf32> to vector<256x16xf32>
    %54 = vector.extract_strided_slice %45 {offsets = [16, 0], sizes = [16, 32], strides = [1, 1]} : vector<144x32xf32> to vector<16x32xf32>
    %cst_22 = arith.constant dense<0.000000e+00> : vector<256x32xf32>
    %55 = tpu.matmul %53, %54, %cst_22 {dimension_numbers = #tpu.dot_dimension_numbers<[1], [0], [0], [1], [0, 0, 1, 1], [], []>} : vector<256x16xf32>, vector<16x32xf32>, vector<256x32xf32> -> vector<256x32xf32>
    %56 = arith.addf %51, %55 : vector<256x32xf32>
    %57 = vector.extract_strided_slice %44 {offsets = [0, 0, 9, 0], sizes = [4, 8, 8, 16], strides = [1, 1, 1, 1]} : vector<4x10x24x16xf32> to vector<4x8x8x16xf32>
    %58 = vector.shape_cast %57 : vector<4x8x8x16xf32> to vector<256x16xf32>
    %59 = vector.extract_strided_slice %45 {offsets = [32, 0], sizes = [16, 32], strides = [1, 1]} : vector<144x32xf32> to vector<16x32xf32>
    %cst_23 = arith.constant dense<0.000000e+00> : vector<256x32xf32>
    %60 = tpu.matmul %58, %59, %cst_23 {dimension_numbers = #tpu.dot_dimension_numbers<[1], [0], [0], [1], [0, 0, 1, 1], [], []>} : vector<256x16xf32>, vector<16x32xf32>, vector<256x32xf32> -> vector<256x32xf32>
    %61 = arith.addf %56, %60 : vector<256x32xf32>
    %62 = vector.extract_strided_slice %44 {offsets = [0, 1, 7, 0], sizes = [4, 8, 8, 16], strides = [1, 1, 1, 1]} : vector<4x10x24x16xf32> to vector<4x8x8x16xf32>
    %63 = vector.shape_cast %62 : vector<4x8x8x16xf32> to vector<256x16xf32>
    %64 = vector.extract_strided_slice %45 {offsets = [48, 0], sizes = [16, 32], strides = [1, 1]} : vector<144x32xf32> to vector<16x32xf32>
    %cst_24 = arith.constant dense<0.000000e+00> : vector<256x32xf32>
    %65 = tpu.matmul %63, %64, %cst_24 {dimension_numbers = #tpu.dot_dimension_numbers<[1], [0], [0], [1], [0, 0, 1, 1], [], []>} : vector<256x16xf32>, vector<16x32xf32>, vector<256x32xf32> -> vector<256x32xf32>
    %66 = arith.addf %61, %65 : vector<256x32xf32>
    %67 = vector.extract_strided_slice %44 {offsets = [0, 1, 8, 0], sizes = [4, 8, 8, 16], strides = [1, 1, 1, 1]} : vector<4x10x24x16xf32> to vector<4x8x8x16xf32>
    %68 = vector.shape_cast %67 : vector<4x8x8x16xf32> to vector<256x16xf32>
    %69 = vector.extract_strided_slice %45 {offsets = [64, 0], sizes = [16, 32], strides = [1, 1]} : vector<144x32xf32> to vector<16x32xf32>
    %cst_25 = arith.constant dense<0.000000e+00> : vector<256x32xf32>
    %70 = tpu.matmul %68, %69, %cst_25 {dimension_numbers = #tpu.dot_dimension_numbers<[1], [0], [0], [1], [0, 0, 1, 1], [], []>} : vector<256x16xf32>, vector<16x32xf32>, vector<256x32xf32> -> vector<256x32xf32>
    %71 = arith.addf %66, %70 : vector<256x32xf32>
    %72 = vector.extract_strided_slice %44 {offsets = [0, 1, 9, 0], sizes = [4, 8, 8, 16], strides = [1, 1, 1, 1]} : vector<4x10x24x16xf32> to vector<4x8x8x16xf32>
    %73 = vector.shape_cast %72 : vector<4x8x8x16xf32> to vector<256x16xf32>
    %74 = vector.extract_strided_slice %45 {offsets = [80, 0], sizes = [16, 32], strides = [1, 1]} : vector<144x32xf32> to vector<16x32xf32>
    %cst_26 = arith.constant dense<0.000000e+00> : vector<256x32xf32>
    %75 = tpu.matmul %73, %74, %cst_26 {dimension_numbers = #tpu.dot_dimension_numbers<[1], [0], [0], [1], [0, 0, 1, 1], [], []>} : vector<256x16xf32>, vector<16x32xf32>, vector<256x32xf32> -> vector<256x32xf32>
    %76 = arith.addf %71, %75 : vector<256x32xf32>
    %77 = vector.extract_strided_slice %44 {offsets = [0, 2, 7, 0], sizes = [4, 8, 8, 16], strides = [1, 1, 1, 1]} : vector<4x10x24x16xf32> to vector<4x8x8x16xf32>
    %78 = vector.shape_cast %77 : vector<4x8x8x16xf32> to vector<256x16xf32>
    %79 = vector.extract_strided_slice %45 {offsets = [96, 0], sizes = [16, 32], strides = [1, 1]} : vector<144x32xf32> to vector<16x32xf32>
    %cst_27 = arith.constant dense<0.000000e+00> : vector<256x32xf32>
    %80 = tpu.matmul %78, %79, %cst_27 {dimension_numbers = #tpu.dot_dimension_numbers<[1], [0], [0], [1], [0, 0, 1, 1], [], []>} : vector<256x16xf32>, vector<16x32xf32>, vector<256x32xf32> -> vector<256x32xf32>
    %81 = arith.addf %76, %80 : vector<256x32xf32>
    %82 = vector.extract_strided_slice %44 {offsets = [0, 2, 8, 0], sizes = [4, 8, 8, 16], strides = [1, 1, 1, 1]} : vector<4x10x24x16xf32> to vector<4x8x8x16xf32>
    %83 = vector.shape_cast %82 : vector<4x8x8x16xf32> to vector<256x16xf32>
    %84 = vector.extract_strided_slice %45 {offsets = [112, 0], sizes = [16, 32], strides = [1, 1]} : vector<144x32xf32> to vector<16x32xf32>
    %cst_28 = arith.constant dense<0.000000e+00> : vector<256x32xf32>
    %85 = tpu.matmul %83, %84, %cst_28 {dimension_numbers = #tpu.dot_dimension_numbers<[1], [0], [0], [1], [0, 0, 1, 1], [], []>} : vector<256x16xf32>, vector<16x32xf32>, vector<256x32xf32> -> vector<256x32xf32>
    %86 = arith.addf %81, %85 : vector<256x32xf32>
    %87 = vector.extract_strided_slice %44 {offsets = [0, 2, 9, 0], sizes = [4, 8, 8, 16], strides = [1, 1, 1, 1]} : vector<4x10x24x16xf32> to vector<4x8x8x16xf32>
    %88 = vector.shape_cast %87 : vector<4x8x8x16xf32> to vector<256x16xf32>
    %89 = vector.extract_strided_slice %45 {offsets = [128, 0], sizes = [16, 32], strides = [1, 1]} : vector<144x32xf32> to vector<16x32xf32>
    %cst_29 = arith.constant dense<0.000000e+00> : vector<256x32xf32>
    %90 = tpu.matmul %88, %89, %cst_29 {dimension_numbers = #tpu.dot_dimension_numbers<[1], [0], [0], [1], [0, 0, 1, 1], [], []>} : vector<256x16xf32>, vector<16x32xf32>, vector<256x32xf32> -> vector<256x32xf32>
    %91 = arith.addf %86, %90 : vector<256x32xf32>
    %c0_30 = arith.constant 0 : index
    %c0_31 = arith.constant 0 : index
    %92 = vector.load %arg5[%c0_30, %c0_31] : memref<1x32xf32, #tpu.memory_space<vmem>>, vector<1x32xf32>
    %93 = vector.broadcast %92 : vector<1x32xf32> to vector<256x32xf32>
    %94 = arith.addf %91, %93 : vector<256x32xf32>
    %95 = vector.shape_cast %94 : vector<256x32xf32> to vector<4x8x8x32xf32>
    %c0_32 = arith.constant 0 : index
    %c0_33 = arith.constant 0 : index
    %c0_34 = arith.constant 0 : index
    %c0_35 = arith.constant 0 : index
    %96 = vector.load %arg6[%c0_32, %c0_33, %c0_34, %c0_35] : memref<4x8x8x32xf32, #tpu.memory_space<vmem>>, vector<4x8x8x32xf32>
    tpu.vector_store %arg6[%c0_32, %c0_33, %c0_34, %c0_35], %95 {strides = array<i32>} : memref<4x8x8x32xf32, #tpu.memory_space<vmem>>, vector<4x8x8x32xf32>,
    return
  }
  func.func @transform_0(%arg0: i32) -> (i32, i32, i32, i32) {
    %c0_i32 = arith.constant 0 : i32
    %c0_i32_0 = arith.constant 0 : i32
    %c0_i32_1 = arith.constant 0 : i32
    %c0_i32_2 = arith.constant 0 : i32
    return %arg0, %c0_i32, %c0_i32_0, %c0_i32_1 : i32, i32, i32, i32
  }
  func.func @transform_1(%arg0: i32) -> (i32, i32) {
    %c0_i32 = arith.constant 0 : i32
    %c0_i32_0 = arith.constant 0 : i32
    %c0_i32_1 = arith.constant 0 : i32
    return %c0_i32, %c0_i32_0 : i32, i32
  }
  func.func @transform_2(%arg0: i32) -> (i32, i32) {
    %c0_i32 = arith.constant 0 : i32
    %c0_i32_0 = arith.constant 0 : i32
    %c0_i32_1 = arith.constant 0 : i32
    return %c0_i32, %c0_i32_0 : i32, i32
  }
  func.func @transform_3(%arg0: i32) -> (i32, i32) {
    %c0_i32 = arith.constant 0 : i32
    %c0_i32_0 = arith.constant 0 : i32
    %c0_i32_1 = arith.constant 0 : i32
    return %c0_i32, %c0_i32_0 : i32, i32
  }
  func.func @transform_4(%arg0: i32) -> (i32, i32) {
    %c0_i32 = arith.constant 0 : i32
    %c0_i32_0 = arith.constant 0 : i32
    %c0_i32_1 = arith.constant 0 : i32
    return %c0_i32, %c0_i32_0 : i32, i32
  }
  func.func @transform_5(%arg0: i32) -> (i32, i32, i32, i32) {
    %c0_i32 = arith.constant 0 : i32
    %c0_i32_0 = arith.constant 0 : i32
    %c0_i32_1 = arith.constant 0 : i32
    %c0_i32_2 = arith.constant 0 : i32
    return %arg0, %c0_i32, %c0_i32_0, %c0_i32_1 : i32, i32, i32, i32
  }
}

</mosaic_0001>

<llo_original>
// kernel: tpu_custom_call.1
$region0: #{tpu_custom_call.1}
  #allocation0 [shape = 'u32[]', space=smem, size = 0x4, offset = 0x4, fixed_abs, tag = 'smem constant byte address 0x4 - core index']
  #allocation1 [shape = 'u32[144,128]{1,0:T(1,128)}', space=vmem, size = 0x12000, scoped, tag = 'internal scratch']
  %s0 = inlined_call_operand.hbm [shape: f32[8,8,8,16], index: 0, kind: input, shape index: {}]
  %s1 = inlined_call_operand.vmem [shape: f32[1,16], index: 1, kind: input, shape index: {}]
  %s2 = inlined_call_operand.vmem [shape: f32[1,16], index: 2, kind: input, shape index: {}]
  %s3 = inlined_call_operand.vmem [shape: f32[144,32], index: 3, kind: input, shape index: {}]
  %s4 = inlined_call_operand.vmem [shape: f32[1,32], index: 4, kind: input, shape index: {}]
  %s5 = inlined_call_operand.hbm [shape: f32[8,8,8,32], index: 5, kind: output, shape index: {}]
  %s6 = sld [smem:[#allocation0]]
  $region57: #{tpu_custom_call.1} parent=0
    _
  %s8 = ssub.s32 1, %s6
  %s9 = scalar_select 0, %s8, %s6
  $region1: #{tpu_custom_call.1} parent=0
    #allocation2 [shape = 'u8[262144]{0}', space=vmem, size = 0x40000, scoped, tag = 'input window, operand 0']
    #allocation3 [shape = 's32[2]{0}', space=sflag, size = 0x8, scoped, tag = 'scoped memory for tpu_custom_call.1']
    #allocation4 [shape = 's32[2]{0}', space=sflag, size = 0x8, scoped, tag = 'scoped memory for tpu_custom_call.1']
    #allocation5 [shape = 'u8[262144]{0}', space=vmem, size = 0x40000, scoped, tag = 'output window, operand 0']
    %10 = vsyncpa [#allocation3], 0
    %s11 = scalar_lea.sflag [#allocation3], 1
    %12 = vsyncpa %s11, 0
    %13 = vsyncpa [#allocation4], 0
    %s14 = scalar_lea.sflag [#allocation4], 1
    %15 = vsyncpa %s14, 0
    loop: start=0, step=1, limit=4
    $region2: #{tpu_custom_call.1} parent=1 // loop_pre_header
      _
    $region3: #{tpu_custom_call.1} parent=1 // loop_header
      %s17 = sphi 0, %s21
      %p18 = scmp.ge.s32.totalorder %s17, 4
      %s27 = sphi 0, %s29
      %s30 = sphi 0, %s27
      %s31 = sphi 0, %s30
      %s47 = sphi 0, %s31
      %s51 = sphi 0, %s51
      %s53 = sphi 0, %s51
      %s54 = sphi 0, %s53
      %s68 = sphi 0, %s54
      %s72 = sphi 0, %s72
      %s74 = sphi 0, %s72
      %s75 = sphi 0, %s74
      %s89 = sphi 0, %s75
      %s93 = sphi 0, %s93
      %s95 = sphi 0, %s93
      %s96 = sphi 0, %s95
      %s110 = sphi 0, %s96
      %s114 = sphi 0, %s114
      %s116 = sphi 0, %s114
      %s117 = sphi 0, %s116
      %s131 = sphi 0, %s117
      %s137 = sphi 0, %s139
      %s140 = sphi 0, %s137
      %s141 = sphi 0, %s140
      %s157 = sphi 0, %s141
    $region4: #{tpu_custom_call.1} parent=1 // loop_header_branch
      %20 = sbr.rel (%p18) target = $region8
    $region5: #{tpu_custom_call.1} parent=1 // loop_body
      %s22 = ssub.s32 %s17, 1
      %s23 = ssub.s32 %s17, 2
      %s24 = sadd.s32 %s17, 1
      %s25 = ssub.s32 %s17, %s24
      %p26 = scmp.eq.s32.totalorder %s25, 0
      %s28 = sadd.s32 %s27, 1
      %s29 = scalar_select %p26, %s27, %s28
      %p32 = pneg %p26
      %p33 = scmp.eq.s32.totalorder %s17, 1
      %p34 = por %p32, %p33
      %p35 = scmp.ne.s32.totalorder %s27, %s30
      %p36 = scmp.eq.s32.totalorder %s17, 0
      %p37 = por %p35, %p36
      %p38 = scmp.ne.s32.totalorder %s27, %s30
      %p39 = scmp.eq.s32.totalorder %s22, 1
      %p40 = por %p38, %p39
      %p41 = scmp.ne.s32.totalorder %s30, %s31
      %p42 = scmp.eq.s32.totalorder %s22, 0
      %p43 = por %p41, %p42
      %p44 = scmp.ne.s32.totalorder %s30, %s31
      %p45 = scmp.eq.s32.totalorder %s23, 1
      %p46 = por %p44, %p45
      %p48 = scmp.ne.s32.totalorder %s31, %s47
      %p49 = scmp.eq.s32.totalorder %s23, 0
      %p50 = por %p48, %p49
      %s52 = sadd.s32 %s51, 1
      %p55 = scmp.eq.s32.totalorder %s17, 1
      %p56 = scmp.ne.s32.totalorder %s51, %s53
      %p57 = scmp.eq.s32.totalorder %s17, 0
      %p58 = por %p56, %p57
      %p59 = scmp.ne.s32.totalorder %s51, %s53
      %p60 = scmp.eq.s32.totalorder %s22, 1
      %p61 = por %p59, %p60
      %p62 = scmp.ne.s32.totalorder %s53, %s54
      %p63 = scmp.eq.s32.totalorder %s22, 0
      %p64 = por %p62, %p63
      %p65 = scmp.ne.s32.totalorder %s53, %s54
      %p66 = scmp.eq.s32.totalorder %s23, 1
      %p67 = por %p65, %p66
      %p69 = scmp.ne.s32.totalorder %s54, %s68
      %p70 = scmp.eq.s32.totalorder %s23, 0
      %p71 = por %p69, %p70
      %s73 = sadd.s32 %s72, 1
      %p76 = scmp.eq.s32.totalorder %s17, 1
      %p77 = scmp.ne.s32.totalorder %s72, %s74
      %p78 = scmp.eq.s32.totalorder %s17, 0
      %p79 = por %p77, %p78
      %p80 = scmp.ne.s32.totalorder %s72, %s74
      %p81 = scmp.eq.s32.totalorder %s22, 1
      %p82 = por %p80, %p81
      %p83 = scmp.ne.s32.totalorder %s74, %s75
      %p84 = scmp.eq.s32.totalorder %s22, 0
      %p85 = por %p83, %p84
      %p86 = scmp.ne.s32.totalorder %s74, %s75
      %p87 = scmp.eq.s32.totalorder %s23, 1
      %p88 = por %p86, %p87
      %p90 = scmp.ne.s32.totalorder %s75, %s89
      %p91 = scmp.eq.s32.totalorder %s23, 0
      %p92 = por %p90, %p91
      %s94 = sadd.s32 %s93, 1
      %p97 = scmp.eq.s32.totalorder %s17, 1
      %p98 = scmp.ne.s32.totalorder %s93, %s95
      %p99 = scmp.eq.s32.totalorder %s17, 0
      %p100 = por %p98, %p99
      %p101 = scmp.ne.s32.totalorder %s93, %s95
      %p102 = scmp.eq.s32.totalorder %s22, 1
      %p103 = por %p101, %p102
      %p104 = scmp.ne.s32.totalorder %s95, %s96
      %p105 = scmp.eq.s32.totalorder %s22, 0
      %p106 = por %p104, %p105
      %p107 = scmp.ne.s32.totalorder %s95, %s96
      %p108 = scmp.eq.s32.totalorder %s23, 1
      %p109 = por %p107, %p108
      %p111 = scmp.ne.s32.totalorder %s96, %s110
      %p112 = scmp.eq.s32.totalorder %s23, 0
      %p113 = por %p111, %p112
      %s115 = sadd.s32 %s114, 1
      %p118 = scmp.eq.s32.totalorder %s17, 1
      %p119 = scmp.ne.s32.totalorder %s114, %s116
      %p120 = scmp.eq.s32.totalorder %s17, 0
      %p121 = por %p119, %p120
      %p122 = scmp.ne.s32.totalorder %s114, %s116
      %p123 = scmp.eq.s32.totalorder %s22, 1
      %p124 = por %p122, %p123
      %p125 = scmp.ne.s32.totalorder %s116, %s117
      %p126 = scmp.eq.s32.totalorder %s22, 0
      %p127 = por %p125, %p126
      %p128 = scmp.ne.s32.totalorder %s116, %s117
      %p129 = scmp.eq.s32.totalorder %s23, 1
      %p130 = por %p128, %p129
      %p132 = scmp.ne.s32.totalorder %s117, %s131
      %p133 = scmp.eq.s32.totalorder %s23, 0
      %p134 = por %p132, %p133
      %s135 = ssub.s32 %s17, %s24
      %p136 = scmp.eq.s32.totalorder %s135, 0
      %s138 = sadd.s32 %s137, 1
      %s139 = scalar_select %p136, %s137, %s138
      %p142 = pneg %p136
      %p143 = scmp.eq.s32.totalorder %s17, 1
      %p144 = por %p142, %p143
      %p145 = scmp.ne.s32.totalorder %s137, %s140
      %p146 = scmp.eq.s32.totalorder %s17, 0
      %p147 = por %p145, %p146
      %p148 = scmp.ne.s32.totalorder %s137, %s140
      %p149 = scmp.eq.s32.totalorder %s22, 1
      %p150 = por %p148, %p149
      %p151 = scmp.ne.s32.totalorder %s140, %s141
      %p152 = scmp.eq.s32.totalorder %s22, 0
      %p153 = por %p151, %p152
      %p154 = scmp.ne.s32.totalorder %s140, %s141
      %p155 = scmp.eq.s32.totalorder %s23, 1
      %p156 = por %p154, %p155
      %p158 = scmp.ne.s32.totalorder %s141, %s157
      %p159 = scmp.eq.s32.totalorder %s23, 0
      %p160 = por %p158, %p159
      %p161 = scmp.le.s32.totalorder 1, %s17
      %p162 = scmp.lt.s32.totalorder %s17, 3
      %p163 = pnand %p161, %p162
      %p164 = pneg %p163
      // Predicated region
      $region9: #{tpu_custom_call.1} parent=5 // pred_check
        _
      $region10: #{tpu_custom_call.1} parent=5 // pred_check_branch
        %166 = sbr.rel (%p163) target = $region12
      $region11: #{tpu_custom_call.1} parent=5 // pred_region
        %s167 = ssub.s32 %s17, 1
        // Predicated region
        $region13: #{tpu_custom_call.1} parent=11 // pred_check
          %p168 = pneg %p64
        $region14: #{tpu_custom_call.1} parent=11 // pred_check_branch
          %170 = sbr.rel (%p168) target = $region16
        $region15: #{tpu_custom_call.1} parent=11 // pred_region
          _
        $region16: #{tpu_custom_call.1} parent=11 // pred_fallthru
          _
        // Predicated region
        $region17: #{tpu_custom_call.1} parent=11 // pred_check
          %p171 = pneg %p85
        $region18: #{tpu_custom_call.1} parent=11 // pred_check_branch
          %173 = sbr.rel (%p171) target = $region20
        $region19: #{tpu_custom_call.1} parent=11 // pred_region
          _
        $region20: #{tpu_custom_call.1} parent=11 // pred_fallthru
          _
        // Predicated region
        $region21: #{tpu_custom_call.1} parent=11 // pred_check
          %p174 = pneg %p106
        $region22: #{tpu_custom_call.1} parent=11 // pred_check_branch
          %176 = sbr.rel (%p174) target = $region24
        $region23: #{tpu_custom_call.1} parent=11 // pred_region
          _
        $region24: #{tpu_custom_call.1} parent=11 // pred_fallthru
          _
        // Predicated region
        $region25: #{tpu_custom_call.1} parent=11 // pred_check
          %p177 = pneg %p127
        $region26: #{tpu_custom_call.1} parent=11 // pred_check_branch
          %179 = sbr.rel (%p177) target = $region28
        $region27: #{tpu_custom_call.1} parent=11 // pred_region
          _
        $region28: #{tpu_custom_call.1} parent=11 // pred_fallthru
          _
      $region12: #{tpu_custom_call.1} parent=5 // pred_fallthru
        _
      %p180 = scmp.lt.s32.totalorder %s17, 2
      // Predicated region
      $region29: #{tpu_custom_call.1} parent=5 // pred_check
        %p181 = pneg %p180
      $region30: #{tpu_custom_call.1} parent=5 // pred_check_branch
        %183 = sbr.rel (%p181) target = $region32
      $region31: #{tpu_custom_call.1} parent=5 // pred_region
        // Predicated region
        $region33: #{tpu_custom_call.1} parent=31 // pred_check
          %p184 = pneg %p37
        $region34: #{tpu_custom_call.1} parent=31 // pred_check_branch
          %186 = sbr.rel (%p184) target = $region36
        $region35: #{tpu_custom_call.1} parent=31 // pred_region
          %s187 = sand.u32 %s27, 1
          %s188 = scalar_lea.sflag [#allocation3], %s187
          %s189 = sand.u32 %s27, 1
          %s190 = smul.addr %s189, 256
          %s191 = scalar_lea.vmem [#allocation2], %s190
          %s192 = smul.u32 4, %s17
          %s194 = ssub.s32 4096, 4096
          %195 = vsyncadd %s188, %s194
          %s196 = smul.addr %s192, 8
          %s197 = smul.addr %s196, 128
          %s198 = scalar_lea.hbm %s0, %s197
          %s199 = sshll.u32 %s191, 4
          %s200 = int_to_ptr.vmem [resolvable:$true] %s199
          %205 = dma.hbm_to_vmem [thread:$0]  %s198, 4096, %s200, %s188, 128, 128, 8
        $region36: #{tpu_custom_call.1} parent=31 // pred_fallthru
          _
      $region32: #{tpu_custom_call.1} parent=5 // pred_fallthru
        _
      %p206 = scmp.le.s32.totalorder 1, %s17
      %p207 = scmp.lt.s32.totalorder %s17, 3
      %p208 = pnand %p206, %p207
      %p209 = pneg %p208
      // Predicated region
      $region37: #{tpu_custom_call.1} parent=5 // pred_check
        _
      $region38: #{tpu_custom_call.1} parent=5 // pred_check_branch
        %211 = sbr.rel (%p208) target = $region40
      $region39: #{tpu_custom_call.1} parent=5 // pred_region
        %s212 = ssub.s32 %s17, 1
        %s213 = sand.u32 %s30, 1
        %s214 = scalar_lea.sflag [#allocation3], %s213
        %s215 = sand.u32 %s30, 1
        %s216 = smul.addr %s215, 256
        %s217 = scalar_lea.vmem [#allocation2], %s216
        // Predicated region
        $region41: #{tpu_custom_call.1} parent=39 // pred_check
          %p218 = pneg %p43
        $region42: #{tpu_custom_call.1} parent=39 // pred_check_branch
          %220 = sbr.rel (%p218) target = $region44
        $region43: #{tpu_custom_call.1} parent=39 // pred_region
          %221 = dma.done %s214, 4096
        $region44: #{tpu_custom_call.1} parent=39 // pred_fallthru
          _
        %s222 = sand.u32 %s30, 1
        %s223 = scalar_lea.sflag [#allocation3], %s222
        %s224 = sand.u32 %s30, 1
        %s225 = smul.addr %s224, 256
        %s226 = scalar_lea.vmem [#allocation2], %s225
        %p227 = pneg %p43
        %p228 = pneg %p40
        %p229 = pneg %p64
        %p230 = pneg %p61
        %p231 = pneg %p85
        %p232 = pneg %p82
        %p233 = pneg %p106
        %p234 = pneg %p103
        %p235 = pneg %p127
        %p236 = pneg %p124
        %p237 = pneg %p153
        %p238 = pneg %p150
        %s239 = sand.u32 %s140, 1
        %s240 = scalar_lea.sflag [#allocation4], %s239
        %s241 = sand.u32 %s140, 1
        %s242 = smul.addr %s241, 256
        %s243 = scalar_lea.vmem [#allocation5], %s242
        %s244 = smul.u32 4, %s22
        %s245 = smul.u32 4, %s22
        %v246 = vld [vmem:[%s217] sm:$0xff]
        %v247 = vld [vmem:[%s217 + $0x8] sm:$0xff]
        %v248 = vld [vmem:[%s217 + $0x10] sm:$0xff]
        %v249 = vld [vmem:[%s217 + $0x18] sm:$0xff]
        %v250 = vld [vmem:[%s217 + $0x20] sm:$0xff]
        %v251 = vld [vmem:[%s217 + $0x28] sm:$0xff]
        %v252 = vld [vmem:[%s217 + $0x30] sm:$0xff]
        %v253 = vld [vmem:[%s217 + $0x38] sm:$0xff]
        %v254 = vld [vmem:[%s217 + $0x40] sm:$0xff]
        %v255 = vld [vmem:[%s217 + $0x48] sm:$0xff]
        %v256 = vld [vmem:[%s217 + $0x50] sm:$0xff]
        %v257 = vld [vmem:[%s217 + $0x58] sm:$0xff]
        %v258 = vld [vmem:[%s217 + $0x60] sm:$0xff]
        %v259 = vld [vmem:[%s217 + $0x68] sm:$0xff]
        %v260 = vld [vmem:[%s217 + $0x70] sm:$0xff]
        %v261 = vld [vmem:[%s217 + $0x78] sm:$0xff]
        %v262 = vld [vmem:[%s217 + $0x80] sm:$0xff]
        %v263 = vld [vmem:[%s217 + $0x88] sm:$0xff]
        %v264 = vld [vmem:[%s217 + $0x90] sm:$0xff]
        %v265 = vld [vmem:[%s217 + $0x98] sm:$0xff]
        %v266 = vld [vmem:[%s217 + $0xa0] sm:$0xff]
        %v267 = vld [vmem:[%s217 + $0xa8] sm:$0xff]
        %v268 = vld [vmem:[%s217 + $0xb0] sm:$0xff]
        %v269 = vld [vmem:[%s217 + $0xb8] sm:$0xff]
        %v270 = vld [vmem:[%s217 + $0xc0] sm:$0xff]
        %v271 = vld [vmem:[%s217 + $0xc8] sm:$0xff]
        %v272 = vld [vmem:[%s217 + $0xd0] sm:$0xff]
        %v273 = vld [vmem:[%s217 + $0xd8] sm:$0xff]
        %v274 = vld [vmem:[%s217 + $0xe0] sm:$0xff]
        %v275 = vld [vmem:[%s217 + $0xe8] sm:$0xff]
        %v276 = vld [vmem:[%s217 + $0xf0] sm:$0xff]
        %v277 = vld [vmem:[%s217 + $0xf8] sm:$0xff]
        %vm278 = vcmask 130048
        %v279 = vsel %vm278, %v246, 0.0
        %280 = vadd.xlane.f32.xlu0 %v279
        %v281 = vpop.xlane.xlu0 %280
        %v282 = vsel %vm278, %v247, 0.0
        %283 = vadd.xlane.f32.xlu0 %v282
        %v284 = vpop.xlane.xlu0 %283
        %v285 = vsel %vm278, %v248, 0.0
        %286 = vadd.xlane.f32.xlu0 %v285
        %v287 = vpop.xlane.xlu0 %286
        %v288 = vsel %vm278, %v249, 0.0
        %289 = vadd.xlane.f32.xlu0 %v288
        %v290 = vpop.xlane.xlu0 %289
        %v291 = vsel %vm278, %v250, 0.0
        %292 = vadd.xlane.f32.xlu0 %v291
        %v293 = vpop.xlane.xlu0 %292
        %v294 = vsel %vm278, %v251, 0.0
        %295 = vadd.xlane.f32.xlu0 %v294
        %v296 = vpop.xlane.xlu0 %295
        %v297 = vsel %vm278, %v252, 0.0
        %298 = vadd.xlane.f32.xlu0 %v297
        %v299 = vpop.xlane.xlu0 %298
        %v300 = vsel %vm278, %v253, 0.0
        %301 = vadd.xlane.f32.xlu0 %v300
        %v302 = vpop.xlane.xlu0 %301
        %v303 = vsel %vm278, %v254, 0.0
        %304 = vadd.xlane.f32.xlu0 %v303
        %v305 = vpop.xlane.xlu0 %304
        %v306 = vsel %vm278, %v255, 0.0
        %307 = vadd.xlane.f32.xlu0 %v306
        %v308 = vpop.xlane.xlu0 %307
        %v309 = vsel %vm278, %v256, 0.0
        %310 = vadd.xlane.f32.xlu0 %v309
        %v311 = vpop.xlane.xlu0 %310
        %v312 = vsel %vm278, %v257, 0.0
        %313 = vadd.xlane.f32.xlu0 %v312
        %v314 = vpop.xlane.xlu0 %313
        %v315 = vsel %vm278, %v258, 0.0
        %316 = vadd.xlane.f32.xlu0 %v315
        %v317 = vpop.xlane.xlu0 %316
        %v318 = vsel %vm278, %v259, 0.0
        %319 = vadd.xlane.f32.xlu0 %v318
        %v320 = vpop.xlane.xlu0 %319
        %v321 = vsel %vm278, %v260, 0.0
        %322 = vadd.xlane.f32.xlu0 %v321
        %v323 = vpop.xlane.xlu0 %322
        %v324 = vsel %vm278, %v261, 0.0
        %325 = vadd.xlane.f32.xlu0 %v324
        %v326 = vpop.xlane.xlu0 %325
        %v327 = vsel %vm278, %v262, 0.0
        %328 = vadd.xlane.f32.xlu0 %v327
        %v329 = vpop.xlane.xlu0 %328
        %v330 = vsel %vm278, %v263, 0.0
        %331 = vadd.xlane.f32.xlu0 %v330
        %v332 = vpop.xlane.xlu0 %331
        %v333 = vsel %vm278, %v264, 0.0
        %334 = vadd.xlane.f32.xlu0 %v333
        %v335 = vpop.xlane.xlu0 %334
        %v336 = vsel %vm278, %v265, 0.0
        %337 = vadd.xlane.f32.xlu0 %v336
        %v338 = vpop.xlane.xlu0 %337
        %v339 = vsel %vm278, %v266, 0.0
        %340 = vadd.xlane.f32.xlu0 %v339
        %v341 = vpop.xlane.xlu0 %340
        %v342 = vsel %vm278, %v267, 0.0
        %343 = vadd.xlane.f32.xlu0 %v342
        %v344 = vpop.xlane.xlu0 %343
        %v345 = vsel %vm278, %v268, 0.0
        %346 = vadd.xlane.f32.xlu0 %v345
        %v347 = vpop.xlane.xlu0 %346
        %v348 = vsel %vm278, %v269, 0.0
        %349 = vadd.xlane.f32.xlu0 %v348
        %v350 = vpop.xlane.xlu0 %349
        %v351 = vsel %vm278, %v270, 0.0
        %352 = vadd.xlane.f32.xlu0 %v351
        %v353 = vpop.xlane.xlu0 %352
        %v354 = vsel %vm278, %v271, 0.0
        %355 = vadd.xlane.f32.xlu0 %v354
        %v356 = vpop.xlane.xlu0 %355
        %v357 = vsel %vm278, %v272, 0.0
        %358 = vadd.xlane.f32.xlu0 %v357
        %v359 = vpop.xlane.xlu0 %358
        %v360 = vsel %vm278, %v273, 0.0
        %361 = vadd.xlane.f32.xlu0 %v360
        %v362 = vpop.xlane.xlu0 %361
        %v363 = vsel %vm278, %v274, 0.0
        %364 = vadd.xlane.f32.xlu0 %v363
        %v365 = vpop.xlane.xlu0 %364
        %v366 = vsel %vm278, %v275, 0.0
        %367 = vadd.xlane.f32.xlu0 %v366
        %v368 = vpop.xlane.xlu0 %367
        %v369 = vsel %vm278, %v276, 0.0
        %370 = vadd.xlane.f32.xlu0 %v369
        %v371 = vpop.xlane.xlu0 %370
        %v372 = vsel %vm278, %v277, 0.0
        %373 = vadd.xlane.f32.xlu0 %v372
        %v374 = vpop.xlane.xlu0 %373
        %v375 = vrot.slane %v281, 4
        %v376 = vadd.f32 %v281, %v375
        %v377 = vrot.slane %v376, 2
        %v378 = vadd.f32 %v376, %v377
        %v379 = vrot.slane %v378, 1
        %v380 = vadd.f32 %v378, %v379
        %v381 = vrot.slane %v284, 4
        %v382 = vadd.f32 %v284, %v381
        %v383 = vrot.slane %v382, 2
        %v384 = vadd.f32 %v382, %v383
        %v385 = vrot.slane %v384, 1
        %v386 = vadd.f32 %v384, %v385
        %v387 = vrot.slane %v287, 4
        %v388 = vadd.f32 %v287, %v387
        %v389 = vrot.slane %v388, 2
        %v390 = vadd.f32 %v388, %v389
        %v391 = vrot.slane %v390, 1
        %v392 = vadd.f32 %v390, %v391
        %v393 = vrot.slane %v290, 4
        %v394 = vadd.f32 %v290, %v393
        %v395 = vrot.slane %v394, 2
        %v396 = vadd.f32 %v394, %v395
        %v397 = vrot.slane %v396, 1
        %v398 = vadd.f32 %v396, %v397
        %v399 = vrot.slane %v293, 4
        %v400 = vadd.f32 %v293, %v399
        %v401 = vrot.slane %v400, 2
        %v402 = vadd.f32 %v400, %v401
        %v403 = vrot.slane %v402, 1
        %v404 = vadd.f32 %v402, %v403
        %v405 = vrot.slane %v296, 4
        %v406 = vadd.f32 %v296, %v405
        %v407 = vrot.slane %v406, 2
        %v408 = vadd.f32 %v406, %v407
        %v409 = vrot.slane %v408, 1
        %v410 = vadd.f32 %v408, %v409
        %v411 = vrot.slane %v299, 4
        %v412 = vadd.f32 %v299, %v411
        %v413 = vrot.slane %v412, 2
        %v414 = vadd.f32 %v412, %v413
        %v415 = vrot.slane %v414, 1
        %v416 = vadd.f32 %v414, %v415
        %v417 = vrot.slane %v302, 4
        %v418 = vadd.f32 %v302, %v417
        %v419 = vrot.slane %v418, 2
        %v420 = vadd.f32 %v418, %v419
        %v421 = vrot.slane %v420, 1
        %v422 = vadd.f32 %v420, %v421
        %v423 = vrot.slane %v305, 4
        %v424 = vadd.f32 %v305, %v423
        %v425 = vrot.slane %v424, 2
        %v426 = vadd.f32 %v424, %v425
        %v427 = vrot.slane %v426, 1
        %v428 = vadd.f32 %v426, %v427
        %v429 = vrot.slane %v308, 4
        %v430 = vadd.f32 %v308, %v429
        %v431 = vrot.slane %v430, 2
        %v432 = vadd.f32 %v430, %v431
        %v433 = vrot.slane %v432, 1
        %v434 = vadd.f32 %v432, %v433
        %v435 = vrot.slane %v311, 4
        %v436 = vadd.f32 %v311, %v435
        %v437 = vrot.slane %v436, 2
        %v438 = vadd.f32 %v436, %v437
        %v439 = vrot.slane %v438, 1
        %v440 = vadd.f32 %v438, %v439
        %v441 = vrot.slane %v314, 4
        %v442 = vadd.f32 %v314, %v441
        %v443 = vrot.slane %v442, 2
        %v444 = vadd.f32 %v442, %v443
        %v445 = vrot.slane %v444, 1
        %v446 = vadd.f32 %v444, %v445
        %v447 = vrot.slane %v317, 4
        %v448 = vadd.f32 %v317, %v447
        %v449 = vrot.slane %v448, 2
        %v450 = vadd.f32 %v448, %v449
        %v451 = vrot.slane %v450, 1
        %v452 = vadd.f32 %v450, %v451
        %v453 = vrot.slane %v320, 4
        %v454 = vadd.f32 %v320, %v453
        %v455 = vrot.slane %v454, 2
        %v456 = vadd.f32 %v454, %v455
        %v457 = vrot.slane %v456, 1
        %v458 = vadd.f32 %v456, %v457
        %v459 = vrot.slane %v323, 4
        %v460 = vadd.f32 %v323, %v459
        %v461 = vrot.slane %v460, 2
        %v462 = vadd.f32 %v460, %v461
        %v463 = vrot.slane %v462, 1
        %v464 = vadd.f32 %v462, %v463
        %v465 = vrot.slane %v326, 4
        %v466 = vadd.f32 %v326, %v465
        %v467 = vrot.slane %v466, 2
        %v468 = vadd.f32 %v466, %v467
        %v469 = vrot.slane %v468, 1
        %v470 = vadd.f32 %v468, %v469
        %v471 = vrot.slane %v329, 4
        %v472 = vadd.f32 %v329, %v471
        %v473 = vrot.slane %v472, 2
        %v474 = vadd.f32 %v472, %v473
        %v475 = vrot.slane %v474, 1
        %v476 = vadd.f32 %v474, %v475
        %v477 = vrot.slane %v332, 4
        %v478 = vadd.f32 %v332, %v477
        %v479 = vrot.slane %v478, 2
        %v480 = vadd.f32 %v478, %v479
        %v481 = vrot.slane %v480, 1
        %v482 = vadd.f32 %v480, %v481
        %v483 = vrot.slane %v335, 4
        %v484 = vadd.f32 %v335, %v483
        %v485 = vrot.slane %v484, 2
        %v486 = vadd.f32 %v484, %v485
        %v487 = vrot.slane %v486, 1
        %v488 = vadd.f32 %v486, %v487
        %v489 = vrot.slane %v338, 4
        %v490 = vadd.f32 %v338, %v489
        %v491 = vrot.slane %v490, 2
        %v492 = vadd.f32 %v490, %v491
        %v493 = vrot.slane %v492, 1
        %v494 = vadd.f32 %v492, %v493
        %v495 = vrot.slane %v341, 4
        %v496 = vadd.f32 %v341, %v495
        %v497 = vrot.slane %v496, 2
        %v498 = vadd.f32 %v496, %v497
        %v499 = vrot.slane %v498, 1
        %v500 = vadd.f32 %v498, %v499
        %v501 = vrot.slane %v344, 4
        %v502 = vadd.f32 %v344, %v501
        %v503 = vrot.slane %v502, 2
        %v504 = vadd.f32 %v502, %v503
        %v505 = vrot.slane %v504, 1
        %v506 = vadd.f32 %v504, %v505
        %v507 = vrot.slane %v347, 4
        %v508 = vadd.f32 %v347, %v507
        %v509 = vrot.slane %v508, 2
        %v510 = vadd.f32 %v508, %v509
        %v511 = vrot.slane %v510, 1
        %v512 = vadd.f32 %v510, %v511
        %v513 = vrot.slane %v350, 4
        %v514 = vadd.f32 %v350, %v513
        %v515 = vrot.slane %v514, 2
        %v516 = vadd.f32 %v514, %v515
        %v517 = vrot.slane %v516, 1
        %v518 = vadd.f32 %v516, %v517
        %v519 = vrot.slane %v353, 4
        %v520 = vadd.f32 %v353, %v519
        %v521 = vrot.slane %v520, 2
        %v522 = vadd.f32 %v520, %v521
        %v523 = vrot.slane %v522, 1
        %v524 = vadd.f32 %v522, %v523
        %v525 = vrot.slane %v356, 4
        %v526 = vadd.f32 %v356, %v525
        %v527 = vrot.slane %v526, 2
        %v528 = vadd.f32 %v526, %v527
        %v529 = vrot.slane %v528, 1
        %v530 = vadd.f32 %v528, %v529
        %v531 = vrot.slane %v359, 4
        %v532 = vadd.f32 %v359, %v531
        %v533 = vrot.slane %v532, 2
        %v534 = vadd.f32 %v532, %v533
        %v535 = vrot.slane %v534, 1
        %v536 = vadd.f32 %v534, %v535
        %v537 = vrot.slane %v362, 4
        %v538 = vadd.f32 %v362, %v537
        %v539 = vrot.slane %v538, 2
        %v540 = vadd.f32 %v538, %v539
        %v541 = vrot.slane %v540, 1
        %v542 = vadd.f32 %v540, %v541
        %v543 = vrot.slane %v365, 4
        %v544 = vadd.f32 %v365, %v543
        %v545 = vrot.slane %v544, 2
        %v546 = vadd.f32 %v544, %v545
        %v547 = vrot.slane %v546, 1
        %v548 = vadd.f32 %v546, %v547
        %v549 = vrot.slane %v368, 4
        %v550 = vadd.f32 %v368, %v549
        %v551 = vrot.slane %v550, 2
        %v552 = vadd.f32 %v550, %v551
        %v553 = vrot.slane %v552, 1
        %v554 = vadd.f32 %v552, %v553
        %v555 = vrot.slane %v371, 4
        %v556 = vadd.f32 %v371, %v555
        %v557 = vrot.slane %v556, 2
        %v558 = vadd.f32 %v556, %v557
        %v559 = vrot.slane %v558, 1
        %v560 = vadd.f32 %v558, %v559
        %v561 = vrot.slane %v374, 4
        %v562 = vadd.f32 %v374, %v561
        %v563 = vrot.slane %v562, 2
        %v564 = vadd.f32 %v562, %v563
        %v565 = vrot.slane %v564, 1
        %v566 = vadd.f32 %v564, %v565
        %v567 = vadd.f32 %v380, %v386
        %v568 = vadd.f32 %v567, %v392
        %v569 = vadd.f32 %v568, %v398
        %v570 = vadd.f32 %v569, %v404
        %v571 = vadd.f32 %v570, %v410
        %v572 = vadd.f32 %v571, %v416
        %v573 = vadd.f32 %v572, %v422
        %v574 = vadd.f32 %v428, %v434
        %v575 = vadd.f32 %v574, %v440
        %v576 = vadd.f32 %v575, %v446
        %v577 = vadd.f32 %v576, %v452
        %v578 = vadd.f32 %v577, %v458
        %v579 = vadd.f32 %v578, %v464
        %v580 = vadd.f32 %v579, %v470
        %v581 = vadd.f32 %v476, %v482
        %v582 = vadd.f32 %v581, %v488
        %v583 = vadd.f32 %v582, %v494
        %v584 = vadd.f32 %v583, %v500
        %v585 = vadd.f32 %v584, %v506
        %v586 = vadd.f32 %v585, %v512
        %v587 = vadd.f32 %v586, %v518
        %v588 = vadd.f32 %v524, %v530
        %v589 = vadd.f32 %v588, %v536
        %v590 = vadd.f32 %v589, %v542
        %v591 = vadd.f32 %v590, %v548
        %v592 = vadd.f32 %v591, %v554
        %v593 = vadd.f32 %v592, %v560
        %v594 = vadd.f32 %v593, %v566
        %v595 = vrcp.pop 1024.0
        %v596 = vmul.f32 %v573, %v595
        %v597 = vmul.f32 %v580, %v595
        %v598 = vmul.f32 %v587, %v595
        %v599 = vmul.f32 %v594, %v595
        %v600 = vsub.f32 %v246, %v596
        %v601 = vsub.f32 %v247, %v596
        %v602 = vsub.f32 %v248, %v596
        %v603 = vsub.f32 %v249, %v596
        %v604 = vsub.f32 %v250, %v596
        %v605 = vsub.f32 %v251, %v596
        %v606 = vsub.f32 %v252, %v596
        %v607 = vsub.f32 %v253, %v596
        %v608 = vsub.f32 %v254, %v597
        %v609 = vsub.f32 %v255, %v597
        %v610 = vsub.f32 %v256, %v597
        %v611 = vsub.f32 %v257, %v597
        %v612 = vsub.f32 %v258, %v597
        %v613 = vsub.f32 %v259, %v597
        %v614 = vsub.f32 %v260, %v597
        %v615 = vsub.f32 %v261, %v597
        %v616 = vsub.f32 %v262, %v598
        %v617 = vsub.f32 %v263, %v598
        %v618 = vsub.f32 %v264, %v598
        %v619 = vsub.f32 %v265, %v598
        %v620 = vsub.f32 %v266, %v598
        %v621 = vsub.f32 %v267, %v598
        %v622 = vsub.f32 %v268, %v598
        %v623 = vsub.f32 %v269, %v598
        %v624 = vsub.f32 %v270, %v599
        %v625 = vsub.f32 %v271, %v599
        %v626 = vsub.f32 %v272, %v599
        %v627 = vsub.f32 %v273, %v599
        %v628 = vsub.f32 %v274, %v599
        %v629 = vsub.f32 %v275, %v599
        %v630 = vsub.f32 %v276, %v599
        %v631 = vsub.f32 %v277, %v599
        %v632 = vmul.f32 %v600, %v600
        %v633 = vmul.f32 %v601, %v601
        %v634 = vmul.f32 %v602, %v602
        %v635 = vmul.f32 %v603, %v603
        %v636 = vmul.f32 %v604, %v604
        %v637 = vmul.f32 %v605, %v605
        %v638 = vmul.f32 %v606, %v606
        %v639 = vmul.f32 %v607, %v607
        %v640 = vmul.f32 %v608, %v608
        %v641 = vmul.f32 %v609, %v609
        %v642 = vmul.f32 %v610, %v610
        %v643 = vmul.f32 %v611, %v611
        %v644 = vmul.f32 %v612, %v612
        %v645 = vmul.f32 %v613, %v613
        %v646 = vmul.f32 %v614, %v614
        %v647 = vmul.f32 %v615, %v615
        %v648 = vmul.f32 %v616, %v616
        %v649 = vmul.f32 %v617, %v617
        %v650 = vmul.f32 %v618, %v618
        %v651 = vmul.f32 %v619, %v619
        %v652 = vmul.f32 %v620, %v620
        %v653 = vmul.f32 %v621, %v621
        %v654 = vmul.f32 %v622, %v622
        %v655 = vmul.f32 %v623, %v623
        %v656 = vmul.f32 %v624, %v624
        %v657 = vmul.f32 %v625, %v625
        %v658 = vmul.f32 %v626, %v626
        %v659 = vmul.f32 %v627, %v627
        %v660 = vmul.f32 %v628, %v628
        %v661 = vmul.f32 %v629, %v629
        %v662 = vmul.f32 %v630, %v630
        %v663 = vmul.f32 %v631, %v631
        %v664 = vsel %vm278, %v632, 0.0
        %665 = vadd.xlane.f32.xlu0 %v664
        %v666 = vpop.xlane.xlu0 %665
        %v667 = vsel %vm278, %v633, 0.0
        %668 = vadd.xlane.f32.xlu0 %v667
        %v669 = vpop.xlane.xlu0 %668
        %v670 = vsel %vm278, %v634, 0.0
        %671 = vadd.xlane.f32.xlu0 %v670
        %v672 = vpop.xlane.xlu0 %671
        %v673 = vsel %vm278, %v635, 0.0
        %674 = vadd.xlane.f32.xlu0 %v673
        %v675 = vpop.xlane.xlu0 %674
        %v676 = vsel %vm278, %v636, 0.0
        %677 = vadd.xlane.f32.xlu0 %v676
        %v678 = vpop.xlane.xlu0 %677
        %v679 = vsel %vm278, %v637, 0.0
        %680 = vadd.xlane.f32.xlu0 %v679
        %v681 = vpop.xlane.xlu0 %680
        %v682 = vsel %vm278, %v638, 0.0
        %683 = vadd.xlane.f32.xlu0 %v682
        %v684 = vpop.xlane.xlu0 %683
        %v685 = vsel %vm278, %v639, 0.0
        %686 = vadd.xlane.f32.xlu0 %v685
        %v687 = vpop.xlane.xlu0 %686
        %v688 = vsel %vm278, %v640, 0.0
        %689 = vadd.xlane.f32.xlu0 %v688
        %v690 = vpop.xlane.xlu0 %689
        %v691 = vsel %vm278, %v641, 0.0
        %692 = vadd.xlane.f32.xlu0 %v691
        %v693 = vpop.xlane.xlu0 %692
        %v694 = vsel %vm278, %v642, 0.0
        %695 = vadd.xlane.f32.xlu0 %v694
        %v696 = vpop.xlane.xlu0 %695
        %v697 = vsel %vm278, %v643, 0.0
        %698 = vadd.xlane.f32.xlu0 %v697
        %v699 = vpop.xlane.xlu0 %698
        %v700 = vsel %vm278, %v644, 0.0
        %701 = vadd.xlane.f32.xlu0 %v700
        %v702 = vpop.xlane.xlu0 %701
        %v703 = vsel %vm278, %v645, 0.0
        %704 = vadd.xlane.f32.xlu0 %v703
        %v705 = vpop.xlane.xlu0 %704
        %v706 = vsel %vm278, %v646, 0.0
        %707 = vadd.xlane.f32.xlu0 %v706
        %v708 = vpop.xlane.xlu0 %707
        %v709 = vsel %vm278, %v647, 0.0
        %710 = vadd.xlane.f32.xlu0 %v709
        %v711 = vpop.xlane.xlu0 %710
        %v712 = vsel %vm278, %v648, 0.0
        %713 = vadd.xlane.f32.xlu0 %v712
        %v714 = vpop.xlane.xlu0 %713
        %v715 = vsel %vm278, %v649, 0.0
        %716 = vadd.xlane.f32.xlu0 %v715
        %v717 = vpop.xlane.xlu0 %716
        %v718 = vsel %vm278, %v650, 0.0
        %719 = vadd.xlane.f32.xlu0 %v718
        %v720 = vpop.xlane.xlu0 %719
        %v721 = vsel %vm278, %v651, 0.0
        %722 = vadd.xlane.f32.xlu0 %v721
        %v723 = vpop.xlane.xlu0 %722
        %v724 = vsel %vm278, %v652, 0.0
        %725 = vadd.xlane.f32.xlu0 %v724
        %v726 = vpop.xlane.xlu0 %725
        %v727 = vsel %vm278, %v653, 0.0
        %728 = vadd.xlane.f32.xlu0 %v727
        %v729 = vpop.xlane.xlu0 %728
        %v730 = vsel %vm278, %v654, 0.0
        %731 = vadd.xlane.f32.xlu0 %v730
        %v732 = vpop.xlane.xlu0 %731
        %v733 = vsel %vm278, %v655, 0.0
        %734 = vadd.xlane.f32.xlu0 %v733
        %v735 = vpop.xlane.xlu0 %734
        %v736 = vsel %vm278, %v656, 0.0
        %737 = vadd.xlane.f32.xlu0 %v736
        %v738 = vpop.xlane.xlu0 %737
        %v739 = vsel %vm278, %v657, 0.0
        %740 = vadd.xlane.f32.xlu0 %v739
        %v741 = vpop.xlane.xlu0 %740
        %v742 = vsel %vm278, %v658, 0.0
        %743 = vadd.xlane.f32.xlu0 %v742
        %v744 = vpop.xlane.xlu0 %743
        %v745 = vsel %vm278, %v659, 0.0
        %746 = vadd.xlane.f32.xlu0 %v745
        %v747 = vpop.xlane.xlu0 %746
        %v748 = vsel %vm278, %v660, 0.0
        %749 = vadd.xlane.f32.xlu0 %v748
        %v750 = vpop.xlane.xlu0 %749
        %v751 = vsel %vm278, %v661, 0.0
        %752 = vadd.xlane.f32.xlu0 %v751
        %v753 = vpop.xlane.xlu0 %752
        %v754 = vsel %vm278, %v662, 0.0
        %755 = vadd.xlane.f32.xlu0 %v754
        %v756 = vpop.xlane.xlu0 %755
        %v757 = vsel %vm278, %v663, 0.0
        %758 = vadd.xlane.f32.xlu0 %v757
        %v759 = vpop.xlane.xlu0 %758
        %v760 = vrot.slane %v666, 4
        %v761 = vadd.f32 %v666, %v760
        %v762 = vrot.slane %v761, 2
        %v763 = vadd.f32 %v761, %v762
        %v764 = vrot.slane %v763, 1
        %v765 = vadd.f32 %v763, %v764
        %v766 = vrot.slane %v669, 4
        %v767 = vadd.f32 %v669, %v766
        %v768 = vrot.slane %v767, 2
        %v769 = vadd.f32 %v767, %v768
        %v770 = vrot.slane %v769, 1
        %v771 = vadd.f32 %v769, %v770
        %v772 = vrot.slane %v672, 4
        %v773 = vadd.f32 %v672, %v772
        %v774 = vrot.slane %v773, 2
        %v775 = vadd.f32 %v773, %v774
        %v776 = vrot.slane %v775, 1
        %v777 = vadd.f32 %v775, %v776
        %v778 = vrot.slane %v675, 4
        %v779 = vadd.f32 %v675, %v778
        %v780 = vrot.slane %v779, 2
        %v781 = vadd.f32 %v779, %v780
        %v782 = vrot.slane %v781, 1
        %v783 = vadd.f32 %v781, %v782
        %v784 = vrot.slane %v678, 4
        %v785 = vadd.f32 %v678, %v784
        %v786 = vrot.slane %v785, 2
        %v787 = vadd.f32 %v785, %v786
        %v788 = vrot.slane %v787, 1
        %v789 = vadd.f32 %v787, %v788
        %v790 = vrot.slane %v681, 4
        %v791 = vadd.f32 %v681, %v790
        %v792 = vrot.slane %v791, 2
        %v793 = vadd.f32 %v791, %v792
        %v794 = vrot.slane %v793, 1
        %v795 = vadd.f32 %v793, %v794
        %v796 = vrot.slane %v684, 4
        %v797 = vadd.f32 %v684, %v796
        %v798 = vrot.slane %v797, 2
        %v799 = vadd.f32 %v797, %v798
        %v800 = vrot.slane %v799, 1
        %v801 = vadd.f32 %v799, %v800
        %v802 = vrot.slane %v687, 4
        %v803 = vadd.f32 %v687, %v802
        %v804 = vrot.slane %v803, 2
        %v805 = vadd.f32 %v803, %v804
        %v806 = vrot.slane %v805, 1
        %v807 = vadd.f32 %v805, %v806
        %v808 = vrot.slane %v690, 4
        %v809 = vadd.f32 %v690, %v808
        %v810 = vrot.slane %v809, 2
        %v811 = vadd.f32 %v809, %v810
        %v812 = vrot.slane %v811, 1
        %v813 = vadd.f32 %v811, %v812
        %v814 = vrot.slane %v693, 4
        %v815 = vadd.f32 %v693, %v814
        %v816 = vrot.slane %v815, 2
        %v817 = vadd.f32 %v815, %v816
        %v818 = vrot.slane %v817, 1
        %v819 = vadd.f32 %v817, %v818
        %v820 = vrot.slane %v696, 4
        %v821 = vadd.f32 %v696, %v820
        %v822 = vrot.slane %v821, 2
        %v823 = vadd.f32 %v821, %v822
        %v824 = vrot.slane %v823, 1
        %v825 = vadd.f32 %v823, %v824
        %v826 = vrot.slane %v699, 4
        %v827 = vadd.f32 %v699, %v826
        %v828 = vrot.slane %v827, 2
        %v829 = vadd.f32 %v827, %v828
        %v830 = vrot.slane %v829, 1
        %v831 = vadd.f32 %v829, %v830
        %v832 = vrot.slane %v702, 4
        %v833 = vadd.f32 %v702, %v832
        %v834 = vrot.slane %v833, 2
        %v835 = vadd.f32 %v833, %v834
        %v836 = vrot.slane %v835, 1
        %v837 = vadd.f32 %v835, %v836
        %v838 = vrot.slane %v705, 4
        %v839 = vadd.f32 %v705, %v838
        %v840 = vrot.slane %v839, 2
        %v841 = vadd.f32 %v839, %v840
        %v842 = vrot.slane %v841, 1
        %v843 = vadd.f32 %v841, %v842
        %v844 = vrot.slane %v708, 4
        %v845 = vadd.f32 %v708, %v844
        %v846 = vrot.slane %v845, 2
        %v847 = vadd.f32 %v845, %v846
        %v848 = vrot.slane %v847, 1
        %v849 = vadd.f32 %v847, %v848
        %v850 = vrot.slane %v711, 4
        %v851 = vadd.f32 %v711, %v850
        %v852 = vrot.slane %v851, 2
        %v853 = vadd.f32 %v851, %v852
        %v854 = vrot.slane %v853, 1
        %v855 = vadd.f32 %v853, %v854
        %v856 = vrot.slane %v714, 4
        %v857 = vadd.f32 %v714, %v856
        %v858 = vrot.slane %v857, 2
        %v859 = vadd.f32 %v857, %v858
        %v860 = vrot.slane %v859, 1
        %v861 = vadd.f32 %v859, %v860
        %v862 = vrot.slane %v717, 4
        %v863 = vadd.f32 %v717, %v862
        %v864 = vrot.slane %v863, 2
        %v865 = vadd.f32 %v863, %v864
        %v866 = vrot.slane %v865, 1
        %v867 = vadd.f32 %v865, %v866
        %v868 = vrot.slane %v720, 4
        %v869 = vadd.f32 %v720, %v868
        %v870 = vrot.slane %v869, 2
        %v871 = vadd.f32 %v869, %v870
        %v872 = vrot.slane %v871, 1
        %v873 = vadd.f32 %v871, %v872
        %v874 = vrot.slane %v723, 4
        %v875 = vadd.f32 %v723, %v874
        %v876 = vrot.slane %v875, 2
        %v877 = vadd.f32 %v875, %v876
        %v878 = vrot.slane %v877, 1
        %v879 = vadd.f32 %v877, %v878
        %v880 = vrot.slane %v726, 4
        %v881 = vadd.f32 %v726, %v880
        %v882 = vrot.slane %v881, 2
        %v883 = vadd.f32 %v881, %v882
        %v884 = vrot.slane %v883, 1
        %v885 = vadd.f32 %v883, %v884
        %v886 = vrot.slane %v729, 4
        %v887 = vadd.f32 %v729, %v886
        %v888 = vrot.slane %v887, 2
        %v889 = vadd.f32 %v887, %v888
        %v890 = vrot.slane %v889, 1
        %v891 = vadd.f32 %v889, %v890
        %v892 = vrot.slane %v732, 4
        %v893 = vadd.f32 %v732, %v892
        %v894 = vrot.slane %v893, 2
        %v895 = vadd.f32 %v893, %v894
        %v896 = vrot.slane %v895, 1
        %v897 = vadd.f32 %v895, %v896
        %v898 = vrot.slane %v735, 4
        %v899 = vadd.f32 %v735, %v898
        %v900 = vrot.slane %v899, 2
        %v901 = vadd.f32 %v899, %v900
        %v902 = vrot.slane %v901, 1
        %v903 = vadd.f32 %v901, %v902
        %v904 = vrot.slane %v738, 4
        %v905 = vadd.f32 %v738, %v904
        %v906 = vrot.slane %v905, 2
        %v907 = vadd.f32 %v905, %v906
        %v908 = vrot.slane %v907, 1
        %v909 = vadd.f32 %v907, %v908
        %v910 = vrot.slane %v741, 4
        %v911 = vadd.f32 %v741, %v910
        %v912 = vrot.slane %v911, 2
        %v913 = vadd.f32 %v911, %v912
        %v914 = vrot.slane %v913, 1
        %v915 = vadd.f32 %v913, %v914
        %v916 = vrot.slane %v744, 4
        %v917 = vadd.f32 %v744, %v916
        %v918 = vrot.slane %v917, 2
        %v919 = vadd.f32 %v917, %v918
        %v920 = vrot.slane %v919, 1
        %v921 = vadd.f32 %v919, %v920
        %v922 = vrot.slane %v747, 4
        %v923 = vadd.f32 %v747, %v922
        %v924 = vrot.slane %v923, 2
        %v925 = vadd.f32 %v923, %v924
        %v926 = vrot.slane %v925, 1
        %v927 = vadd.f32 %v925, %v926
        %v928 = vrot.slane %v750, 4
        %v929 = vadd.f32 %v750, %v928
        %v930 = vrot.slane %v929, 2
        %v931 = vadd.f32 %v929, %v930
        %v932 = vrot.slane %v931, 1
        %v933 = vadd.f32 %v931, %v932
        %v934 = vrot.slane %v753, 4
        %v935 = vadd.f32 %v753, %v934
        %v936 = vrot.slane %v935, 2
        %v937 = vadd.f32 %v935, %v936
        %v938 = vrot.slane %v937, 1
        %v939 = vadd.f32 %v937, %v938
        %v940 = vrot.slane %v756, 4
        %v941 = vadd.f32 %v756, %v940
        %v942 = vrot.slane %v941, 2
        %v943 = vadd.f32 %v941, %v942
        %v944 = vrot.slane %v943, 1
        %v945 = vadd.f32 %v943, %v944
        %v946 = vrot.slane %v759, 4
        %v947 = vadd.f32 %v759, %v946
        %v948 = vrot.slane %v947, 2
        %v949 = vadd.f32 %v947, %v948
        %v950 = vrot.slane %v949, 1
        %v951 = vadd.f32 %v949, %v950
        %v952 = vadd.f32 %v765, %v771
        %v953 = vadd.f32 %v952, %v777
        %v954 = vadd.f32 %v953, %v783
        %v955 = vadd.f32 %v954, %v789
        %v956 = vadd.f32 %v955, %v795
        %v957 = vadd.f32 %v956, %v801
        %v958 = vadd.f32 %v957, %v807
        %v959 = vadd.f32 %v813, %v819
        %v960 = vadd.f32 %v959, %v825
        %v961 = vadd.f32 %v960, %v831
        %v962 = vadd.f32 %v961, %v837
        %v963 = vadd.f32 %v962, %v843
        %v964 = vadd.f32 %v963, %v849
        %v965 = vadd.f32 %v964, %v855
        %v966 = vadd.f32 %v861, %v867
        %v967 = vadd.f32 %v966, %v873
        %v968 = vadd.f32 %v967, %v879
        %v969 = vadd.f32 %v968, %v885
        %v970 = vadd.f32 %v969, %v891
        %v971 = vadd.f32 %v970, %v897
        %v972 = vadd.f32 %v971, %v903
        %v973 = vadd.f32 %v909, %v915
        %v974 = vadd.f32 %v973, %v921
        %v975 = vadd.f32 %v974, %v927
        %v976 = vadd.f32 %v975, %v933
        %v977 = vadd.f32 %v976, %v939
        %v978 = vadd.f32 %v977, %v945
        %v979 = vadd.f32 %v978, %v951
        %v980 = vmul.f32 %v958, %v595
        %v981 = vmul.f32 %v965, %v595
        %v982 = vmul.f32 %v972, %v595
        %v983 = vmul.f32 %v979, %v595
        %v984 = vadd.f32 %v980, 1e-06
        %v985 = vadd.f32 %v981, 1e-06
        %v986 = vadd.f32 %v982, 1e-06
        %v987 = vadd.f32 %v983, 1e-06
        %v988 = vrsqrt.pop %v984
        %v989 = vrsqrt.pop %v985
        %v990 = vrsqrt.pop %v986
        %v991 = vrsqrt.pop %v987
        %v992 = vmul.f32 %v600, %v988
        %v993 = vmul.f32 %v601, %v988
        %v994 = vmul.f32 %v602, %v988
        %v995 = vmul.f32 %v603, %v988
        %v996 = vmul.f32 %v604, %v988
        %v997 = vmul.f32 %v605, %v988
        %v998 = vmul.f32 %v606, %v988
        %v999 = vmul.f32 %v607, %v988
        %v1000 = vmul.f32 %v608, %v989
        %v1001 = vmul.f32 %v609, %v989
        %v1002 = vmul.f32 %v610, %v989
        %v1003 = vmul.f32 %v611, %v989
        %v1004 = vmul.f32 %v612, %v989
        %v1005 = vmul.f32 %v613, %v989
        %v1006 = vmul.f32 %v614, %v989
        %v1007 = vmul.f32 %v615, %v989
        %v1008 = vmul.f32 %v616, %v990
        %v1009 = vmul.f32 %v617, %v990
        %v1010 = vmul.f32 %v618, %v990
        %v1011 = vmul.f32 %v619, %v990
        %v1012 = vmul.f32 %v620, %v990
        %v1013 = vmul.f32 %v621, %v990
        %v1014 = vmul.f32 %v622, %v990
        %v1015 = vmul.f32 %v623, %v990
        %v1016 = vmul.f32 %v624, %v991
        %v1017 = vmul.f32 %v625, %v991
        %v1018 = vmul.f32 %v626, %v991
        %v1019 = vmul.f32 %v627, %v991
        %v1020 = vmul.f32 %v628, %v991
        %v1021 = vmul.f32 %v629, %v991
        %v1022 = vmul.f32 %v630, %v991
        %v1023 = vmul.f32 %v631, %v991
        %v1024 = vld [vmem:[%s1] sm:$0x1]
        %v1026 = vlaneseq
        %v1027 = vshrl.u32 %v1026, 7
        %v1028 = vsub.s32 0, %v1027
        %v1029 = vrot.slane %v1024, %v1028
        %v1031 = vmul.f32 %v992, %v1029
        %v1032 = vmul.f32 %v993, %v1029
        %v1033 = vmul.f32 %v994, %v1029
        %v1034 = vmul.f32 %v995, %v1029
        %v1035 = vmul.f32 %v996, %v1029
        %v1036 = vmul.f32 %v997, %v1029
        %v1037 = vmul.f32 %v998, %v1029
        %v1038 = vmul.f32 %v999, %v1029
        %v1039 = vmul.f32 %v1000, %v1029
        %v1040 = vmul.f32 %v1001, %v1029
        %v1041 = vmul.f32 %v1002, %v1029
        %v1042 = vmul.f32 %v1003, %v1029
        %v1043 = vmul.f32 %v1004, %v1029
        %v1044 = vmul.f32 %v1005, %v1029
        %v1045 = vmul.f32 %v1006, %v1029
        %v1046 = vmul.f32 %v1007, %v1029
        %v1047 = vmul.f32 %v1008, %v1029
        %v1048 = vmul.f32 %v1009, %v1029
        %v1049 = vmul.f32 %v1010, %v1029
        %v1050 = vmul.f32 %v1011, %v1029
        %v1051 = vmul.f32 %v1012, %v1029
        %v1052 = vmul.f32 %v1013, %v1029
        %v1053 = vmul.f32 %v1014, %v1029
        %v1054 = vmul.f32 %v1015, %v1029
        %v1055 = vmul.f32 %v1016, %v1029
        %v1056 = vmul.f32 %v1017, %v1029
        %v1057 = vmul.f32 %v1018, %v1029
        %v1058 = vmul.f32 %v1019, %v1029
        %v1059 = vmul.f32 %v1020, %v1029
        %v1060 = vmul.f32 %v1021, %v1029
        %v1061 = vmul.f32 %v1022, %v1029
        %v1062 = vmul.f32 %v1023, %v1029
        %v1063 = vld [vmem:[%s2] sm:$0x1]
        %v1065 = vlaneseq
        %v1066 = vshrl.u32 %v1065, 7
        %v1067 = vsub.s32 0, %v1066
        %v1068 = vrot.slane %v1063, %v1067
        %v1070 = vadd.f32 %v1031, %v1068
        %v1071 = vadd.f32 %v1032, %v1068
        %v1072 = vadd.f32 %v1033, %v1068
        %v1073 = vadd.f32 %v1034, %v1068
        %v1074 = vadd.f32 %v1035, %v1068
        %v1075 = vadd.f32 %v1036, %v1068
        %v1076 = vadd.f32 %v1037, %v1068
        %v1077 = vadd.f32 %v1038, %v1068
        %v1078 = vadd.f32 %v1039, %v1068
        %v1079 = vadd.f32 %v1040, %v1068
        %v1080 = vadd.f32 %v1041, %v1068
        %v1081 = vadd.f32 %v1042, %v1068
        %v1082 = vadd.f32 %v1043, %v1068
        %v1083 = vadd.f32 %v1044, %v1068
        %v1084 = vadd.f32 %v1045, %v1068
        %v1085 = vadd.f32 %v1046, %v1068
        %v1086 = vadd.f32 %v1047, %v1068
        %v1087 = vadd.f32 %v1048, %v1068
        %v1088 = vadd.f32 %v1049, %v1068
        %v1089 = vadd.f32 %v1050, %v1068
        %v1090 = vadd.f32 %v1051, %v1068
        %v1091 = vadd.f32 %v1052, %v1068
        %v1092 = vadd.f32 %v1053, %v1068
        %v1093 = vadd.f32 %v1054, %v1068
        %v1094 = vadd.f32 %v1055, %v1068
        %v1095 = vadd.f32 %v1056, %v1068
        %v1096 = vadd.f32 %v1057, %v1068
        %v1097 = vadd.f32 %v1058, %v1068
        %v1098 = vadd.f32 %v1059, %v1068
        %v1099 = vadd.f32 %v1060, %v1068
        %v1100 = vadd.f32 %v1061, %v1068
        %v1101 = vadd.f32 %v1062, %v1068
        %v1102 = vxor.u32 %v1070, 2147483648
        %v1103 = vxor.u32 %v1071, 2147483648
        %v1104 = vxor.u32 %v1072, 2147483648
        %v1105 = vxor.u32 %v1073, 2147483648
        %v1106 = vxor.u32 %v1074, 2147483648
        %v1107 = vxor.u32 %v1075, 2147483648
        %v1108 = vxor.u32 %v1076, 2147483648
        %v1109 = vxor.u32 %v1077, 2147483648
        %v1110 = vxor.u32 %v1078, 2147483648
        %v1111 = vxor.u32 %v1079, 2147483648
        %v1112 = vxor.u32 %v1080, 2147483648
        %v1113 = vxor.u32 %v1081, 2147483648
        %v1114 = vxor.u32 %v1082, 2147483648
        %v1115 = vxor.u32 %v1083, 2147483648
        %v1116 = vxor.u32 %v1084, 2147483648
        %v1117 = vxor.u32 %v1085, 2147483648
        %v1118 = vxor.u32 %v1086, 2147483648
        %v1119 = vxor.u32 %v1087, 2147483648
        %v1120 = vxor.u32 %v1088, 2147483648
        %v1121 = vxor.u32 %v1089, 2147483648
        %v1122 = vxor.u32 %v1090, 2147483648
        %v1123 = vxor.u32 %v1091, 2147483648
        %v1124 = vxor.u32 %v1092, 2147483648
        %v1125 = vxor.u32 %v1093, 2147483648
        %v1126 = vxor.u32 %v1094, 2147483648
        %v1127 = vxor.u32 %v1095, 2147483648
        %v1128 = vxor.u32 %v1096, 2147483648
        %v1129 = vxor.u32 %v1097, 2147483648
        %v1130 = vxor.u32 %v1098, 2147483648
        %v1131 = vxor.u32 %v1099, 2147483648
        %v1132 = vxor.u32 %v1100, 2147483648
        %v1133 = vxor.u32 %v1101, 2147483648
        %v1134 = vmul.f32 %v1102, 1.442695
        %v1135 = vpow.pop %v1134
        %v1136 = vmul.f32 %v1103, 1.442695
        %v1137 = vpow.pop %v1136
        %v1138 = vmul.f32 %v1104, 1.442695
        %v1139 = vpow.pop %v1138
        %v1140 = vmul.f32 %v1105, 1.442695
        %v1141 = vpow.pop %v1140
        %v1142 = vmul.f32 %v1106, 1.442695
        %v1143 = vpow.pop %v1142
        %v1144 = vmul.f32 %v1107, 1.442695
        %v1145 = vpow.pop %v1144
        %v1146 = vmul.f32 %v1108, 1.442695
        %v1147 = vpow.pop %v1146
        %v1148 = vmul.f32 %v1109, 1.442695
        %v1149 = vpow.pop %v1148
        %v1150 = vmul.f32 %v1110, 1.442695
        %v1151 = vpow.pop %v1150
        %v1152 = vmul.f32 %v1111, 1.442695
        %v1153 = vpow.pop %v1152
        %v1154 = vmul.f32 %v1112, 1.442695
        %v1155 = vpow.pop %v1154
        %v1156 = vmul.f32 %v1113, 1.442695
        %v1157 = vpow.pop %v1156
        %v1158 = vmul.f32 %v1114, 1.442695
        %v1159 = vpow.pop %v1158
        %v1160 = vmul.f32 %v1115, 1.442695
        %v1161 = vpow.pop %v1160
        %v1162 = vmul.f32 %v1116, 1.442695
        %v1163 = vpow.pop %v1162
        %v1164 = vmul.f32 %v1117, 1.442695
        %v1165 = vpow.pop %v1164
        %v1166 = vmul.f32 %v1118, 1.442695
        %v1167 = vpow.pop %v1166
        %v1168 = vmul.f32 %v1119, 1.442695
        %v1169 = vpow.pop %v1168
        %v1170 = vmul.f32 %v1120, 1.442695
        %v1171 = vpow.pop %v1170
        %v1172 = vmul.f32 %v1121, 1.442695
        %v1173 = vpow.pop %v1172
        %v1174 = vmul.f32 %v1122, 1.442695
        %v1175 = vpow.pop %v1174
        %v1176 = vmul.f32 %v1123, 1.442695
        %v1177 = vpow.pop %v1176
        %v1178 = vmul.f32 %v1124, 1.442695
        %v1179 = vpow.pop %v1178
        %v1180 = vmul.f32 %v1125, 1.442695
        %v1181 = vpow.pop %v1180
        %v1182 = vmul.f32 %v1126, 1.442695
        %v1183 = vpow.pop %v1182
        %v1184 = vmul.f32 %v1127, 1.442695
        %v1185 = vpow.pop %v1184
        %v1186 = vmul.f32 %v1128, 1.442695
        %v1187 = vpow.pop %v1186
        %v1188 = vmul.f32 %v1129, 1.442695
        %v1189 = vpow.pop %v1188
        %v1190 = vmul.f32 %v1130, 1.442695
        %v1191 = vpow.pop %v1190
        %v1192 = vmul.f32 %v1131, 1.442695
        %v1193 = vpow.pop %v1192
        %v1194 = vmul.f32 %v1132, 1.442695
        %v1195 = vpow.pop %v1194
        %v1196 = vmul.f32 %v1133, 1.442695
        %v1197 = vpow.pop %v1196
        %v1198 = vadd.f32 %v1135, 1.0
        %v1199 = vadd.f32 %v1137, 1.0
        %v1200 = vadd.f32 %v1139, 1.0
        %v1201 = vadd.f32 %v1141, 1.0
        %v1202 = vadd.f32 %v1143, 1.0
        %v1203 = vadd.f32 %v1145, 1.0
        %v1204 = vadd.f32 %v1147, 1.0
        %v1205 = vadd.f32 %v1149, 1.0
        %v1206 = vadd.f32 %v1151, 1.0
        %v1207 = vadd.f32 %v1153, 1.0
        %v1208 = vadd.f32 %v1155, 1.0
        %v1209 = vadd.f32 %v1157, 1.0
        %v1210 = vadd.f32 %v1159, 1.0
        %v1211 = vadd.f32 %v1161, 1.0
        %v1212 = vadd.f32 %v1163, 1.0
        %v1213 = vadd.f32 %v1165, 1.0
        %v1214 = vadd.f32 %v1167, 1.0
        %v1215 = vadd.f32 %v1169, 1.0
        %v1216 = vadd.f32 %v1171, 1.0
        %v1217 = vadd.f32 %v1173, 1.0
        %v1218 = vadd.f32 %v1175, 1.0
        %v1219 = vadd.f32 %v1177, 1.0
        %v1220 = vadd.f32 %v1179, 1.0
        %v1221 = vadd.f32 %v1181, 1.0
        %v1222 = vadd.f32 %v1183, 1.0
        %v1223 = vadd.f32 %v1185, 1.0
        %v1224 = vadd.f32 %v1187, 1.0
        %v1225 = vadd.f32 %v1189, 1.0
        %v1226 = vadd.f32 %v1191, 1.0
        %v1227 = vadd.f32 %v1193, 1.0
        %v1228 = vadd.f32 %v1195, 1.0
        %v1229 = vadd.f32 %v1197, 1.0
        %v1230 = vrcp.pop %v1198
        %v1231 = vmul.f32 1.0, %v1230
        %v1232 = vrcp.pop %v1199
        %v1233 = vmul.f32 1.0, %v1232
        %v1234 = vrcp.pop %v1200
        %v1235 = vmul.f32 1.0, %v1234
        %v1236 = vrcp.pop %v1201
        %v1237 = vmul.f32 1.0, %v1236
        %v1238 = vrcp.pop %v1202
        %v1239 = vmul.f32 1.0, %v1238
        %v1240 = vrcp.pop %v1203
        %v1241 = vmul.f32 1.0, %v1240
        %v1242 = vrcp.pop %v1204
        %v1243 = vmul.f32 1.0, %v1242
        %v1244 = vrcp.pop %v1205
        %v1245 = vmul.f32 1.0, %v1244
        %v1246 = vrcp.pop %v1206
        %v1247 = vmul.f32 1.0, %v1246
        %v1248 = vrcp.pop %v1207
        %v1249 = vmul.f32 1.0, %v1248
        %v1250 = vrcp.pop %v1208
        %v1251 = vmul.f32 1.0, %v1250
        %v1252 = vrcp.pop %v1209
        %v1253 = vmul.f32 1.0, %v1252
        %v1254 = vrcp.pop %v1210
        %v1255 = vmul.f32 1.0, %v1254
        %v1256 = vrcp.pop %v1211
        %v1257 = vmul.f32 1.0, %v1256
        %v1258 = vrcp.pop %v1212
        %v1259 = vmul.f32 1.0, %v1258
        %v1260 = vrcp.pop %v1213
        %v1261 = vmul.f32 1.0, %v1260
        %v1262 = vrcp.pop %v1214
        %v1263 = vmul.f32 1.0, %v1262
        %v1264 = vrcp.pop %v1215
        %v1265 = vmul.f32 1.0, %v1264
        %v1266 = vrcp.pop %v1216
        %v1267 = vmul.f32 1.0, %v1266
        %v1268 = vrcp.pop %v1217
        %v1269 = vmul.f32 1.0, %v1268
        %v1270 = vrcp.pop %v1218
        %v1271 = vmul.f32 1.0, %v1270
        %v1272 = vrcp.pop %v1219
        %v1273 = vmul.f32 1.0, %v1272
        %v1274 = vrcp.pop %v1220
        %v1275 = vmul.f32 1.0, %v1274
        %v1276 = vrcp.pop %v1221
        %v1277 = vmul.f32 1.0, %v1276
        %v1278 = vrcp.pop %v1222
        %v1279 = vmul.f32 1.0, %v1278
        %v1280 = vrcp.pop %v1223
        %v1281 = vmul.f32 1.0, %v1280
        %v1282 = vrcp.pop %v1224
        %v1283 = vmul.f32 1.0, %v1282
        %v1284 = vrcp.pop %v1225
        %v1285 = vmul.f32 1.0, %v1284
        %v1286 = vrcp.pop %v1226
        %v1287 = vmul.f32 1.0, %v1286
        %v1288 = vrcp.pop %v1227
        %v1289 = vmul.f32 1.0, %v1288
        %v1290 = vrcp.pop %v1228
        %v1291 = vmul.f32 1.0, %v1290
        %v1292 = vrcp.pop %v1229
        %v1293 = vmul.f32 1.0, %v1292
        %v1294 = vmul.f32 %v1070, %v1231
        %v1295 = vmul.f32 %v1071, %v1233
        %v1296 = vmul.f32 %v1072, %v1235
        %v1297 = vmul.f32 %v1073, %v1237
        %v1298 = vmul.f32 %v1074, %v1239
        %v1299 = vmul.f32 %v1075, %v1241
        %v1300 = vmul.f32 %v1076, %v1243
        %v1301 = vmul.f32 %v1077, %v1245
        %v1302 = vmul.f32 %v1078, %v1247
        %v1303 = vmul.f32 %v1079, %v1249
        %v1304 = vmul.f32 %v1080, %v1251
        %v1305 = vmul.f32 %v1081, %v1253
        %v1306 = vmul.f32 %v1082, %v1255
        %v1307 = vmul.f32 %v1083, %v1257
        %v1308 = vmul.f32 %v1084, %v1259
        %v1309 = vmul.f32 %v1085, %v1261
        %v1310 = vmul.f32 %v1086, %v1263
        %v1311 = vmul.f32 %v1087, %v1265
        %v1312 = vmul.f32 %v1088, %v1267
        %v1313 = vmul.f32 %v1089, %v1269
        %v1314 = vmul.f32 %v1090, %v1271
        %v1315 = vmul.f32 %v1091, %v1273
        %v1316 = vmul.f32 %v1092, %v1275
        %v1317 = vmul.f32 %v1093, %v1277
        %v1318 = vmul.f32 %v1094, %v1279
        %v1319 = vmul.f32 %v1095, %v1281
        %v1320 = vmul.f32 %v1096, %v1283
        %v1321 = vmul.f32 %v1097, %v1285
        %v1322 = vmul.f32 %v1098, %v1287
        %v1323 = vmul.f32 %v1099, %v1289
        %v1324 = vmul.f32 %v1100, %v1291
        %v1325 = vmul.f32 %v1101, %v1293
        %v1326 = vld [vmem:[%s3] sm:$0xff]
        %v1327 = vld [vmem:[%s3 + $0x8] sm:$0xff]
        %v1328 = vld [vmem:[%s3 + $0x10] sm:$0xff]
        %v1329 = vld [vmem:[%s3 + $0x18] sm:$0xff]
        %v1330 = vld [vmem:[%s3 + $0x20] sm:$0xff]
        %v1331 = vld [vmem:[%s3 + $0x28] sm:$0xff]
        %v1332 = vld [vmem:[%s3 + $0x30] sm:$0xff]
        %v1333 = vld [vmem:[%s3 + $0x38] sm:$0xff]
        %v1334 = vld [vmem:[%s3 + $0x40] sm:$0xff]
        %v1335 = vld [vmem:[%s3 + $0x48] sm:$0xff]
        %v1336 = vld [vmem:[%s3 + $0x50] sm:$0xff]
        %v1337 = vld [vmem:[%s3 + $0x58] sm:$0xff]
        %v1338 = vld [vmem:[%s3 + $0x60] sm:$0xff]
        %v1339 = vld [vmem:[%s3 + $0x68] sm:$0xff]
        %v1340 = vld [vmem:[%s3 + $0x70] sm:$0xff]
        %v1341 = vld [vmem:[%s3 + $0x78] sm:$0xff]
        %v1342 = vld [vmem:[%s3 + $0x80] sm:$0xff]
        %v1343 = vld [vmem:[%s3 + $0x88] sm:$0xff]
        %vm1373 = vcmask 1040384
        %v1374 = vrot.slane 0.0, 7
        %v1375 = vsel %vm1373, %v1374, %v1374
        %v1376 = vrot.slane %v1294, 7
        %v1377 = vsel %vm1373, %v1374, %v1376
        %v1378 = vrot.slane %v1295, 7
        %v1379 = vsel %vm1373, %v1374, %v1378
        %v1380 = vrot.slane %v1296, 7
        %v1381 = vsel %vm1373, %v1374, %v1380
        %v1382 = vrot.slane %v1297, 7
        %v1383 = vsel %vm1373, %v1374, %v1382
        %v1384 = vrot.slane %v1298, 7
        %v1385 = vsel %vm1373, %v1374, %v1384
        %v1386 = vrot.slane %v1299, 7
        %v1387 = vsel %vm1373, %v1374, %v1386
        %v1388 = vrot.slane %v1300, 7
        %v1389 = vsel %vm1373, %v1374, %v1388
        %v1390 = vrot.slane %v1302, 7
        %v1391 = vsel %vm1373, %v1374, %v1390
        %v1392 = vrot.slane %v1303, 7
        %v1393 = vsel %vm1373, %v1374, %v1392
        %v1394 = vrot.slane %v1304, 7
        %v1395 = vsel %vm1373, %v1374, %v1394
        %v1396 = vrot.slane %v1305, 7
        %v1397 = vsel %vm1373, %v1374, %v1396
        %v1398 = vrot.slane %v1306, 7
        %v1399 = vsel %vm1373, %v1374, %v1398
        %v1400 = vrot.slane %v1307, 7
        %v1401 = vsel %vm1373, %v1374, %v1400
        %v1402 = vrot.slane %v1308, 7
        %v1403 = vsel %vm1373, %v1374, %v1402
        %v1404 = vrot.slane %v1310, 7
        %v1405 = vsel %vm1373, %v1374, %v1404
        %v1406 = vrot.slane %v1311, 7
        %v1407 = vsel %vm1373, %v1374, %v1406
        %v1408 = vrot.slane %v1312, 7
        %v1409 = vsel %vm1373, %v1374, %v1408
        %v1410 = vrot.slane %v1313, 7
        %v1411 = vsel %vm1373, %v1374, %v1410
        %v1412 = vrot.slane %v1314, 7
        %v1413 = vsel %vm1373, %v1374, %v1412
        %v1414 = vrot.slane %v1315, 7
        %v1415 = vsel %vm1373, %v1374, %v1414
        %v1416 = vrot.slane %v1316, 7
        %v1417 = vsel %vm1373, %v1374, %v1416
        %v1418 = vrot.slane %v1318, 7
        %v1419 = vsel %vm1373, %v1374, %v1418
        %v1420 = vrot.slane %v1319, 7
        %v1421 = vsel %vm1373, %v1374, %v1420
        %v1422 = vrot.slane %v1320, 7
        %v1423 = vsel %vm1373, %v1374, %v1422
        %v1424 = vrot.slane %v1321, 7
        %v1425 = vsel %vm1373, %v1374, %v1424
        %v1426 = vrot.slane %v1322, 7
        %v1427 = vsel %vm1373, %v1374, %v1426
        %v1428 = vrot.slane %v1323, 7
        %v1429 = vsel %vm1373, %v1374, %v1428
        %v1430 = vrot.slane %v1324, 7
        %v1431 = vsel %vm1373, %v1374, %v1430
        %v1432 = vsel %vm278, 0.0, 0
        %v1434 = vsel %vm278, %v1294, 0
        %v1436 = vsel %vm278, %v1295, 0
        %v1438 = vsel %vm278, %v1296, 0
        %v1440 = vsel %vm278, %v1297, 0
        %v1442 = vsel %vm278, %v1298, 0
        %v1444 = vsel %vm278, %v1299, 0
        %v1446 = vsel %vm278, %v1300, 0
        %v1448 = vsel %vm278, %v1302, 0
        %v1450 = vsel %vm278, %v1303, 0
        %v1452 = vsel %vm278, %v1304, 0
        %v1454 = vsel %vm278, %v1305, 0
        %v1456 = vsel %vm278, %v1306, 0
        %v1458 = vsel %vm278, %v1307, 0
        %v1460 = vsel %vm278, %v1308, 0
        %v1462 = vsel %vm278, %v1310, 0
        %v1464 = vsel %vm278, %v1311, 0
        %v1466 = vsel %vm278, %v1312, 0
        %v1468 = vsel %vm278, %v1313, 0
        %v1470 = vsel %vm278, %v1314, 0
        %v1472 = vsel %vm278, %v1315, 0
        %v1474 = vsel %vm278, %v1316, 0
        %v1476 = vsel %vm278, %v1318, 0
        %v1478 = vsel %vm278, %v1319, 0
        %v1480 = vsel %vm278, %v1320, 0
        %v1482 = vsel %vm278, %v1321, 0
        %v1484 = vsel %vm278, %v1322, 0
        %v1486 = vsel %vm278, %v1323, 0
        %v1488 = vsel %vm278, %v1324, 0
        %1490 = vmatprep.subr.mxu0 0.0
        %1491 = vmatpush1.msra.mxu0 %v1328
        %1492 = vmatprep.subr.mxu0 0.0
        %1493 = vmatpush1.msra.mxu0 %v1329
        %1494 = vmatprep.subr.mxu0 0.0
        %1495 = vmatpush1.msra.mxu0 0.0
        %1496 = vmatprep.subr.mxu0 0.0
        %1497 = vmatpush1.msra.mxu0 0.0
        %1498 = vmatprep.subr.mxu0 0.0
        %1499 = vmatpush1.msra.mxu0 0.0
        %1500 = vmatprep.subr.mxu0 0.0
        %1501 = vmatpush1.msra.mxu0 0.0
        %1502 = vmatprep.subr.mxu0 0.0
        %1503 = vmatpush1.msra.mxu0 0.0
        %1504 = vmatprep.subr.mxu0 0.0
        %1505 = vmatpush1.msra.mxu0 0.0
        %1506 = vmatprep.subr.mxu0 0.0
        %1507 = vmatpush1.msra.mxu0 0.0
        %1508 = vmatprep.subr.mxu0 0.0
        %1509 = vmatpush1.msra.mxu0 0.0
        %1510 = vmatprep.subr.mxu0 0.0
        %1511 = vmatpush1.msra.mxu0 0.0
        %1512 = vmatprep.subr.mxu0 0.0
        %1513 = vmatpush1.msra.mxu0 0.0
        %1514 = vmatprep.subr.mxu0 0.0
        %1515 = vmatpush1.msra.mxu0 0.0
        %1516 = vmatprep.subr.mxu0 0.0
        %1517 = vmatpush1.msra.mxu0 0.0
        %1518 = vmatprep.subr.mxu0 0.0
        %1519 = vmatpush1.msra.mxu0 0.0
        %1520 = vmatprep.subr.mxu0 0.0
        %1521 = vmatpush1.msra.mxu0 0.0
        %1522 = vmatprep.subr.mxu0 0.0
        %1523 = vmatpush1.msra.mxu0 0.0
        %1524 = vmatprep.subr.mxu0 0.0
        %1525 = vmatpush1.msra.mxu0 0.0
        %1526 = vmatprep.subr.mxu0 0.0
        %1527 = vmatpush1.msra.mxu0 0.0
        %1528 = vmatprep.subr.mxu0 0.0
        %1529 = vmatpush1.msra.mxu0 0.0
        %1530 = vmatprep.subr.mxu0 0.0
        %1531 = vmatpush1.msra.mxu0 0.0
        %1532 = vmatprep.subr.mxu0 0.0
        %1533 = vmatpush1.msra.mxu0 0.0
        %1534 = vmatprep.subr.mxu0 0.0
        %1535 = vmatpush1.msra.mxu0 0.0
        %1536 = vmatprep.subr.mxu0 0.0
        %1537 = vmatpush1.msra.mxu0 0.0
        %1538 = vmatprep.subr.mxu0 0.0
        %1539 = vmatpush1.msra.mxu0 0.0
        %1540 = vmatprep.subr.mxu0 0.0
        %1541 = vmatpush1.msra.mxu0 0.0
        %1542 = vmatprep.subr.mxu0 0.0
        %1543 = vmatpush1.msra.mxu0 0.0
        %1544 = vmatprep.subr.mxu0 0.0
        %1545 = vmatpush1.msra.mxu0 0.0
        %1546 = vmatprep.subr.mxu0 0.0
        %1547 = vmatpush1.msra.mxu0 0.0
        %1548 = vmatprep.subr.mxu0 0.0
        %1549 = vmatpush1.msra.mxu0 0.0
        %1550 = vmatprep.subr.mxu0 0.0
        %1551 = vmatpush1.msra.mxu0 0.0
        %1552 = vmatprep.subr.mxu0 0.0
        %1553 = vmatpush1.msra.mxu0 0.0
        %1554 = vmatprep.mubr.f32.mxu0 0.0
        %1555 = vmatmul.mubr.f32.gmra.mrb[0].mxu0 %v1432
        %v1556 = vpop.f32.mrb[0].mxu0
        %v1557 = vadd.f32 0.0, %v1556
        %v1558 = vpop.f32.mrb[0].mxu0
        %1559 = vmatprep.mubr.f32.mxu0 0.0
        %1560 = vmatmul.mubr.f32.gmra.mrb[0].mxu0 %v1434
        %v1561 = vpop.f32.mrb[0].mxu0
        %v1562 = vadd.f32 0.0, %v1561
        %v1563 = vpop.f32.mrb[0].mxu0
        %1564 = vmatprep.mubr.f32.mxu0 0.0
        %1565 = vmatmul.mubr.f32.gmra.mrb[0].mxu0 %v1436
        %v1566 = vpop.f32.mrb[0].mxu0
        %v1567 = vadd.f32 0.0, %v1566
        %v1568 = vpop.f32.mrb[0].mxu0
        %1569 = vmatprep.mubr.f32.mxu0 0.0
        %1570 = vmatmul.mubr.f32.gmra.mrb[0].mxu0 %v1438
        %v1571 = vpop.f32.mrb[0].mxu0
        %v1572 = vadd.f32 0.0, %v1571
        %v1573 = vpop.f32.mrb[0].mxu0
        %1574 = vmatprep.mubr.f32.mxu0 0.0
        %1575 = vmatmul.mubr.f32.gmra.mrb[0].mxu0 %v1440
        %v1576 = vpop.f32.mrb[0].mxu0
        %v1577 = vadd.f32 0.0, %v1576
        %v1578 = vpop.f32.mrb[0].mxu0
        %1579 = vmatprep.mubr.f32.mxu0 0.0
        %1580 = vmatmul.mubr.f32.gmra.mrb[0].mxu0 %v1442
        %v1581 = vpop.f32.mrb[0].mxu0
        %v1582 = vadd.f32 0.0, %v1581
        %v1583 = vpop.f32.mrb[0].mxu0
        %1584 = vmatprep.mubr.f32.mxu0 0.0
        %1585 = vmatmul.mubr.f32.gmra.mrb[0].mxu0 %v1444
        %v1586 = vpop.f32.mrb[0].mxu0
        %v1587 = vadd.f32 0.0, %v1586
        %v1588 = vpop.f32.mrb[0].mxu0
        %1589 = vmatprep.mubr.f32.mxu0 0.0
        %1590 = vmatmul.mubr.f32.gmra.mrb[0].mxu0 %v1446
        %v1591 = vpop.f32.mrb[0].mxu0
        %v1592 = vadd.f32 0.0, %v1591
        %v1593 = vpop.f32.mrb[0].mxu0
        %1594 = vmatprep.mubr.f32.mxu0 0.0
        %1595 = vmatmul.mubr.f32.gmra.mrb[0].mxu0 %v1432
        %v1596 = vpop.f32.mrb[0].mxu0
        %v1597 = vadd.f32 0.0, %v1596
        %v1598 = vpop.f32.mrb[0].mxu0
        %1599 = vmatprep.mubr.f32.mxu0 0.0
        %1600 = vmatmul.mubr.f32.gmra.mrb[0].mxu0 %v1448
        %v1601 = vpop.f32.mrb[0].mxu0
        %v1602 = vadd.f32 0.0, %v1601
        %v1603 = vpop.f32.mrb[0].mxu0
        %1604 = vmatprep.mubr.f32.mxu0 0.0
        %1605 = vmatmul.mubr.f32.gmra.mrb[0].mxu0 %v1450
        %v1606 = vpop.f32.mrb[0].mxu0
        %v1607 = vadd.f32 0.0, %v1606
        %v1608 = vpop.f32.mrb[0].mxu0
        %1609 = vmatprep.mubr.f32.mxu0 0.0
        %1610 = vmatmul.mubr.f32.gmra.mrb[0].mxu0 %v1452
        %v1611 = vpop.f32.mrb[0].mxu0
        %v1612 = vadd.f32 0.0, %v1611
        %v1613 = vpop.f32.mrb[0].mxu0
        %1614 = vmatprep.mubr.f32.mxu0 0.0
        %1615 = vmatmul.mubr.f32.gmra.mrb[0].mxu0 %v1454
        %v1616 = vpop.f32.mrb[0].mxu0
        %v1617 = vadd.f32 0.0, %v1616
        %v1618 = vpop.f32.mrb[0].mxu0
        %1619 = vmatprep.mubr.f32.mxu0 0.0
        %1620 = vmatmul.mubr.f32.gmra.mrb[0].mxu0 %v1456
        %v1621 = vpop.f32.mrb[0].mxu0
        %v1622 = vadd.f32 0.0, %v1621
        %v1623 = vpop.f32.mrb[0].mxu0
        %1624 = vmatprep.mubr.f32.mxu0 0.0
        %1625 = vmatmul.mubr.f32.gmra.mrb[0].mxu0 %v1458
        %v1626 = vpop.f32.mrb[0].mxu0
        %v1627 = vadd.f32 0.0, %v1626
        %v1628 = vpop.f32.mrb[0].mxu0
        %1629 = vmatprep.mubr.f32.mxu0 0.0
        %1630 = vmatmul.mubr.f32.gmra.mrb[0].mxu0 %v1460
        %v1631 = vpop.f32.mrb[0].mxu0
        %v1632 = vadd.f32 0.0, %v1631
        %v1633 = vpop.f32.mrb[0].mxu0
        %1634 = vmatprep.mubr.f32.mxu0 0.0
        %1635 = vmatmul.mubr.f32.gmra.mrb[0].mxu0 %v1432
        %v1636 = vpop.f32.mrb[0].mxu0
        %v1637 = vadd.f32 0.0, %v1636
        %v1638 = vpop.f32.mrb[0].mxu0
        %1639 = vmatprep.mubr.f32.mxu0 0.0
        %1640 = vmatmul.mubr.f32.gmra.mrb[0].mxu0 %v1462
        %v1641 = vpop.f32.mrb[0].mxu0
        %v1642 = vadd.f32 0.0, %v1641
        %v1643 = vpop.f32.mrb[0].mxu0
        %1644 = vmatprep.mubr.f32.mxu0 0.0
        %1645 = vmatmul.mubr.f32.gmra.mrb[0].mxu0 %v1464
        %v1646 = vpop.f32.mrb[0].mxu0
        %v1647 = vadd.f32 0.0, %v1646
        %v1648 = vpop.f32.mrb[0].mxu0
        %1649 = vmatprep.mubr.f32.mxu0 0.0
        %1650 = vmatmul.mubr.f32.gmra.mrb[0].mxu0 %v1466
        %v1651 = vpop.f32.mrb[0].mxu0
        %v1652 = vadd.f32 0.0, %v1651
        %v1653 = vpop.f32.mrb[0].mxu0
        %1654 = vmatprep.mubr.f32.mxu0 0.0
        %1655 = vmatmul.mubr.f32.gmra.mrb[0].mxu0 %v1468
        %v1656 = vpop.f32.mrb[0].mxu0
        %v1657 = vadd.f32 0.0, %v1656
        %v1658 = vpop.f32.mrb[0].mxu0
        %1659 = vmatprep.mubr.f32.mxu0 0.0
        %1660 = vmatmul.mubr.f32.gmra.mrb[0].mxu0 %v1470
        %v1661 = vpop.f32.mrb[0].mxu0
        %v1662 = vadd.f32 0.0, %v1661
        %v1663 = vpop.f32.mrb[0].mxu0
        %1664 = vmatprep.mubr.f32.mxu0 0.0
        %1665 = vmatmul.mubr.f32.gmra.mrb[0].mxu0 %v1472
        %v1666 = vpop.f32.mrb[0].mxu0
        %v1667 = vadd.f32 0.0, %v1666
        %v1668 = vpop.f32.mrb[0].mxu0
        %1669 = vmatprep.mubr.f32.mxu0 0.0
        %1670 = vmatmul.mubr.f32.gmra.mrb[0].mxu0 %v1474
        %v1671 = vpop.f32.mrb[0].mxu0
        %v1672 = vadd.f32 0.0, %v1671
        %v1673 = vpop.f32.mrb[0].mxu0
        %1674 = vmatprep.mubr.f32.mxu0 0.0
        %1675 = vmatmul.mubr.f32.gmra.mrb[0].mxu0 %v1432
        %v1676 = vpop.f32.mrb[0].mxu0
        %v1677 = vadd.f32 0.0, %v1676
        %v1678 = vpop.f32.mrb[0].mxu0
        %1679 = vmatprep.mubr.f32.mxu0 0.0
        %1680 = vmatmul.mubr.f32.gmra.mrb[0].mxu0 %v1476
        %v1681 = vpop.f32.mrb[0].mxu0
        %v1682 = vadd.f32 0.0, %v1681
        %v1683 = vpop.f32.mrb[0].mxu0
        %1684 = vmatprep.mubr.f32.mxu0 0.0
        %1685 = vmatmul.mubr.f32.gmra.mrb[0].mxu0 %v1478
        %v1686 = vpop.f32.mrb[0].mxu0
        %v1687 = vadd.f32 0.0, %v1686
        %v1688 = vpop.f32.mrb[0].mxu0
        %1689 = vmatprep.mubr.f32.mxu0 0.0
        %1690 = vmatmul.mubr.f32.gmra.mrb[0].mxu0 %v1480
        %v1691 = vpop.f32.mrb[0].mxu0
        %v1692 = vadd.f32 0.0, %v1691
        %v1693 = vpop.f32.mrb[0].mxu0
        %1694 = vmatprep.mubr.f32.mxu0 0.0
        %1695 = vmatmul.mubr.f32.gmra.mrb[0].mxu0 %v1482
        %v1696 = vpop.f32.mrb[0].mxu0
        %v1697 = vadd.f32 0.0, %v1696
        %v1698 = vpop.f32.mrb[0].mxu0
        %1699 = vmatprep.mubr.f32.mxu0 0.0
        %1700 = vmatmul.mubr.f32.gmra.mrb[0].mxu0 %v1484
        %v1701 = vpop.f32.mrb[0].mxu0
        %v1702 = vadd.f32 0.0, %v1701
        %v1703 = vpop.f32.mrb[0].mxu0
        %1704 = vmatprep.mubr.f32.mxu0 0.0
        %1705 = vmatmul.mubr.f32.gmra.mrb[0].mxu0 %v1486
        %v1706 = vpop.f32.mrb[0].mxu0
        %v1707 = vadd.f32 0.0, %v1706
        %v1708 = vpop.f32.mrb[0].mxu0
        %1709 = vmatprep.mubr.f32.mxu0 0.0
        %1710 = vmatmul.mubr.f32.gmra.mrb[0].mxu0 %v1488
        %v1711 = vpop.f32.mrb[0].mxu0
        %v1712 = vadd.f32 0.0, %v1711
        %v1713 = vpop.f32.mrb[0].mxu0
        %1714 = vdwg.mxu0
        %v1715 = vsel %vm278, %v1375, 0
        %v1717 = vsel %vm278, %v1377, 0
        %v1719 = vsel %vm278, %v1379, 0
        %v1721 = vsel %vm278, %v1381, 0
        %v1723 = vsel %vm278, %v1383, 0
        %v1725 = vsel %vm278, %v1385, 0
        %v1727 = vsel %vm278, %v1387, 0
        %v1729 = vsel %vm278, %v1389, 0
        %v1731 = vsel %vm278, %v1391, 0
        %v1733 = vsel %vm278, %v1393, 0
        %v1735 = vsel %vm278, %v1395, 0
        %v1737 = vsel %vm278, %v1397, 0
        %v1739 = vsel %vm278, %v1399, 0
        %v1741 = vsel %vm278, %v1401, 0
        %v1743 = vsel %vm278, %v1403, 0
        %v1745 = vsel %vm278, %v1405, 0
        %v1747 = vsel %vm278, %v1407, 0
        %v1749 = vsel %vm278, %v1409, 0
        %v1751 = vsel %vm278, %v1411, 0
        %v1753 = vsel %vm278, %v1413, 0
        %v1755 = vsel %vm278, %v1415, 0
        %v1757 = vsel %vm278, %v1417, 0
        %v1759 = vsel %vm278, %v1419, 0
        %v1761 = vsel %vm278, %v1421, 0
        %v1763 = vsel %vm278, %v1423, 0
        %v1765 = vsel %vm278, %v1425, 0
        %v1767 = vsel %vm278, %v1427, 0
        %v1769 = vsel %vm278, %v1429, 0
        %v1771 = vsel %vm278, %v1431, 0
        %1773 = vmatprep.subr.mxu0 0.0
        %1774 = vmatpush1.msra.mxu0 %v1326
        %1775 = vmatprep.subr.mxu0 0.0
        %1776 = vmatpush1.msra.mxu0 %v1327
        %1777 = vmatprep.subr.mxu0 0.0
        %1778 = vmatpush1.msra.mxu0 0.0
        %1779 = vmatprep.subr.mxu0 0.0
        %1780 = vmatpush1.msra.mxu0 0.0
        %1781 = vmatprep.subr.mxu0 0.0
        %1782 = vmatpush1.msra.mxu0 0.0
        %1783 = vmatprep.subr.mxu0 0.0
        %1784 = vmatpush1.msra.mxu0 0.0
        %1785 = vmatprep.subr.mxu0 0.0
        %1786 = vmatpush1.msra.mxu0 0.0
        %1787 = vmatprep.subr.mxu0 0.0
        %1788 = vmatpush1.msra.mxu0 0.0
        %1789 = vmatprep.subr.mxu0 0.0
        %1790 = vmatpush1.msra.mxu0 0.0
        %1791 = vmatprep.subr.mxu0 0.0
        %1792 = vmatpush1.msra.mxu0 0.0
        %1793 = vmatprep.subr.mxu0 0.0
        %1794 = vmatpush1.msra.mxu0 0.0
        %1795 = vmatprep.subr.mxu0 0.0
        %1796 = vmatpush1.msra.mxu0 0.0
        %1797 = vmatprep.subr.mxu0 0.0
        %1798 = vmatpush1.msra.mxu0 0.0
        %1799 = vmatprep.subr.mxu0 0.0
        %1800 = vmatpush1.msra.mxu0 0.0
        %1801 = vmatprep.subr.mxu0 0.0
        %1802 = vmatpush1.msra.mxu0 0.0
        %1803 = vmatprep.subr.mxu0 0.0
        %1804 = vmatpush1.msra.mxu0 0.0
        %1805 = vmatprep.subr.mxu0 0.0
        %1806 = vmatpush1.msra.mxu0 0.0
        %1807 = vmatprep.subr.mxu0 0.0
        %1808 = vmatpush1.msra.mxu0 0.0
        %1809 = vmatprep.subr.mxu0 0.0
        %1810 = vmatpush1.msra.mxu0 0.0
        %1811 = vmatprep.subr.mxu0 0.0
        %1812 = vmatpush1.msra.mxu0 0.0
        %1813 = vmatprep.subr.mxu0 0.0
        %1814 = vmatpush1.msra.mxu0 0.0
        %1815 = vmatprep.subr.mxu0 0.0
        %1816 = vmatpush1.msra.mxu0 0.0
        %1817 = vmatprep.subr.mxu0 0.0
        %1818 = vmatpush1.msra.mxu0 0.0
        %1819 = vmatprep.subr.mxu0 0.0
        %1820 = vmatpush1.msra.mxu0 0.0
        %1821 = vmatprep.subr.mxu0 0.0
        %1822 = vmatpush1.msra.mxu0 0.0
        %1823 = vmatprep.subr.mxu0 0.0
        %1824 = vmatpush1.msra.mxu0 0.0
        %1825 = vmatprep.subr.mxu0 0.0
        %1826 = vmatpush1.msra.mxu0 0.0
        %1827 = vmatprep.subr.mxu0 0.0
        %1828 = vmatpush1.msra.mxu0 0.0
        %1829 = vmatprep.subr.mxu0 0.0
        %1830 = vmatpush1.msra.mxu0 0.0
        %1831 = vmatprep.subr.mxu0 0.0
        %1832 = vmatpush1.msra.mxu0 0.0
        %1833 = vmatprep.subr.mxu0 0.0
        %1834 = vmatpush1.msra.mxu0 0.0
        %1835 = vmatprep.subr.mxu0 0.0
        %1836 = vmatpush1.msra.mxu0 0.0
        %1837 = vmatprep.mubr.f32.mxu0 0.0
        %1838 = vmatmul.mubr.f32.gmra.mrb[0].mxu0 %v1715
        %v1839 = vpop.f32.mrb[0].mxu0
        %v1840 = vadd.f32 %v1557, %v1839
        %v1841 = vpop.f32.mrb[0].mxu0
        %1842 = vmatprep.mubr.f32.mxu0 0.0
        %1843 = vmatmul.mubr.f32.gmra.mrb[0].mxu0 %v1717
        %v1844 = vpop.f32.mrb[0].mxu0
        %v1845 = vadd.f32 %v1562, %v1844
        %v1846 = vpop.f32.mrb[0].mxu0
        %1847 = vmatprep.mubr.f32.mxu0 0.0
        %1848 = vmatmul.mubr.f32.gmra.mrb[0].mxu0 %v1719
        %v1849 = vpop.f32.mrb[0].mxu0
        %v1850 = vadd.f32 %v1567, %v1849
        %v1851 = vpop.f32.mrb[0].mxu0
        %1852 = vmatprep.mubr.f32.mxu0 0.0
        %1853 = vmatmul.mubr.f32.gmra.mrb[0].mxu0 %v1721
        %v1854 = vpop.f32.mrb[0].mxu0
        %v1855 = vadd.f32 %v1572, %v1854
        %v1856 = vpop.f32.mrb[0].mxu0
        %1857 = vmatprep.mubr.f32.mxu0 0.0
        %1858 = vmatmul.mubr.f32.gmra.mrb[0].mxu0 %v1723
        %v1859 = vpop.f32.mrb[0].mxu0
        %v1860 = vadd.f32 %v1577, %v1859
        %v1861 = vpop.f32.mrb[0].mxu0
        %1862 = vmatprep.mubr.f32.mxu0 0.0
        %1863 = vmatmul.mubr.f32.gmra.mrb[0].mxu0 %v1725
        %v1864 = vpop.f32.mrb[0].mxu0
        %v1865 = vadd.f32 %v1582, %v1864
        %v1866 = vpop.f32.mrb[0].mxu0
        %1867 = vmatprep.mubr.f32.mxu0 0.0
        %1868 = vmatmul.mubr.f32.gmra.mrb[0].mxu0 %v1727
        %v1869 = vpop.f32.mrb[0].mxu0
        %v1870 = vadd.f32 %v1587, %v1869
        %v1871 = vpop.f32.mrb[0].mxu0
        %1872 = vmatprep.mubr.f32.mxu0 0.0
        %1873 = vmatmul.mubr.f32.gmra.mrb[0].mxu0 %v1729
        %v1874 = vpop.f32.mrb[0].mxu0
        %v1875 = vadd.f32 %v1592, %v1874
        %v1876 = vpop.f32.mrb[0].mxu0
        %1877 = vmatprep.mubr.f32.mxu0 0.0
        %1878 = vmatmul.mubr.f32.gmra.mrb[0].mxu0 %v1715
        %v1879 = vpop.f32.mrb[0].mxu0
        %v1880 = vadd.f32 %v1597, %v1879
        %v1881 = vpop.f32.mrb[0].mxu0
        %1882 = vmatprep.mubr.f32.mxu0 0.0
        %1883 = vmatmul.mubr.f32.gmra.mrb[0].mxu0 %v1731
        %v1884 = vpop.f32.mrb[0].mxu0
        %v1885 = vadd.f32 %v1602, %v1884
        %v1886 = vpop.f32.mrb[0].mxu0
        %1887 = vmatprep.mubr.f32.mxu0 0.0
        %1888 = vmatmul.mubr.f32.gmra.mrb[0].mxu0 %v1733
        %v1889 = vpop.f32.mrb[0].mxu0
        %v1890 = vadd.f32 %v1607, %v1889
        %v1891 = vpop.f32.mrb[0].mxu0
        %1892 = vmatprep.mubr.f32.mxu0 0.0
        %1893 = vmatmul.mubr.f32.gmra.mrb[0].mxu0 %v1735
        %v1894 = vpop.f32.mrb[0].mxu0
        %v1895 = vadd.f32 %v1612, %v1894
        %v1896 = vpop.f32.mrb[0].mxu0
        %1897 = vmatprep.mubr.f32.mxu0 0.0
        %1898 = vmatmul.mubr.f32.gmra.mrb[0].mxu0 %v1737
        %v1899 = vpop.f32.mrb[0].mxu0
        %v1900 = vadd.f32 %v1617, %v1899
        %v1901 = vpop.f32.mrb[0].mxu0
        %1902 = vmatprep.mubr.f32.mxu0 0.0
        %1903 = vmatmul.mubr.f32.gmra.mrb[0].mxu0 %v1739
        %v1904 = vpop.f32.mrb[0].mxu0
        %v1905 = vadd.f32 %v1622, %v1904
        %v1906 = vpop.f32.mrb[0].mxu0
        %1907 = vmatprep.mubr.f32.mxu0 0.0
        %1908 = vmatmul.mubr.f32.gmra.mrb[0].mxu0 %v1741
        %v1909 = vpop.f32.mrb[0].mxu0
        %v1910 = vadd.f32 %v1627, %v1909
        %v1911 = vpop.f32.mrb[0].mxu0
        %1912 = vmatprep.mubr.f32.mxu0 0.0
        %1913 = vmatmul.mubr.f32.gmra.mrb[0].mxu0 %v1743
        %v1914 = vpop.f32.mrb[0].mxu0
        %v1915 = vadd.f32 %v1632, %v1914
        %v1916 = vpop.f32.mrb[0].mxu0
        %1917 = vmatprep.mubr.f32.mxu0 0.0
        %1918 = vmatmul.mubr.f32.gmra.mrb[0].mxu0 %v1715
        %v1919 = vpop.f32.mrb[0].mxu0
        %v1920 = vadd.f32 %v1637, %v1919
        %v1921 = vpop.f32.mrb[0].mxu0
        %1922 = vmatprep.mubr.f32.mxu0 0.0
        %1923 = vmatmul.mubr.f32.gmra.mrb[0].mxu0 %v1745
        %v1924 = vpop.f32.mrb[0].mxu0
        %v1925 = vadd.f32 %v1642, %v1924
        %v1926 = vpop.f32.mrb[0].mxu0
        %1927 = vmatprep.mubr.f32.mxu0 0.0
        %1928 = vmatmul.mubr.f32.gmra.mrb[0].mxu0 %v1747
        %v1929 = vpop.f32.mrb[0].mxu0
        %v1930 = vadd.f32 %v1647, %v1929
        %v1931 = vpop.f32.mrb[0].mxu0
        %1932 = vmatprep.mubr.f32.mxu0 0.0
        %1933 = vmatmul.mubr.f32.gmra.mrb[0].mxu0 %v1749
        %v1934 = vpop.f32.mrb[0].mxu0
        %v1935 = vadd.f32 %v1652, %v1934
        %v1936 = vpop.f32.mrb[0].mxu0
        %1937 = vmatprep.mubr.f32.mxu0 0.0
        %1938 = vmatmul.mubr.f32.gmra.mrb[0].mxu0 %v1751
        %v1939 = vpop.f32.mrb[0].mxu0
        %v1940 = vadd.f32 %v1657, %v1939
        %v1941 = vpop.f32.mrb[0].mxu0
        %1942 = vmatprep.mubr.f32.mxu0 0.0
        %1943 = vmatmul.mubr.f32.gmra.mrb[0].mxu0 %v1753
        %v1944 = vpop.f32.mrb[0].mxu0
        %v1945 = vadd.f32 %v1662, %v1944
        %v1946 = vpop.f32.mrb[0].mxu0
        %1947 = vmatprep.mubr.f32.mxu0 0.0
        %1948 = vmatmul.mubr.f32.gmra.mrb[0].mxu0 %v1755
        %v1949 = vpop.f32.mrb[0].mxu0
        %v1950 = vadd.f32 %v1667, %v1949
        %v1951 = vpop.f32.mrb[0].mxu0
        %1952 = vmatprep.mubr.f32.mxu0 0.0
        %1953 = vmatmul.mubr.f32.gmra.mrb[0].mxu0 %v1757
        %v1954 = vpop.f32.mrb[0].mxu0
        %v1955 = vadd.f32 %v1672, %v1954
        %v1956 = vpop.f32.mrb[0].mxu0
        %1957 = vmatprep.mubr.f32.mxu0 0.0
        %1958 = vmatmul.mubr.f32.gmra.mrb[0].mxu0 %v1715
        %v1959 = vpop.f32.mrb[0].mxu0
        %v1960 = vadd.f32 %v1677, %v1959
        %v1961 = vpop.f32.mrb[0].mxu0
        %1962 = vmatprep.mubr.f32.mxu0 0.0
        %1963 = vmatmul.mubr.f32.gmra.mrb[0].mxu0 %v1759
        %v1964 = vpop.f32.mrb[0].mxu0
        %v1965 = vadd.f32 %v1682, %v1964
        %v1966 = vpop.f32.mrb[0].mxu0
        %1967 = vmatprep.mubr.f32.mxu0 0.0
        %1968 = vmatmul.mubr.f32.gmra.mrb[0].mxu0 %v1761
        %v1969 = vpop.f32.mrb[0].mxu0
        %v1970 = vadd.f32 %v1687, %v1969
        %v1971 = vpop.f32.mrb[0].mxu0
        %1972 = vmatprep.mubr.f32.mxu0 0.0
        %1973 = vmatmul.mubr.f32.gmra.mrb[0].mxu0 %v1763
        %v1974 = vpop.f32.mrb[0].mxu0
        %v1975 = vadd.f32 %v1692, %v1974
        %v1976 = vpop.f32.mrb[0].mxu0
        %1977 = vmatprep.mubr.f32.mxu0 0.0
        %1978 = vmatmul.mubr.f32.gmra.mrb[0].mxu0 %v1765
        %v1979 = vpop.f32.mrb[0].mxu0
        %v1980 = vadd.f32 %v1697, %v1979
        %v1981 = vpop.f32.mrb[0].mxu0
        %1982 = vmatprep.mubr.f32.mxu0 0.0
        %1983 = vmatmul.mubr.f32.gmra.mrb[0].mxu0 %v1767
        %v1984 = vpop.f32.mrb[0].mxu0
        %v1985 = vadd.f32 %v1702, %v1984
        %v1986 = vpop.f32.mrb[0].mxu0
        %1987 = vmatprep.mubr.f32.mxu0 0.0
        %1988 = vmatmul.mubr.f32.gmra.mrb[0].mxu0 %v1769
        %v1989 = vpop.f32.mrb[0].mxu0
        %v1990 = vadd.f32 %v1707, %v1989
        %v1991 = vpop.f32.mrb[0].mxu0
        %1992 = vmatprep.mubr.f32.mxu0 0.0
        %1993 = vmatmul.mubr.f32.gmra.mrb[0].mxu0 %v1771
        %v1994 = vpop.f32.mrb[0].mxu0
        %v1995 = vadd.f32 %v1712, %v1994
        %v1996 = vpop.f32.mrb[0].mxu0
        %1997 = vdwg.mxu0
        %vm1998 = vcmask 1046528
        %v1999 = vrot.slane 0.0, 1
        %v2000 = vsel %vm1998, %v1999, %v1999
        %v2001 = vrot.slane %v1294, 1
        %v2002 = vsel %vm1998, %v2001, %v1999
        %v2003 = vrot.slane %v1295, 1
        %v2004 = vsel %vm1998, %v2003, %v1999
        %v2005 = vrot.slane %v1296, 1
        %v2006 = vsel %vm1998, %v2005, %v1999
        %v2007 = vrot.slane %v1297, 1
        %v2008 = vsel %vm1998, %v2007, %v1999
        %v2009 = vrot.slane %v1298, 1
        %v2010 = vsel %vm1998, %v2009, %v1999
        %v2011 = vrot.slane %v1299, 1
        %v2012 = vsel %vm1998, %v2011, %v1999
        %v2013 = vrot.slane %v1300, 1
        %v2014 = vsel %vm1998, %v2013, %v1999
        %v2015 = vrot.slane %v1302, 1
        %v2016 = vsel %vm1998, %v2015, %v1999
        %v2017 = vrot.slane %v1303, 1
        %v2018 = vsel %vm1998, %v2017, %v1999
        %v2019 = vrot.slane %v1304, 1
        %v2020 = vsel %vm1998, %v2019, %v1999
        %v2021 = vrot.slane %v1305, 1
        %v2022 = vsel %vm1998, %v2021, %v1999
        %v2023 = vrot.slane %v1306, 1
        %v2024 = vsel %vm1998, %v2023, %v1999
        %v2025 = vrot.slane %v1307, 1
        %v2026 = vsel %vm1998, %v2025, %v1999
        %v2027 = vrot.slane %v1308, 1
        %v2028 = vsel %vm1998, %v2027, %v1999
        %v2029 = vrot.slane %v1310, 1
        %v2030 = vsel %vm1998, %v2029, %v1999
        %v2031 = vrot.slane %v1311, 1
        %v2032 = vsel %vm1998, %v2031, %v1999
        %v2033 = vrot.slane %v1312, 1
        %v2034 = vsel %vm1998, %v2033, %v1999
        %v2035 = vrot.slane %v1313, 1
        %v2036 = vsel %vm1998, %v2035, %v1999
        %v2037 = vrot.slane %v1314, 1
        %v2038 = vsel %vm1998, %v2037, %v1999
        %v2039 = vrot.slane %v1315, 1
        %v2040 = vsel %vm1998, %v2039, %v1999
        %v2041 = vrot.slane %v1316, 1
        %v2042 = vsel %vm1998, %v2041, %v1999
        %v2043 = vrot.slane %v1318, 1
        %v2044 = vsel %vm1998, %v2043, %v1999
        %v2045 = vrot.slane %v1319, 1
        %v2046 = vsel %vm1998, %v2045, %v1999
        %v2047 = vrot.slane %v1320, 1
        %v2048 = vsel %vm1998, %v2047, %v1999
        %v2049 = vrot.slane %v1321, 1
        %v2050 = vsel %vm1998, %v2049, %v1999
        %v2051 = vrot.slane %v1322, 1
        %v2052 = vsel %vm1998, %v2051, %v1999
        %v2053 = vrot.slane %v1323, 1
        %v2054 = vsel %vm1998, %v2053, %v1999
        %v2055 = vrot.slane %v1324, 1
        %v2056 = vsel %vm1998, %v2055, %v1999
        %v2057 = vsel %vm278, %v2000, 0
        %v2059 = vsel %vm278, %v2002, 0
        %v2061 = vsel %vm278, %v2004, 0
        %v2063 = vsel %vm278, %v2006, 0
        %v2065 = vsel %vm278, %v2008, 0
        %v2067 = vsel %vm278, %v2010, 0
        %v2069 = vsel %vm278, %v2012, 0
        %v2071 = vsel %vm278, %v2014, 0
        %v2073 = vsel %vm278, %v2016, 0
        %v2075 = vsel %vm278, %v2018, 0
        %v2077 = vsel %vm278, %v2020, 0
        %v2079 = vsel %vm278, %v2022, 0
        %v2081 = vsel %vm278, %v2024, 0
        %v2083 = vsel %vm278, %v2026, 0
        %v2085 = vsel %vm278, %v2028, 0
        %v2087 = vsel %vm278, %v2030, 0
        %v2089 = vsel %vm278, %v2032, 0
        %v2091 = vsel %vm278, %v2034, 0
        %v2093 = vsel %vm278, %v2036, 0
        %v2095 = vsel %vm278, %v2038, 0
        %v2097 = vsel %vm278, %v2040, 0
        %v2099 = vsel %vm278, %v2042, 0
        %v2101 = vsel %vm278, %v2044, 0
        %v2103 = vsel %vm278, %v2046, 0
        %v2105 = vsel %vm278, %v2048, 0
        %v2107 = vsel %vm278, %v2050, 0
        %v2109 = vsel %vm278, %v2052, 0
        %v2111 = vsel %vm278, %v2054, 0
        %v2113 = vsel %vm278, %v2056, 0
        %2115 = vmatprep.subr.mxu0 0.0
        %2116 = vmatpush1.msra.mxu0 %v1330
        %2117 = vmatprep.subr.mxu0 0.0
        %2118 = vmatpush1.msra.mxu0 %v1331
        %2119 = vmatprep.subr.mxu0 0.0
        %2120 = vmatpush1.msra.mxu0 0.0
        %2121 = vmatprep.subr.mxu0 0.0
        %2122 = vmatpush1.msra.mxu0 0.0
        %2123 = vmatprep.subr.mxu0 0.0
        %2124 = vmatpush1.msra.mxu0 0.0
        %2125 = vmatprep.subr.mxu0 0.0
        %2126 = vmatpush1.msra.mxu0 0.0
        %2127 = vmatprep.subr.mxu0 0.0
        %2128 = vmatpush1.msra.mxu0 0.0
        %2129 = vmatprep.subr.mxu0 0.0
        %2130 = vmatpush1.msra.mxu0 0.0
        %2131 = vmatprep.subr.mxu0 0.0
        %2132 = vmatpush1.msra.mxu0 0.0
        %2133 = vmatprep.subr.mxu0 0.0
        %2134 = vmatpush1.msra.mxu0 0.0
        %2135 = vmatprep.subr.mxu0 0.0
        %2136 = vmatpush1.msra.mxu0 0.0
        %2137 = vmatprep.subr.mxu0 0.0
        %2138 = vmatpush1.msra.mxu0 0.0
        %2139 = vmatprep.subr.mxu0 0.0
        %2140 = vmatpush1.msra.mxu0 0.0
        %2141 = vmatprep.subr.mxu0 0.0
        %2142 = vmatpush1.msra.mxu0 0.0
        %2143 = vmatprep.subr.mxu0 0.0
        %2144 = vmatpush1.msra.mxu0 0.0
        %2145 = vmatprep.subr.mxu0 0.0
        %2146 = vmatpush1.msra.mxu0 0.0
        %2147 = vmatprep.subr.mxu0 0.0
        %2148 = vmatpush1.msra.mxu0 0.0
        %2149 = vmatprep.subr.mxu0 0.0
        %2150 = vmatpush1.msra.mxu0 0.0
        %2151 = vmatprep.subr.mxu0 0.0
        %2152 = vmatpush1.msra.mxu0 0.0
        %2153 = vmatprep.subr.mxu0 0.0
        %2154 = vmatpush1.msra.mxu0 0.0
        %2155 = vmatprep.subr.mxu0 0.0
        %2156 = vmatpush1.msra.mxu0 0.0
        %2157 = vmatprep.subr.mxu0 0.0
        %2158 = vmatpush1.msra.mxu0 0.0
        %2159 = vmatprep.subr.mxu0 0.0
        %2160 = vmatpush1.msra.mxu0 0.0
        %2161 = vmatprep.subr.mxu0 0.0
        %2162 = vmatpush1.msra.mxu0 0.0
        %2163 = vmatprep.subr.mxu0 0.0
        %2164 = vmatpush1.msra.mxu0 0.0
        %2165 = vmatprep.subr.mxu0 0.0
        %2166 = vmatpush1.msra.mxu0 0.0
        %2167 = vmatprep.subr.mxu0 0.0
        %2168 = vmatpush1.msra.mxu0 0.0
        %2169 = vmatprep.subr.mxu0 0.0
        %2170 = vmatpush1.msra.mxu0 0.0
        %2171 = vmatprep.subr.mxu0 0.0
        %2172 = vmatpush1.msra.mxu0 0.0
        %2173 = vmatprep.subr.mxu0 0.0
        %2174 = vmatpush1.msra.mxu0 0.0
        %2175 = vmatprep.subr.mxu0 0.0
        %2176 = vmatpush1.msra.mxu0 0.0
        %2177 = vmatprep.subr.mxu0 0.0
        %2178 = vmatpush1.msra.mxu0 0.0
        %2179 = vmatprep.mubr.f32.mxu0 0.0
        %2180 = vmatmul.mubr.f32.gmra.mrb[0].mxu0 %v2057
        %v2181 = vpop.f32.mrb[0].mxu0
        %v2182 = vadd.f32 0.0, %v2181
        %v2183 = vpop.f32.mrb[0].mxu0
        %2184 = vmatprep.mubr.f32.mxu0 0.0
        %2185 = vmatmul.mubr.f32.gmra.mrb[0].mxu0 %v2059
        %v2186 = vpop.f32.mrb[0].mxu0
        %v2187 = vadd.f32 0.0, %v2186
        %v2188 = vpop.f32.mrb[0].mxu0
        %2189 = vmatprep.mubr.f32.mxu0 0.0
        %2190 = vmatmul.mubr.f32.gmra.mrb[0].mxu0 %v2061
        %v2191 = vpop.f32.mrb[0].mxu0
        %v2192 = vadd.f32 0.0, %v2191
        %v2193 = vpop.f32.mrb[0].mxu0
        %2194 = vmatprep.mubr.f32.mxu0 0.0
        %2195 = vmatmul.mubr.f32.gmra.mrb[0].mxu0 %v2063
        %v2196 = vpop.f32.mrb[0].mxu0
        %v2197 = vadd.f32 0.0, %v2196
        %v2198 = vpop.f32.mrb[0].mxu0
        %2199 = vmatprep.mubr.f32.mxu0 0.0
        %2200 = vmatmul.mubr.f32.gmra.mrb[0].mxu0 %v2065
        %v2201 = vpop.f32.mrb[0].mxu0
        %v2202 = vadd.f32 0.0, %v2201
        %v2203 = vpop.f32.mrb[0].mxu0
        %2204 = vmatprep.mubr.f32.mxu0 0.0
        %2205 = vmatmul.mubr.f32.gmra.mrb[0].mxu0 %v2067
        %v2206 = vpop.f32.mrb[0].mxu0
        %v2207 = vadd.f32 0.0, %v2206
        %v2208 = vpop.f32.mrb[0].mxu0
        %2209 = vmatprep.mubr.f32.mxu0 0.0
        %2210 = vmatmul.mubr.f32.gmra.mrb[0].mxu0 %v2069
        %v2211 = vpop.f32.mrb[0].mxu0
        %v2212 = vadd.f32 0.0, %v2211
        %v2213 = vpop.f32.mrb[0].mxu0
        %2214 = vmatprep.mubr.f32.mxu0 0.0
        %2215 = vmatmul.mubr.f32.gmra.mrb[0].mxu0 %v2071
        %v2216 = vpop.f32.mrb[0].mxu0
        %v2217 = vadd.f32 0.0, %v2216
        %v2218 = vpop.f32.mrb[0].mxu0
        %2219 = vmatprep.mubr.f32.mxu0 0.0
        %2220 = vmatmul.mubr.f32.gmra.mrb[0].mxu0 %v2057
        %v2221 = vpop.f32.mrb[0].mxu0
        %v2222 = vadd.f32 0.0, %v2221
        %v2223 = vpop.f32.mrb[0].mxu0
        %2224 = vmatprep.mubr.f32.mxu0 0.0
        %2225 = vmatmul.mubr.f32.gmra.mrb[0].mxu0 %v2073
        %v2226 = vpop.f32.mrb[0].mxu0
        %v2227 = vadd.f32 0.0, %v2226
        %v2228 = vpop.f32.mrb[0].mxu0
        %2229 = vmatprep.mubr.f32.mxu0 0.0
        %2230 = vmatmul.mubr.f32.gmra.mrb[0].mxu0 %v2075
        %v2231 = vpop.f32.mrb[0].mxu0
        %v2232 = vadd.f32 0.0, %v2231
        %v2233 = vpop.f32.mrb[0].mxu0
        %2234 = vmatprep.mubr.f32.mxu0 0.0
        %2235 = vmatmul.mubr.f32.gmra.mrb[0].mxu0 %v2077
        %v2236 = vpop.f32.mrb[0].mxu0
        %v2237 = vadd.f32 0.0, %v2236
        %v2238 = vpop.f32.mrb[0].mxu0
        %2239 = vmatprep.mubr.f32.mxu0 0.0
        %2240 = vmatmul.mubr.f32.gmra.mrb[0].mxu0 %v2079
        %v2241 = vpop.f32.mrb[0].mxu0
        %v2242 = vadd.f32 0.0, %v2241
        %v2243 = vpop.f32.mrb[0].mxu0
        %2244 = vmatprep.mubr.f32.mxu0 0.0
        %2245 = vmatmul.mubr.f32.gmra.mrb[0].mxu0 %v2081
        %v2246 = vpop.f32.mrb[0].mxu0
        %v2247 = vadd.f32 0.0, %v2246
        %v2248 = vpop.f32.mrb[0].mxu0
        %2249 = vmatprep.mubr.f32.mxu0 0.0
        %2250 = vmatmul.mubr.f32.gmra.mrb[0].mxu0 %v2083
        %v2251 = vpop.f32.mrb[0].mxu0
        %v2252 = vadd.f32 0.0, %v2251
        %v2253 = vpop.f32.mrb[0].mxu0
        %2254 = vmatprep.mubr.f32.mxu0 0.0
        %2255 = vmatmul.mubr.f32.gmra.mrb[0].mxu0 %v2085
        %v2256 = vpop.f32.mrb[0].mxu0
        %v2257 = vadd.f32 0.0, %v2256
        %v2258 = vpop.f32.mrb[0].mxu0
        %2259 = vmatprep.mubr.f32.mxu0 0.0
        %2260 = vmatmul.mubr.f32.gmra.mrb[0].mxu0 %v2057
        %v2261 = vpop.f32.mrb[0].mxu0
        %v2262 = vadd.f32 0.0, %v2261
        %v2263 = vpop.f32.mrb[0].mxu0
        %2264 = vmatprep.mubr.f32.mxu0 0.0
        %2265 = vmatmul.mubr.f32.gmra.mrb[0].mxu0 %v2087
        %v2266 = vpop.f32.mrb[0].mxu0
        %v2267 = vadd.f32 0.0, %v2266
        %v2268 = vpop.f32.mrb[0].mxu0
        %2269 = vmatprep.mubr.f32.mxu0 0.0
        %2270 = vmatmul.mubr.f32.gmra.mrb[0].mxu0 %v2089
        %v2271 = vpop.f32.mrb[0].mxu0
        %v2272 = vadd.f32 0.0, %v2271
        %v2273 = vpop.f32.mrb[0].mxu0
        %2274 = vmatprep.mubr.f32.mxu0 0.0
        %2275 = vmatmul.mubr.f32.gmra.mrb[0].mxu0 %v2091
        %v2276 = vpop.f32.mrb[0].mxu0
        %v2277 = vadd.f32 0.0, %v2276
        %v2278 = vpop.f32.mrb[0].mxu0
        %2279 = vmatprep.mubr.f32.mxu0 0.0
        %2280 = vmatmul.mubr.f32.gmra.mrb[0].mxu0 %v2093
        %v2281 = vpop.f32.mrb[0].mxu0
        %v2282 = vadd.f32 0.0, %v2281
        %v2283 = vpop.f32.mrb[0].mxu0
        %2284 = vmatprep.mubr.f32.mxu0 0.0
        %2285 = vmatmul.mubr.f32.gmra.mrb[0].mxu0 %v2095
        %v2286 = vpop.f32.mrb[0].mxu0
        %v2287 = vadd.f32 0.0, %v2286
        %v2288 = vpop.f32.mrb[0].mxu0
        %2289 = vmatprep.mubr.f32.mxu0 0.0
        %2290 = vmatmul.mubr.f32.gmra.mrb[0].mxu0 %v2097
        %v2291 = vpop.f32.mrb[0].mxu0
        %v2292 = vadd.f32 0.0, %v2291
        %v2293 = vpop.f32.mrb[0].mxu0
        %2294 = vmatprep.mubr.f32.mxu0 0.0
        %2295 = vmatmul.mubr.f32.gmra.mrb[0].mxu0 %v2099
        %v2296 = vpop.f32.mrb[0].mxu0
        %v2297 = vadd.f32 0.0, %v2296
        %v2298 = vpop.f32.mrb[0].mxu0
        %2299 = vmatprep.mubr.f32.mxu0 0.0
        %2300 = vmatmul.mubr.f32.gmra.mrb[0].mxu0 %v2057
        %v2301 = vpop.f32.mrb[0].mxu0
        %v2302 = vadd.f32 0.0, %v2301
        %v2303 = vpop.f32.mrb[0].mxu0
        %2304 = vmatprep.mubr.f32.mxu0 0.0
        %2305 = vmatmul.mubr.f32.gmra.mrb[0].mxu0 %v2101
        %v2306 = vpop.f32.mrb[0].mxu0
        %v2307 = vadd.f32 0.0, %v2306
        %v2308 = vpop.f32.mrb[0].mxu0
        %2309 = vmatprep.mubr.f32.mxu0 0.0
        %2310 = vmatmul.mubr.f32.gmra.mrb[0].mxu0 %v2103
        %v2311 = vpop.f32.mrb[0].mxu0
        %v2312 = vadd.f32 0.0, %v2311
        %v2313 = vpop.f32.mrb[0].mxu0
        %2314 = vmatprep.mubr.f32.mxu0 0.0
        %2315 = vmatmul.mubr.f32.gmra.mrb[0].mxu0 %v2105
        %v2316 = vpop.f32.mrb[0].mxu0
        %v2317 = vadd.f32 0.0, %v2316
        %v2318 = vpop.f32.mrb[0].mxu0
        %2319 = vmatprep.mubr.f32.mxu0 0.0
        %2320 = vmatmul.mubr.f32.gmra.mrb[0].mxu0 %v2107
        %v2321 = vpop.f32.mrb[0].mxu0
        %v2322 = vadd.f32 0.0, %v2321
        %v2323 = vpop.f32.mrb[0].mxu0
        %2324 = vmatprep.mubr.f32.mxu0 0.0
        %2325 = vmatmul.mubr.f32.gmra.mrb[0].mxu0 %v2109
        %v2326 = vpop.f32.mrb[0].mxu0
        %v2327 = vadd.f32 0.0, %v2326
        %v2328 = vpop.f32.mrb[0].mxu0
        %2329 = vmatprep.mubr.f32.mxu0 0.0
        %2330 = vmatmul.mubr.f32.gmra.mrb[0].mxu0 %v2111
        %v2331 = vpop.f32.mrb[0].mxu0
        %v2332 = vadd.f32 0.0, %v2331
        %v2333 = vpop.f32.mrb[0].mxu0
        %2334 = vmatprep.mubr.f32.mxu0 0.0
        %2335 = vmatmul.mubr.f32.gmra.mrb[0].mxu0 %v2113
        %v2336 = vpop.f32.mrb[0].mxu0
        %v2337 = vadd.f32 0.0, %v2336
        %v2338 = vpop.f32.mrb[0].mxu0
        %2339 = vdwg.mxu0
        %v2340 = vadd.f32 %v1840, %v2182
        %v2341 = vadd.f32 %v1845, %v2187
        %v2342 = vadd.f32 %v1850, %v2192
        %v2343 = vadd.f32 %v1855, %v2197
        %v2344 = vadd.f32 %v1860, %v2202
        %v2345 = vadd.f32 %v1865, %v2207
        %v2346 = vadd.f32 %v1870, %v2212
        %v2347 = vadd.f32 %v1875, %v2217
        %v2348 = vadd.f32 %v1880, %v2222
        %v2349 = vadd.f32 %v1885, %v2227
        %v2350 = vadd.f32 %v1890, %v2232
        %v2351 = vadd.f32 %v1895, %v2237
        %v2352 = vadd.f32 %v1900, %v2242
        %v2353 = vadd.f32 %v1905, %v2247
        %v2354 = vadd.f32 %v1910, %v2252
        %v2355 = vadd.f32 %v1915, %v2257
        %v2356 = vadd.f32 %v1920, %v2262
        %v2357 = vadd.f32 %v1925, %v2267
        %v2358 = vadd.f32 %v1930, %v2272
        %v2359 = vadd.f32 %v1935, %v2277
        %v2360 = vadd.f32 %v1940, %v2282
        %v2361 = vadd.f32 %v1945, %v2287
        %v2362 = vadd.f32 %v1950, %v2292
        %v2363 = vadd.f32 %v1955, %v2297
        %v2364 = vadd.f32 %v1960, %v2302
        %v2365 = vadd.f32 %v1965, %v2307
        %v2366 = vadd.f32 %v1970, %v2312
        %v2367 = vadd.f32 %v1975, %v2317
        %v2368 = vadd.f32 %v1980, %v2322
        %v2369 = vadd.f32 %v1985, %v2327
        %v2370 = vadd.f32 %v1990, %v2332
        %v2371 = vadd.f32 %v1995, %v2337
        %v2376 = vrot.slane %v1301, 7
        %v2377 = vsel %vm1373, %v1374, %v2376
        %v2378 = vrot.slane %v1309, 7
        %v2379 = vsel %vm1373, %v1374, %v2378
        %v2380 = vrot.slane %v1317, 7
        %v2381 = vsel %vm1373, %v1374, %v2380
        %v2382 = vrot.slane %v1325, 7
        %v2383 = vsel %vm1373, %v1374, %v2382
        %v2384 = vsel %vm278, %v2377, 0
        %v2386 = vsel %vm278, %v2379, 0
        %v2388 = vsel %vm278, %v2381, 0
        %v2390 = vsel %vm278, %v2383, 0
        %2392 = vmatprep.subr.mxu0 0.0
        %2393 = vmatpush1.msra.mxu0 %v1332
        %2394 = vmatprep.subr.mxu0 0.0
        %2395 = vmatpush1.msra.mxu0 %v1333
        %2396 = vmatprep.subr.mxu0 0.0
        %2397 = vmatpush1.msra.mxu0 0.0
        %2398 = vmatprep.subr.mxu0 0.0
        %2399 = vmatpush1.msra.mxu0 0.0
        %2400 = vmatprep.subr.mxu0 0.0
        %2401 = vmatpush1.msra.mxu0 0.0
        %2402 = vmatprep.subr.mxu0 0.0
        %2403 = vmatpush1.msra.mxu0 0.0
        %2404 = vmatprep.subr.mxu0 0.0
        %2405 = vmatpush1.msra.mxu0 0.0
        %2406 = vmatprep.subr.mxu0 0.0
        %2407 = vmatpush1.msra.mxu0 0.0
        %2408 = vmatprep.subr.mxu0 0.0
        %2409 = vmatpush1.msra.mxu0 0.0
        %2410 = vmatprep.subr.mxu0 0.0
        %2411 = vmatpush1.msra.mxu0 0.0
        %2412 = vmatprep.subr.mxu0 0.0
        %2413 = vmatpush1.msra.mxu0 0.0
        %2414 = vmatprep.subr.mxu0 0.0
        %2415 = vmatpush1.msra.mxu0 0.0
        %2416 = vmatprep.subr.mxu0 0.0
        %2417 = vmatpush1.msra.mxu0 0.0
        %2418 = vmatprep.subr.mxu0 0.0
        %2419 = vmatpush1.msra.mxu0 0.0
        %2420 = vmatprep.subr.mxu0 0.0
        %2421 = vmatpush1.msra.mxu0 0.0
        %2422 = vmatprep.subr.mxu0 0.0
        %2423 = vmatpush1.msra.mxu0 0.0
        %2424 = vmatprep.subr.mxu0 0.0
        %2425 = vmatpush1.msra.mxu0 0.0
        %2426 = vmatprep.subr.mxu0 0.0
        %2427 = vmatpush1.msra.mxu0 0.0
        %2428 = vmatprep.subr.mxu0 0.0
        %2429 = vmatpush1.msra.mxu0 0.0
        %2430 = vmatprep.subr.mxu0 0.0
        %2431 = vmatpush1.msra.mxu0 0.0
        %2432 = vmatprep.subr.mxu0 0.0
        %2433 = vmatpush1.msra.mxu0 0.0
        %2434 = vmatprep.subr.mxu0 0.0
        %2435 = vmatpush1.msra.mxu0 0.0
        %2436 = vmatprep.subr.mxu0 0.0
        %2437 = vmatpush1.msra.mxu0 0.0
        %2438 = vmatprep.subr.mxu0 0.0
        %2439 = vmatpush1.msra.mxu0 0.0
        %2440 = vmatprep.subr.mxu0 0.0
        %2441 = vmatpush1.msra.mxu0 0.0
        %2442 = vmatprep.subr.mxu0 0.0
        %2443 = vmatpush1.msra.mxu0 0.0
        %2444 = vmatprep.subr.mxu0 0.0
        %2445 = vmatpush1.msra.mxu0 0.0
        %2446 = vmatprep.subr.mxu0 0.0
        %2447 = vmatpush1.msra.mxu0 0.0
        %2448 = vmatprep.subr.mxu0 0.0
        %2449 = vmatpush1.msra.mxu0 0.0
        %2450 = vmatprep.subr.mxu0 0.0
        %2451 = vmatpush1.msra.mxu0 0.0
        %2452 = vmatprep.subr.mxu0 0.0
        %2453 = vmatpush1.msra.mxu0 0.0
        %2454 = vmatprep.subr.mxu0 0.0
        %2455 = vmatpush1.msra.mxu0 0.0
        %2456 = vmatprep.mubr.f32.mxu0 0.0
        %2457 = vmatmul.mubr.f32.gmra.mrb[0].mxu0 %v1717
        %v2458 = vpop.f32.mrb[0].mxu0
        %v2459 = vadd.f32 0.0, %v2458
        %v2460 = vpop.f32.mrb[0].mxu0
        %2461 = vmatprep.mubr.f32.mxu0 0.0
        %2462 = vmatmul.mubr.f32.gmra.mrb[0].mxu0 %v1719
        %v2463 = vpop.f32.mrb[0].mxu0
        %v2464 = vadd.f32 0.0, %v2463
        %v2465 = vpop.f32.mrb[0].mxu0
        %2466 = vmatprep.mubr.f32.mxu0 0.0
        %2467 = vmatmul.mubr.f32.gmra.mrb[0].mxu0 %v1721
        %v2468 = vpop.f32.mrb[0].mxu0
        %v2469 = vadd.f32 0.0, %v2468
        %v2470 = vpop.f32.mrb[0].mxu0
        %2471 = vmatprep.mubr.f32.mxu0 0.0
        %2472 = vmatmul.mubr.f32.gmra.mrb[0].mxu0 %v1723
        %v2473 = vpop.f32.mrb[0].mxu0
        %v2474 = vadd.f32 0.0, %v2473
        %v2475 = vpop.f32.mrb[0].mxu0
        %2476 = vmatprep.mubr.f32.mxu0 0.0
        %2477 = vmatmul.mubr.f32.gmra.mrb[0].mxu0 %v1725
        %v2478 = vpop.f32.mrb[0].mxu0
        %v2479 = vadd.f32 0.0, %v2478
        %v2480 = vpop.f32.mrb[0].mxu0
        %2481 = vmatprep.mubr.f32.mxu0 0.0
        %2482 = vmatmul.mubr.f32.gmra.mrb[0].mxu0 %v1727
        %v2483 = vpop.f32.mrb[0].mxu0
        %v2484 = vadd.f32 0.0, %v2483
        %v2485 = vpop.f32.mrb[0].mxu0
        %2486 = vmatprep.mubr.f32.mxu0 0.0
        %2487 = vmatmul.mubr.f32.gmra.mrb[0].mxu0 %v1729
        %v2488 = vpop.f32.mrb[0].mxu0
        %v2489 = vadd.f32 0.0, %v2488
        %v2490 = vpop.f32.mrb[0].mxu0
        %2491 = vmatprep.mubr.f32.mxu0 0.0
        %2492 = vmatmul.mubr.f32.gmra.mrb[0].mxu0 %v2384
        %v2493 = vpop.f32.mrb[0].mxu0
        %v2494 = vadd.f32 0.0, %v2493
        %v2495 = vpop.f32.mrb[0].mxu0
        %2496 = vmatprep.mubr.f32.mxu0 0.0
        %2497 = vmatmul.mubr.f32.gmra.mrb[0].mxu0 %v1731
        %v2498 = vpop.f32.mrb[0].mxu0
        %v2499 = vadd.f32 0.0, %v2498
        %v2500 = vpop.f32.mrb[0].mxu0
        %2501 = vmatprep.mubr.f32.mxu0 0.0
        %2502 = vmatmul.mubr.f32.gmra.mrb[0].mxu0 %v1733
        %v2503 = vpop.f32.mrb[0].mxu0
        %v2504 = vadd.f32 0.0, %v2503
        %v2505 = vpop.f32.mrb[0].mxu0
        %2506 = vmatprep.mubr.f32.mxu0 0.0
        %2507 = vmatmul.mubr.f32.gmra.mrb[0].mxu0 %v1735
        %v2508 = vpop.f32.mrb[0].mxu0
        %v2509 = vadd.f32 0.0, %v2508
        %v2510 = vpop.f32.mrb[0].mxu0
        %2511 = vmatprep.mubr.f32.mxu0 0.0
        %2512 = vmatmul.mubr.f32.gmra.mrb[0].mxu0 %v1737
        %v2513 = vpop.f32.mrb[0].mxu0
        %v2514 = vadd.f32 0.0, %v2513
        %v2515 = vpop.f32.mrb[0].mxu0
        %2516 = vmatprep.mubr.f32.mxu0 0.0
        %2517 = vmatmul.mubr.f32.gmra.mrb[0].mxu0 %v1739
        %v2518 = vpop.f32.mrb[0].mxu0
        %v2519 = vadd.f32 0.0, %v2518
        %v2520 = vpop.f32.mrb[0].mxu0
        %2521 = vmatprep.mubr.f32.mxu0 0.0
        %2522 = vmatmul.mubr.f32.gmra.mrb[0].mxu0 %v1741
        %v2523 = vpop.f32.mrb[0].mxu0
        %v2524 = vadd.f32 0.0, %v2523
        %v2525 = vpop.f32.mrb[0].mxu0
        %2526 = vmatprep.mubr.f32.mxu0 0.0
        %2527 = vmatmul.mubr.f32.gmra.mrb[0].mxu0 %v1743
        %v2528 = vpop.f32.mrb[0].mxu0
        %v2529 = vadd.f32 0.0, %v2528
        %v2530 = vpop.f32.mrb[0].mxu0
        %2531 = vmatprep.mubr.f32.mxu0 0.0
        %2532 = vmatmul.mubr.f32.gmra.mrb[0].mxu0 %v2386
        %v2533 = vpop.f32.mrb[0].mxu0
        %v2534 = vadd.f32 0.0, %v2533
        %v2535 = vpop.f32.mrb[0].mxu0
        %2536 = vmatprep.mubr.f32.mxu0 0.0
        %2537 = vmatmul.mubr.f32.gmra.mrb[0].mxu0 %v1745
        %v2538 = vpop.f32.mrb[0].mxu0
        %v2539 = vadd.f32 0.0, %v2538
        %v2540 = vpop.f32.mrb[0].mxu0
        %2541 = vmatprep.mubr.f32.mxu0 0.0
        %2542 = vmatmul.mubr.f32.gmra.mrb[0].mxu0 %v1747
        %v2543 = vpop.f32.mrb[0].mxu0
        %v2544 = vadd.f32 0.0, %v2543
        %v2545 = vpop.f32.mrb[0].mxu0
        %2546 = vmatprep.mubr.f32.mxu0 0.0
        %2547 = vmatmul.mubr.f32.gmra.mrb[0].mxu0 %v1749
        %v2548 = vpop.f32.mrb[0].mxu0
        %v2549 = vadd.f32 0.0, %v2548
        %v2550 = vpop.f32.mrb[0].mxu0
        %2551 = vmatprep.mubr.f32.mxu0 0.0
        %2552 = vmatmul.mubr.f32.gmra.mrb[0].mxu0 %v1751
        %v2553 = vpop.f32.mrb[0].mxu0
        %v2554 = vadd.f32 0.0, %v2553
        %v2555 = vpop.f32.mrb[0].mxu0
        %2556 = vmatprep.mubr.f32.mxu0 0.0
        %2557 = vmatmul.mubr.f32.gmra.mrb[0].mxu0 %v1753
        %v2558 = vpop.f32.mrb[0].mxu0
        %v2559 = vadd.f32 0.0, %v2558
        %v2560 = vpop.f32.mrb[0].mxu0
        %2561 = vmatprep.mubr.f32.mxu0 0.0
        %2562 = vmatmul.mubr.f32.gmra.mrb[0].mxu0 %v1755
        %v2563 = vpop.f32.mrb[0].mxu0
        %v2564 = vadd.f32 0.0, %v2563
        %v2565 = vpop.f32.mrb[0].mxu0
        %2566 = vmatprep.mubr.f32.mxu0 0.0
        %2567 = vmatmul.mubr.f32.gmra.mrb[0].mxu0 %v1757
        %v2568 = vpop.f32.mrb[0].mxu0
        %v2569 = vadd.f32 0.0, %v2568
        %v2570 = vpop.f32.mrb[0].mxu0
        %2571 = vmatprep.mubr.f32.mxu0 0.0
        %2572 = vmatmul.mubr.f32.gmra.mrb[0].mxu0 %v2388
        %v2573 = vpop.f32.mrb[0].mxu0
        %v2574 = vadd.f32 0.0, %v2573
        %v2575 = vpop.f32.mrb[0].mxu0
        %2576 = vmatprep.mubr.f32.mxu0 0.0
        %2577 = vmatmul.mubr.f32.gmra.mrb[0].mxu0 %v1759
        %v2578 = vpop.f32.mrb[0].mxu0
        %v2579 = vadd.f32 0.0, %v2578
        %v2580 = vpop.f32.mrb[0].mxu0
        %2581 = vmatprep.mubr.f32.mxu0 0.0
        %2582 = vmatmul.mubr.f32.gmra.mrb[0].mxu0 %v1761
        %v2583 = vpop.f32.mrb[0].mxu0
        %v2584 = vadd.f32 0.0, %v2583
        %v2585 = vpop.f32.mrb[0].mxu0
        %2586 = vmatprep.mubr.f32.mxu0 0.0
        %2587 = vmatmul.mubr.f32.gmra.mrb[0].mxu0 %v1763
        %v2588 = vpop.f32.mrb[0].mxu0
        %v2589 = vadd.f32 0.0, %v2588
        %v2590 = vpop.f32.mrb[0].mxu0
        %2591 = vmatprep.mubr.f32.mxu0 0.0
        %2592 = vmatmul.mubr.f32.gmra.mrb[0].mxu0 %v1765
        %v2593 = vpop.f32.mrb[0].mxu0
        %v2594 = vadd.f32 0.0, %v2593
        %v2595 = vpop.f32.mrb[0].mxu0
        %2596 = vmatprep.mubr.f32.mxu0 0.0
        %2597 = vmatmul.mubr.f32.gmra.mrb[0].mxu0 %v1767
        %v2598 = vpop.f32.mrb[0].mxu0
        %v2599 = vadd.f32 0.0, %v2598
        %v2600 = vpop.f32.mrb[0].mxu0
        %2601 = vmatprep.mubr.f32.mxu0 0.0
        %2602 = vmatmul.mubr.f32.gmra.mrb[0].mxu0 %v1769
        %v2603 = vpop.f32.mrb[0].mxu0
        %v2604 = vadd.f32 0.0, %v2603
        %v2605 = vpop.f32.mrb[0].mxu0
        %2606 = vmatprep.mubr.f32.mxu0 0.0
        %2607 = vmatmul.mubr.f32.gmra.mrb[0].mxu0 %v1771
        %v2608 = vpop.f32.mrb[0].mxu0
        %v2609 = vadd.f32 0.0, %v2608
        %v2610 = vpop.f32.mrb[0].mxu0
        %2611 = vmatprep.mubr.f32.mxu0 0.0
        %2612 = vmatmul.mubr.f32.gmra.mrb[0].mxu0 %v2390
        %v2613 = vpop.f32.mrb[0].mxu0
        %v2614 = vadd.f32 0.0, %v2613
        %v2615 = vpop.f32.mrb[0].mxu0
        %2616 = vdwg.mxu0
        %v2617 = vadd.f32 %v2340, %v2459
        %v2618 = vadd.f32 %v2341, %v2464
        %v2619 = vadd.f32 %v2342, %v2469
        %v2620 = vadd.f32 %v2343, %v2474
        %v2621 = vadd.f32 %v2344, %v2479
        %v2622 = vadd.f32 %v2345, %v2484
        %v2623 = vadd.f32 %v2346, %v2489
        %v2624 = vadd.f32 %v2347, %v2494
        %v2625 = vadd.f32 %v2348, %v2499
        %v2626 = vadd.f32 %v2349, %v2504
        %v2627 = vadd.f32 %v2350, %v2509
        %v2628 = vadd.f32 %v2351, %v2514
        %v2629 = vadd.f32 %v2352, %v2519
        %v2630 = vadd.f32 %v2353, %v2524
        %v2631 = vadd.f32 %v2354, %v2529
        %v2632 = vadd.f32 %v2355, %v2534
        %v2633 = vadd.f32 %v2356, %v2539
        %v2634 = vadd.f32 %v2357, %v2544
        %v2635 = vadd.f32 %v2358, %v2549
        %v2636 = vadd.f32 %v2359, %v2554
        %v2637 = vadd.f32 %v2360, %v2559
        %v2638 = vadd.f32 %v2361, %v2564
        %v2639 = vadd.f32 %v2362, %v2569
        %v2640 = vadd.f32 %v2363, %v2574
        %v2641 = vadd.f32 %v2364, %v2579
        %v2642 = vadd.f32 %v2365, %v2584
        %v2643 = vadd.f32 %v2366, %v2589
        %v2644 = vadd.f32 %v2367, %v2594
        %v2645 = vadd.f32 %v2368, %v2599
        %v2646 = vadd.f32 %v2369, %v2604
        %v2647 = vadd.f32 %v2370, %v2609
        %v2648 = vadd.f32 %v2371, %v2614
        %v2649 = vsel %vm278, %v1301, 0
        %v2651 = vsel %vm278, %v1309, 0
        %v2653 = vsel %vm278, %v1317, 0
        %v2655 = vsel %vm278, %v1325, 0
        %2657 = vmatprep.subr.mxu0 0.0
        %2658 = vmatpush1.msra.mxu0 %v1334
        %2659 = vmatprep.subr.mxu0 0.0
        %2660 = vmatpush1.msra.mxu0 %v1335
        %2661 = vmatprep.subr.mxu0 0.0
        %2662 = vmatpush1.msra.mxu0 0.0
        %2663 = vmatprep.subr.mxu0 0.0
        %2664 = vmatpush1.msra.mxu0 0.0
        %2665 = vmatprep.subr.mxu0 0.0
        %2666 = vmatpush1.msra.mxu0 0.0
        %2667 = vmatprep.subr.mxu0 0.0
        %2668 = vmatpush1.msra.mxu0 0.0
        %2669 = vmatprep.subr.mxu0 0.0
        %2670 = vmatpush1.msra.mxu0 0.0
        %2671 = vmatprep.subr.mxu0 0.0
        %2672 = vmatpush1.msra.mxu0 0.0
        %2673 = vmatprep.subr.mxu0 0.0
        %2674 = vmatpush1.msra.mxu0 0.0
        %2675 = vmatprep.subr.mxu0 0.0
        %2676 = vmatpush1.msra.mxu0 0.0
        %2677 = vmatprep.subr.mxu0 0.0
        %2678 = vmatpush1.msra.mxu0 0.0
        %2679 = vmatprep.subr.mxu0 0.0
        %2680 = vmatpush1.msra.mxu0 0.0
        %2681 = vmatprep.subr.mxu0 0.0
        %2682 = vmatpush1.msra.mxu0 0.0
        %2683 = vmatprep.subr.mxu0 0.0
        %2684 = vmatpush1.msra.mxu0 0.0
        %2685 = vmatprep.subr.mxu0 0.0
        %2686 = vmatpush1.msra.mxu0 0.0
        %2687 = vmatprep.subr.mxu0 0.0
        %2688 = vmatpush1.msra.mxu0 0.0
        %2689 = vmatprep.subr.mxu0 0.0
        %2690 = vmatpush1.msra.mxu0 0.0
        %2691 = vmatprep.subr.mxu0 0.0
        %2692 = vmatpush1.msra.mxu0 0.0
        %2693 = vmatprep.subr.mxu0 0.0
        %2694 = vmatpush1.msra.mxu0 0.0
        %2695 = vmatprep.subr.mxu0 0.0
        %2696 = vmatpush1.msra.mxu0 0.0
        %2697 = vmatprep.subr.mxu0 0.0
        %2698 = vmatpush1.msra.mxu0 0.0
        %2699 = vmatprep.subr.mxu0 0.0
        %2700 = vmatpush1.msra.mxu0 0.0
        %2701 = vmatprep.subr.mxu0 0.0
        %2702 = vmatpush1.msra.mxu0 0.0
        %2703 = vmatprep.subr.mxu0 0.0
        %2704 = vmatpush1.msra.mxu0 0.0
        %2705 = vmatprep.subr.mxu0 0.0
        %2706 = vmatpush1.msra.mxu0 0.0
        %2707 = vmatprep.subr.mxu0 0.0
        %2708 = vmatpush1.msra.mxu0 0.0
        %2709 = vmatprep.subr.mxu0 0.0
        %2710 = vmatpush1.msra.mxu0 0.0
        %2711 = vmatprep.subr.mxu0 0.0
        %2712 = vmatpush1.msra.mxu0 0.0
        %2713 = vmatprep.subr.mxu0 0.0
        %2714 = vmatpush1.msra.mxu0 0.0
        %2715 = vmatprep.subr.mxu0 0.0
        %2716 = vmatpush1.msra.mxu0 0.0
        %2717 = vmatprep.subr.mxu0 0.0
        %2718 = vmatpush1.msra.mxu0 0.0
        %2719 = vmatprep.subr.mxu0 0.0
        %2720 = vmatpush1.msra.mxu0 0.0
        %2721 = vmatprep.mubr.f32.mxu0 0.0
        %2722 = vmatmul.mubr.f32.gmra.mrb[0].mxu0 %v1434
        %v2723 = vpop.f32.mrb[0].mxu0
        %v2724 = vadd.f32 0.0, %v2723
        %v2725 = vpop.f32.mrb[0].mxu0
        %2726 = vmatprep.mubr.f32.mxu0 0.0
        %2727 = vmatmul.mubr.f32.gmra.mrb[0].mxu0 %v1436
        %v2728 = vpop.f32.mrb[0].mxu0
        %v2729 = vadd.f32 0.0, %v2728
        %v2730 = vpop.f32.mrb[0].mxu0
        %2731 = vmatprep.mubr.f32.mxu0 0.0
        %2732 = vmatmul.mubr.f32.gmra.mrb[0].mxu0 %v1438
        %v2733 = vpop.f32.mrb[0].mxu0
        %v2734 = vadd.f32 0.0, %v2733
        %v2735 = vpop.f32.mrb[0].mxu0
        %2736 = vmatprep.mubr.f32.mxu0 0.0
        %2737 = vmatmul.mubr.f32.gmra.mrb[0].mxu0 %v1440
        %v2738 = vpop.f32.mrb[0].mxu0
        %v2739 = vadd.f32 0.0, %v2738
        %v2740 = vpop.f32.mrb[0].mxu0
        %2741 = vmatprep.mubr.f32.mxu0 0.0
        %2742 = vmatmul.mubr.f32.gmra.mrb[0].mxu0 %v1442
        %v2743 = vpop.f32.mrb[0].mxu0
        %v2744 = vadd.f32 0.0, %v2743
        %v2745 = vpop.f32.mrb[0].mxu0
        %2746 = vmatprep.mubr.f32.mxu0 0.0
        %2747 = vmatmul.mubr.f32.gmra.mrb[0].mxu0 %v1444
        %v2748 = vpop.f32.mrb[0].mxu0
        %v2749 = vadd.f32 0.0, %v2748
        %v2750 = vpop.f32.mrb[0].mxu0
        %2751 = vmatprep.mubr.f32.mxu0 0.0
        %2752 = vmatmul.mubr.f32.gmra.mrb[0].mxu0 %v1446
        %v2753 = vpop.f32.mrb[0].mxu0
        %v2754 = vadd.f32 0.0, %v2753
        %v2755 = vpop.f32.mrb[0].mxu0
        %2756 = vmatprep.mubr.f32.mxu0 0.0
        %2757 = vmatmul.mubr.f32.gmra.mrb[0].mxu0 %v2649
        %v2758 = vpop.f32.mrb[0].mxu0
        %v2759 = vadd.f32 0.0, %v2758
        %v2760 = vpop.f32.mrb[0].mxu0
        %2761 = vmatprep.mubr.f32.mxu0 0.0
        %2762 = vmatmul.mubr.f32.gmra.mrb[0].mxu0 %v1448
        %v2763 = vpop.f32.mrb[0].mxu0
        %v2764 = vadd.f32 0.0, %v2763
        %v2765 = vpop.f32.mrb[0].mxu0
        %2766 = vmatprep.mubr.f32.mxu0 0.0
        %2767 = vmatmul.mubr.f32.gmra.mrb[0].mxu0 %v1450
        %v2768 = vpop.f32.mrb[0].mxu0
        %v2769 = vadd.f32 0.0, %v2768
        %v2770 = vpop.f32.mrb[0].mxu0
        %2771 = vmatprep.mubr.f32.mxu0 0.0
        %2772 = vmatmul.mubr.f32.gmra.mrb[0].mxu0 %v1452
        %v2773 = vpop.f32.mrb[0].mxu0
        %v2774 = vadd.f32 0.0, %v2773
        %v2775 = vpop.f32.mrb[0].mxu0
        %2776 = vmatprep.mubr.f32.mxu0 0.0
        %2777 = vmatmul.mubr.f32.gmra.mrb[0].mxu0 %v1454
        %v2778 = vpop.f32.mrb[0].mxu0
        %v2779 = vadd.f32 0.0, %v2778
        %v2780 = vpop.f32.mrb[0].mxu0
        %2781 = vmatprep.mubr.f32.mxu0 0.0
        %2782 = vmatmul.mubr.f32.gmra.mrb[0].mxu0 %v1456
        %v2783 = vpop.f32.mrb[0].mxu0
        %v2784 = vadd.f32 0.0, %v2783
        %v2785 = vpop.f32.mrb[0].mxu0
        %2786 = vmatprep.mubr.f32.mxu0 0.0
        %2787 = vmatmul.mubr.f32.gmra.mrb[0].mxu0 %v1458
        %v2788 = vpop.f32.mrb[0].mxu0
        %v2789 = vadd.f32 0.0, %v2788
        %v2790 = vpop.f32.mrb[0].mxu0
        %2791 = vmatprep.mubr.f32.mxu0 0.0
        %2792 = vmatmul.mubr.f32.gmra.mrb[0].mxu0 %v1460
        %v2793 = vpop.f32.mrb[0].mxu0
        %v2794 = vadd.f32 0.0, %v2793
        %v2795 = vpop.f32.mrb[0].mxu0
        %2796 = vmatprep.mubr.f32.mxu0 0.0
        %2797 = vmatmul.mubr.f32.gmra.mrb[0].mxu0 %v2651
        %v2798 = vpop.f32.mrb[0].mxu0
        %v2799 = vadd.f32 0.0, %v2798
        %v2800 = vpop.f32.mrb[0].mxu0
        %2801 = vmatprep.mubr.f32.mxu0 0.0
        %2802 = vmatmul.mubr.f32.gmra.mrb[0].mxu0 %v1462
        %v2803 = vpop.f32.mrb[0].mxu0
        %v2804 = vadd.f32 0.0, %v2803
        %v2805 = vpop.f32.mrb[0].mxu0
        %2806 = vmatprep.mubr.f32.mxu0 0.0
        %2807 = vmatmul.mubr.f32.gmra.mrb[0].mxu0 %v1464
        %v2808 = vpop.f32.mrb[0].mxu0
        %v2809 = vadd.f32 0.0, %v2808
        %v2810 = vpop.f32.mrb[0].mxu0
        %2811 = vmatprep.mubr.f32.mxu0 0.0
        %2812 = vmatmul.mubr.f32.gmra.mrb[0].mxu0 %v1466
        %v2813 = vpop.f32.mrb[0].mxu0
        %v2814 = vadd.f32 0.0, %v2813
        %v2815 = vpop.f32.mrb[0].mxu0
        %2816 = vmatprep.mubr.f32.mxu0 0.0
        %2817 = vmatmul.mubr.f32.gmra.mrb[0].mxu0 %v1468
        %v2818 = vpop.f32.mrb[0].mxu0
        %v2819 = vadd.f32 0.0, %v2818
        %v2820 = vpop.f32.mrb[0].mxu0
        %2821 = vmatprep.mubr.f32.mxu0 0.0
        %2822 = vmatmul.mubr.f32.gmra.mrb[0].mxu0 %v1470
        %v2823 = vpop.f32.mrb[0].mxu0
        %v2824 = vadd.f32 0.0, %v2823
        %v2825 = vpop.f32.mrb[0].mxu0
        %2826 = vmatprep.mubr.f32.mxu0 0.0
        %2827 = vmatmul.mubr.f32.gmra.mrb[0].mxu0 %v1472
        %v2828 = vpop.f32.mrb[0].mxu0
        %v2829 = vadd.f32 0.0, %v2828
        %v2830 = vpop.f32.mrb[0].mxu0
        %2831 = vmatprep.mubr.f32.mxu0 0.0
        %2832 = vmatmul.mubr.f32.gmra.mrb[0].mxu0 %v1474
        %v2833 = vpop.f32.mrb[0].mxu0
        %v2834 = vadd.f32 0.0, %v2833
        %v2835 = vpop.f32.mrb[0].mxu0
        %2836 = vmatprep.mubr.f32.mxu0 0.0
        %2837 = vmatmul.mubr.f32.gmra.mrb[0].mxu0 %v2653
        %v2838 = vpop.f32.mrb[0].mxu0
        %v2839 = vadd.f32 0.0, %v2838
        %v2840 = vpop.f32.mrb[0].mxu0
        %2841 = vmatprep.mubr.f32.mxu0 0.0
        %2842 = vmatmul.mubr.f32.gmra.mrb[0].mxu0 %v1476
        %v2843 = vpop.f32.mrb[0].mxu0
        %v2844 = vadd.f32 0.0, %v2843
        %v2845 = vpop.f32.mrb[0].mxu0
        %2846 = vmatprep.mubr.f32.mxu0 0.0
        %2847 = vmatmul.mubr.f32.gmra.mrb[0].mxu0 %v1478
        %v2848 = vpop.f32.mrb[0].mxu0
        %v2849 = vadd.f32 0.0, %v2848
        %v2850 = vpop.f32.mrb[0].mxu0
        %2851 = vmatprep.mubr.f32.mxu0 0.0
        %2852 = vmatmul.mubr.f32.gmra.mrb[0].mxu0 %v1480
        %v2853 = vpop.f32.mrb[0].mxu0
        %v2854 = vadd.f32 0.0, %v2853
        %v2855 = vpop.f32.mrb[0].mxu0
        %2856 = vmatprep.mubr.f32.mxu0 0.0
        %2857 = vmatmul.mubr.f32.gmra.mrb[0].mxu0 %v1482
        %v2858 = vpop.f32.mrb[0].mxu0
        %v2859 = vadd.f32 0.0, %v2858
        %v2860 = vpop.f32.mrb[0].mxu0
        %2861 = vmatprep.mubr.f32.mxu0 0.0
        %2862 = vmatmul.mubr.f32.gmra.mrb[0].mxu0 %v1484
        %v2863 = vpop.f32.mrb[0].mxu0
        %v2864 = vadd.f32 0.0, %v2863
        %v2865 = vpop.f32.mrb[0].mxu0
        %2866 = vmatprep.mubr.f32.mxu0 0.0
        %2867 = vmatmul.mubr.f32.gmra.mrb[0].mxu0 %v1486
        %v2868 = vpop.f32.mrb[0].mxu0
        %v2869 = vadd.f32 0.0, %v2868
        %v2870 = vpop.f32.mrb[0].mxu0
        %2871 = vmatprep.mubr.f32.mxu0 0.0
        %2872 = vmatmul.mubr.f32.gmra.mrb[0].mxu0 %v1488
        %v2873 = vpop.f32.mrb[0].mxu0
        %v2874 = vadd.f32 0.0, %v2873
        %v2875 = vpop.f32.mrb[0].mxu0
        %2876 = vmatprep.mubr.f32.mxu0 0.0
        %2877 = vmatmul.mubr.f32.gmra.mrb[0].mxu0 %v2655
        %v2878 = vpop.f32.mrb[0].mxu0
        %v2879 = vadd.f32 0.0, %v2878
        %v2880 = vpop.f32.mrb[0].mxu0
        %2881 = vdwg.mxu0
        %v2882 = vadd.f32 %v2617, %v2724
        %v2883 = vadd.f32 %v2618, %v2729
        %v2884 = vadd.f32 %v2619, %v2734
        %v2885 = vadd.f32 %v2620, %v2739
        %v2886 = vadd.f32 %v2621, %v2744
        %v2887 = vadd.f32 %v2622, %v2749
        %v2888 = vadd.f32 %v2623, %v2754
        %v2889 = vadd.f32 %v2624, %v2759
        %v2890 = vadd.f32 %v2625, %v2764
        %v2891 = vadd.f32 %v2626, %v2769
        %v2892 = vadd.f32 %v2627, %v2774
        %v2893 = vadd.f32 %v2628, %v2779
        %v2894 = vadd.f32 %v2629, %v2784
        %v2895 = vadd.f32 %v2630, %v2789
        %v2896 = vadd.f32 %v2631, %v2794
        %v2897 = vadd.f32 %v2632, %v2799
        %v2898 = vadd.f32 %v2633, %v2804
        %v2899 = vadd.f32 %v2634, %v2809
        %v2900 = vadd.f32 %v2635, %v2814
        %v2901 = vadd.f32 %v2636, %v2819
        %v2902 = vadd.f32 %v2637, %v2824
        %v2903 = vadd.f32 %v2638, %v2829
        %v2904 = vadd.f32 %v2639, %v2834
        %v2905 = vadd.f32 %v2640, %v2839
        %v2906 = vadd.f32 %v2641, %v2844
        %v2907 = vadd.f32 %v2642, %v2849
        %v2908 = vadd.f32 %v2643, %v2854
        %v2909 = vadd.f32 %v2644, %v2859
        %v2910 = vadd.f32 %v2645, %v2864
        %v2911 = vadd.f32 %v2646, %v2869
        %v2912 = vadd.f32 %v2647, %v2874
        %v2913 = vadd.f32 %v2648, %v2879
        %v2914 = vrot.slane %v1301, 1
        %v2915 = vsel %vm1998, %v2914, %v1999
        %v2916 = vrot.slane %v1309, 1
        %v2917 = vsel %vm1998, %v2916, %v1999
        %v2918 = vrot.slane %v1317, 1
        %v2919 = vsel %vm1998, %v2918, %v1999
        %v2920 = vrot.slane %v1325, 1
        %v2921 = vsel %vm1998, %v2920, %v1999
        %v2922 = vsel %vm278, %v2915, 0
        %v2924 = vsel %vm278, %v2917, 0
        %v2926 = vsel %vm278, %v2919, 0
        %v2928 = vsel %vm278, %v2921, 0
        %2930 = vmatprep.subr.mxu0 0.0
        %2931 = vmatpush1.msra.mxu0 %v1336
        %2932 = vmatprep.subr.mxu0 0.0
        %2933 = vmatpush1.msra.mxu0 %v1337
        %2934 = vmatprep.subr.mxu0 0.0
        %2935 = vmatpush1.msra.mxu0 0.0
        %2936 = vmatprep.subr.mxu0 0.0
        %2937 = vmatpush1.msra.mxu0 0.0
        %2938 = vmatprep.subr.mxu0 0.0
        %2939 = vmatpush1.msra.mxu0 0.0
        %2940 = vmatprep.subr.mxu0 0.0
        %2941 = vmatpush1.msra.mxu0 0.0
        %2942 = vmatprep.subr.mxu0 0.0
        %2943 = vmatpush1.msra.mxu0 0.0
        %2944 = vmatprep.subr.mxu0 0.0
        %2945 = vmatpush1.msra.mxu0 0.0
        %2946 = vmatprep.subr.mxu0 0.0
        %2947 = vmatpush1.msra.mxu0 0.0
        %2948 = vmatprep.subr.mxu0 0.0
        %2949 = vmatpush1.msra.mxu0 0.0
        %2950 = vmatprep.subr.mxu0 0.0
        %2951 = vmatpush1.msra.mxu0 0.0
        %2952 = vmatprep.subr.mxu0 0.0
        %2953 = vmatpush1.msra.mxu0 0.0
        %2954 = vmatprep.subr.mxu0 0.0
        %2955 = vmatpush1.msra.mxu0 0.0
        %2956 = vmatprep.subr.mxu0 0.0
        %2957 = vmatpush1.msra.mxu0 0.0
        %2958 = vmatprep.subr.mxu0 0.0
        %2959 = vmatpush1.msra.mxu0 0.0
        %2960 = vmatprep.subr.mxu0 0.0
        %2961 = vmatpush1.msra.mxu0 0.0
        %2962 = vmatprep.subr.mxu0 0.0
        %2963 = vmatpush1.msra.mxu0 0.0
        %2964 = vmatprep.subr.mxu0 0.0
        %2965 = vmatpush1.msra.mxu0 0.0
        %2966 = vmatprep.subr.mxu0 0.0
        %2967 = vmatpush1.msra.mxu0 0.0
        %2968 = vmatprep.subr.mxu0 0.0
        %2969 = vmatpush1.msra.mxu0 0.0
        %2970 = vmatprep.subr.mxu0 0.0
        %2971 = vmatpush1.msra.mxu0 0.0
        %2972 = vmatprep.subr.mxu0 0.0
        %2973 = vmatpush1.msra.mxu0 0.0
        %2974 = vmatprep.subr.mxu0 0.0
        %2975 = vmatpush1.msra.mxu0 0.0
        %2976 = vmatprep.subr.mxu0 0.0
        %2977 = vmatpush1.msra.mxu0 0.0
        %2978 = vmatprep.subr.mxu0 0.0
        %2979 = vmatpush1.msra.mxu0 0.0
        %2980 = vmatprep.subr.mxu0 0.0
        %2981 = vmatpush1.msra.mxu0 0.0
        %2982 = vmatprep.subr.mxu0 0.0
        %2983 = vmatpush1.msra.mxu0 0.0
        %2984 = vmatprep.subr.mxu0 0.0
        %2985 = vmatpush1.msra.mxu0 0.0
        %2986 = vmatprep.subr.mxu0 0.0
        %2987 = vmatpush1.msra.mxu0 0.0
        %2988 = vmatprep.subr.mxu0 0.0
        %2989 = vmatpush1.msra.mxu0 0.0
        %2990 = vmatprep.subr.mxu0 0.0
        %2991 = vmatpush1.msra.mxu0 0.0
        %2992 = vmatprep.subr.mxu0 0.0
        %2993 = vmatpush1.msra.mxu0 0.0
        %2994 = vmatprep.mubr.f32.mxu0 0.0
        %2995 = vmatmul.mubr.f32.gmra.mrb[0].mxu0 %v2059
        %v2996 = vpop.f32.mrb[0].mxu0
        %v2997 = vadd.f32 0.0, %v2996
        %v2998 = vpop.f32.mrb[0].mxu0
        %2999 = vmatprep.mubr.f32.mxu0 0.0
        %3000 = vmatmul.mubr.f32.gmra.mrb[0].mxu0 %v2061
        %v3001 = vpop.f32.mrb[0].mxu0
        %v3002 = vadd.f32 0.0, %v3001
        %v3003 = vpop.f32.mrb[0].mxu0
        %3004 = vmatprep.mubr.f32.mxu0 0.0
        %3005 = vmatmul.mubr.f32.gmra.mrb[0].mxu0 %v2063
        %v3006 = vpop.f32.mrb[0].mxu0
        %v3007 = vadd.f32 0.0, %v3006
        %v3008 = vpop.f32.mrb[0].mxu0
        %3009 = vmatprep.mubr.f32.mxu0 0.0
        %3010 = vmatmul.mubr.f32.gmra.mrb[0].mxu0 %v2065
        %v3011 = vpop.f32.mrb[0].mxu0
        %v3012 = vadd.f32 0.0, %v3011
        %v3013 = vpop.f32.mrb[0].mxu0
        %3014 = vmatprep.mubr.f32.mxu0 0.0
        %3015 = vmatmul.mubr.f32.gmra.mrb[0].mxu0 %v2067
        %v3016 = vpop.f32.mrb[0].mxu0
        %v3017 = vadd.f32 0.0, %v3016
        %v3018 = vpop.f32.mrb[0].mxu0
        %3019 = vmatprep.mubr.f32.mxu0 0.0
        %3020 = vmatmul.mubr.f32.gmra.mrb[0].mxu0 %v2069
        %v3021 = vpop.f32.mrb[0].mxu0
        %v3022 = vadd.f32 0.0, %v3021
        %v3023 = vpop.f32.mrb[0].mxu0
        %3024 = vmatprep.mubr.f32.mxu0 0.0
        %3025 = vmatmul.mubr.f32.gmra.mrb[0].mxu0 %v2071
        %v3026 = vpop.f32.mrb[0].mxu0
        %v3027 = vadd.f32 0.0, %v3026
        %v3028 = vpop.f32.mrb[0].mxu0
        %3029 = vmatprep.mubr.f32.mxu0 0.0
        %3030 = vmatmul.mubr.f32.gmra.mrb[0].mxu0 %v2922
        %v3031 = vpop.f32.mrb[0].mxu0
        %v3032 = vadd.f32 0.0, %v3031
        %v3033 = vpop.f32.mrb[0].mxu0
        %3034 = vmatprep.mubr.f32.mxu0 0.0
        %3035 = vmatmul.mubr.f32.gmra.mrb[0].mxu0 %v2073
        %v3036 = vpop.f32.mrb[0].mxu0
        %v3037 = vadd.f32 0.0, %v3036
        %v3038 = vpop.f32.mrb[0].mxu0
        %3039 = vmatprep.mubr.f32.mxu0 0.0
        %3040 = vmatmul.mubr.f32.gmra.mrb[0].mxu0 %v2075
        %v3041 = vpop.f32.mrb[0].mxu0
        %v3042 = vadd.f32 0.0, %v3041
        %v3043 = vpop.f32.mrb[0].mxu0
        %3044 = vmatprep.mubr.f32.mxu0 0.0
        %3045 = vmatmul.mubr.f32.gmra.mrb[0].mxu0 %v2077
        %v3046 = vpop.f32.mrb[0].mxu0
        %v3047 = vadd.f32 0.0, %v3046
        %v3048 = vpop.f32.mrb[0].mxu0
        %3049 = vmatprep.mubr.f32.mxu0 0.0
        %3050 = vmatmul.mubr.f32.gmra.mrb[0].mxu0 %v2079
        %v3051 = vpop.f32.mrb[0].mxu0
        %v3052 = vadd.f32 0.0, %v3051
        %v3053 = vpop.f32.mrb[0].mxu0
        %3054 = vmatprep.mubr.f32.mxu0 0.0
        %3055 = vmatmul.mubr.f32.gmra.mrb[0].mxu0 %v2081
        %v3056 = vpop.f32.mrb[0].mxu0
        %v3057 = vadd.f32 0.0, %v3056
        %v3058 = vpop.f32.mrb[0].mxu0
        %3059 = vmatprep.mubr.f32.mxu0 0.0
        %3060 = vmatmul.mubr.f32.gmra.mrb[0].mxu0 %v2083
        %v3061 = vpop.f32.mrb[0].mxu0
        %v3062 = vadd.f32 0.0, %v3061
        %v3063 = vpop.f32.mrb[0].mxu0
        %3064 = vmatprep.mubr.f32.mxu0 0.0
        %3065 = vmatmul.mubr.f32.gmra.mrb[0].mxu0 %v2085
        %v3066 = vpop.f32.mrb[0].mxu0
        %v3067 = vadd.f32 0.0, %v3066
        %v3068 = vpop.f32.mrb[0].mxu0
        %3069 = vmatprep.mubr.f32.mxu0 0.0
        %3070 = vmatmul.mubr.f32.gmra.mrb[0].mxu0 %v2924
        %v3071 = vpop.f32.mrb[0].mxu0
        %v3072 = vadd.f32 0.0, %v3071
        %v3073 = vpop.f32.mrb[0].mxu0
        %3074 = vmatprep.mubr.f32.mxu0 0.0
        %3075 = vmatmul.mubr.f32.gmra.mrb[0].mxu0 %v2087
        %v3076 = vpop.f32.mrb[0].mxu0
        %v3077 = vadd.f32 0.0, %v3076
        %v3078 = vpop.f32.mrb[0].mxu0
        %3079 = vmatprep.mubr.f32.mxu0 0.0
        %3080 = vmatmul.mubr.f32.gmra.mrb[0].mxu0 %v2089
        %v3081 = vpop.f32.mrb[0].mxu0
        %v3082 = vadd.f32 0.0, %v3081
        %v3083 = vpop.f32.mrb[0].mxu0
        %3084 = vmatprep.mubr.f32.mxu0 0.0
        %3085 = vmatmul.mubr.f32.gmra.mrb[0].mxu0 %v2091
        %v3086 = vpop.f32.mrb[0].mxu0
        %v3087 = vadd.f32 0.0, %v3086
        %v3088 = vpop.f32.mrb[0].mxu0
        %3089 = vmatprep.mubr.f32.mxu0 0.0
        %3090 = vmatmul.mubr.f32.gmra.mrb[0].mxu0 %v2093
        %v3091 = vpop.f32.mrb[0].mxu0
        %v3092 = vadd.f32 0.0, %v3091
        %v3093 = vpop.f32.mrb[0].mxu0
        %3094 = vmatprep.mubr.f32.mxu0 0.0
        %3095 = vmatmul.mubr.f32.gmra.mrb[0].mxu0 %v2095
        %v3096 = vpop.f32.mrb[0].mxu0
        %v3097 = vadd.f32 0.0, %v3096
        %v3098 = vpop.f32.mrb[0].mxu0
        %3099 = vmatprep.mubr.f32.mxu0 0.0
        %3100 = vmatmul.mubr.f32.gmra.mrb[0].mxu0 %v2097
        %v3101 = vpop.f32.mrb[0].mxu0
        %v3102 = vadd.f32 0.0, %v3101
        %v3103 = vpop.f32.mrb[0].mxu0
        %3104 = vmatprep.mubr.f32.mxu0 0.0
        %3105 = vmatmul.mubr.f32.gmra.mrb[0].mxu0 %v2099
        %v3106 = vpop.f32.mrb[0].mxu0
        %v3107 = vadd.f32 0.0, %v3106
        %v3108 = vpop.f32.mrb[0].mxu0
        %3109 = vmatprep.mubr.f32.mxu0 0.0
        %3110 = vmatmul.mubr.f32.gmra.mrb[0].mxu0 %v2926
        %v3111 = vpop.f32.mrb[0].mxu0
        %v3112 = vadd.f32 0.0, %v3111
        %v3113 = vpop.f32.mrb[0].mxu0
        %3114 = vmatprep.mubr.f32.mxu0 0.0
        %3115 = vmatmul.mubr.f32.gmra.mrb[0].mxu0 %v2101
        %v3116 = vpop.f32.mrb[0].mxu0
        %v3117 = vadd.f32 0.0, %v3116
        %v3118 = vpop.f32.mrb[0].mxu0
        %3119 = vmatprep.mubr.f32.mxu0 0.0
        %3120 = vmatmul.mubr.f32.gmra.mrb[0].mxu0 %v2103
        %v3121 = vpop.f32.mrb[0].mxu0
        %v3122 = vadd.f32 0.0, %v3121
        %v3123 = vpop.f32.mrb[0].mxu0
        %3124 = vmatprep.mubr.f32.mxu0 0.0
        %3125 = vmatmul.mubr.f32.gmra.mrb[0].mxu0 %v2105
        %v3126 = vpop.f32.mrb[0].mxu0
        %v3127 = vadd.f32 0.0, %v3126
        %v3128 = vpop.f32.mrb[0].mxu0
        %3129 = vmatprep.mubr.f32.mxu0 0.0
        %3130 = vmatmul.mubr.f32.gmra.mrb[0].mxu0 %v2107
        %v3131 = vpop.f32.mrb[0].mxu0
        %v3132 = vadd.f32 0.0, %v3131
        %v3133 = vpop.f32.mrb[0].mxu0
        %3134 = vmatprep.mubr.f32.mxu0 0.0
        %3135 = vmatmul.mubr.f32.gmra.mrb[0].mxu0 %v2109
        %v3136 = vpop.f32.mrb[0].mxu0
        %v3137 = vadd.f32 0.0, %v3136
        %v3138 = vpop.f32.mrb[0].mxu0
        %3139 = vmatprep.mubr.f32.mxu0 0.0
        %3140 = vmatmul.mubr.f32.gmra.mrb[0].mxu0 %v2111
        %v3141 = vpop.f32.mrb[0].mxu0
        %v3142 = vadd.f32 0.0, %v3141
        %v3143 = vpop.f32.mrb[0].mxu0
        %3144 = vmatprep.mubr.f32.mxu0 0.0
        %3145 = vmatmul.mubr.f32.gmra.mrb[0].mxu0 %v2113
        %v3146 = vpop.f32.mrb[0].mxu0
        %v3147 = vadd.f32 0.0, %v3146
        %v3148 = vpop.f32.mrb[0].mxu0
        %3149 = vmatprep.mubr.f32.mxu0 0.0
        %3150 = vmatmul.mubr.f32.gmra.mrb[0].mxu0 %v2928
        %v3151 = vpop.f32.mrb[0].mxu0
        %v3152 = vadd.f32 0.0, %v3151
        %v3153 = vpop.f32.mrb[0].mxu0
        %3154 = vdwg.mxu0
        %v3155 = vadd.f32 %v2882, %v2997
        %v3156 = vadd.f32 %v2883, %v3002
        %v3157 = vadd.f32 %v2884, %v3007
        %v3158 = vadd.f32 %v2885, %v3012
        %v3159 = vadd.f32 %v2886, %v3017
        %v3160 = vadd.f32 %v2887, %v3022
        %v3161 = vadd.f32 %v2888, %v3027
        %v3162 = vadd.f32 %v2889, %v3032
        %v3163 = vadd.f32 %v2890, %v3037
        %v3164 = vadd.f32 %v2891, %v3042
        %v3165 = vadd.f32 %v2892, %v3047
        %v3166 = vadd.f32 %v2893, %v3052
        %v3167 = vadd.f32 %v2894, %v3057
        %v3168 = vadd.f32 %v2895, %v3062
        %v3169 = vadd.f32 %v2896, %v3067
        %v3170 = vadd.f32 %v2897, %v3072
        %v3171 = vadd.f32 %v2898, %v3077
        %v3172 = vadd.f32 %v2899, %v3082
        %v3173 = vadd.f32 %v2900, %v3087
        %v3174 = vadd.f32 %v2901, %v3092
        %v3175 = vadd.f32 %v2902, %v3097
        %v3176 = vadd.f32 %v2903, %v3102
        %v3177 = vadd.f32 %v2904, %v3107
        %v3178 = vadd.f32 %v2905, %v3112
        %v3179 = vadd.f32 %v2906, %v3117
        %v3180 = vadd.f32 %v2907, %v3122
        %v3181 = vadd.f32 %v2908, %v3127
        %v3182 = vadd.f32 %v2909, %v3132
        %v3183 = vadd.f32 %v2910, %v3137
        %v3184 = vadd.f32 %v2911, %v3142
        %v3185 = vadd.f32 %v2912, %v3147
        %v3186 = vadd.f32 %v2913, %v3152
        %3187 = vmatprep.subr.mxu0 0.0
        %3188 = vmatpush1.msra.mxu0 %v1338
        %3189 = vmatprep.subr.mxu0 0.0
        %3190 = vmatpush1.msra.mxu0 %v1339
        %3191 = vmatprep.subr.mxu0 0.0
        %3192 = vmatpush1.msra.mxu0 0.0
        %3193 = vmatprep.subr.mxu0 0.0
        %3194 = vmatpush1.msra.mxu0 0.0
        %3195 = vmatprep.subr.mxu0 0.0
        %3196 = vmatpush1.msra.mxu0 0.0
        %3197 = vmatprep.subr.mxu0 0.0
        %3198 = vmatpush1.msra.mxu0 0.0
        %3199 = vmatprep.subr.mxu0 0.0
        %3200 = vmatpush1.msra.mxu0 0.0
        %3201 = vmatprep.subr.mxu0 0.0
        %3202 = vmatpush1.msra.mxu0 0.0
        %3203 = vmatprep.subr.mxu0 0.0
        %3204 = vmatpush1.msra.mxu0 0.0
        %3205 = vmatprep.subr.mxu0 0.0
        %3206 = vmatpush1.msra.mxu0 0.0
        %3207 = vmatprep.subr.mxu0 0.0
        %3208 = vmatpush1.msra.mxu0 0.0
        %3209 = vmatprep.subr.mxu0 0.0
        %3210 = vmatpush1.msra.mxu0 0.0
        %3211 = vmatprep.subr.mxu0 0.0
        %3212 = vmatpush1.msra.mxu0 0.0
        %3213 = vmatprep.subr.mxu0 0.0
        %3214 = vmatpush1.msra.mxu0 0.0
        %3215 = vmatprep.subr.mxu0 0.0
        %3216 = vmatpush1.msra.mxu0 0.0
        %3217 = vmatprep.subr.mxu0 0.0
        %3218 = vmatpush1.msra.mxu0 0.0
        %3219 = vmatprep.subr.mxu0 0.0
        %3220 = vmatpush1.msra.mxu0 0.0
        %3221 = vmatprep.subr.mxu0 0.0
        %3222 = vmatpush1.msra.mxu0 0.0
        %3223 = vmatprep.subr.mxu0 0.0
        %3224 = vmatpush1.msra.mxu0 0.0
        %3225 = vmatprep.subr.mxu0 0.0
        %3226 = vmatpush1.msra.mxu0 0.0
        %3227 = vmatprep.subr.mxu0 0.0
        %3228 = vmatpush1.msra.mxu0 0.0
        %3229 = vmatprep.subr.mxu0 0.0
        %3230 = vmatpush1.msra.mxu0 0.0
        %3231 = vmatprep.subr.mxu0 0.0
        %3232 = vmatpush1.msra.mxu0 0.0
        %3233 = vmatprep.subr.mxu0 0.0
        %3234 = vmatpush1.msra.mxu0 0.0
        %3235 = vmatprep.subr.mxu0 0.0
        %3236 = vmatpush1.msra.mxu0 0.0
        %3237 = vmatprep.subr.mxu0 0.0
        %3238 = vmatpush1.msra.mxu0 0.0
        %3239 = vmatprep.subr.mxu0 0.0
        %3240 = vmatpush1.msra.mxu0 0.0
        %3241 = vmatprep.subr.mxu0 0.0
        %3242 = vmatpush1.msra.mxu0 0.0
        %3243 = vmatprep.subr.mxu0 0.0
        %3244 = vmatpush1.msra.mxu0 0.0
        %3245 = vmatprep.subr.mxu0 0.0
        %3246 = vmatpush1.msra.mxu0 0.0
        %3247 = vmatprep.subr.mxu0 0.0
        %3248 = vmatpush1.msra.mxu0 0.0
        %3249 = vmatprep.subr.mxu0 0.0
        %3250 = vmatpush1.msra.mxu0 0.0
        %3251 = vmatprep.mubr.f32.mxu0 0.0
        %3252 = vmatmul.mubr.f32.gmra.mrb[0].mxu0 %v1719
        %v3253 = vpop.f32.mrb[0].mxu0
        %v3254 = vadd.f32 0.0, %v3253
        %v3255 = vpop.f32.mrb[0].mxu0
        %3256 = vmatprep.mubr.f32.mxu0 0.0
        %3257 = vmatmul.mubr.f32.gmra.mrb[0].mxu0 %v1721
        %v3258 = vpop.f32.mrb[0].mxu0
        %v3259 = vadd.f32 0.0, %v3258
        %v3260 = vpop.f32.mrb[0].mxu0
        %3261 = vmatprep.mubr.f32.mxu0 0.0
        %3262 = vmatmul.mubr.f32.gmra.mrb[0].mxu0 %v1723
        %v3263 = vpop.f32.mrb[0].mxu0
        %v3264 = vadd.f32 0.0, %v3263
        %v3265 = vpop.f32.mrb[0].mxu0
        %3266 = vmatprep.mubr.f32.mxu0 0.0
        %3267 = vmatmul.mubr.f32.gmra.mrb[0].mxu0 %v1725
        %v3268 = vpop.f32.mrb[0].mxu0
        %v3269 = vadd.f32 0.0, %v3268
        %v3270 = vpop.f32.mrb[0].mxu0
        %3271 = vmatprep.mubr.f32.mxu0 0.0
        %3272 = vmatmul.mubr.f32.gmra.mrb[0].mxu0 %v1727
        %v3273 = vpop.f32.mrb[0].mxu0
        %v3274 = vadd.f32 0.0, %v3273
        %v3275 = vpop.f32.mrb[0].mxu0
        %3276 = vmatprep.mubr.f32.mxu0 0.0
        %3277 = vmatmul.mubr.f32.gmra.mrb[0].mxu0 %v1729
        %v3278 = vpop.f32.mrb[0].mxu0
        %v3279 = vadd.f32 0.0, %v3278
        %v3280 = vpop.f32.mrb[0].mxu0
        %3281 = vmatprep.mubr.f32.mxu0 0.0
        %3282 = vmatmul.mubr.f32.gmra.mrb[0].mxu0 %v2384
        %v3283 = vpop.f32.mrb[0].mxu0
        %v3284 = vadd.f32 0.0, %v3283
        %v3285 = vpop.f32.mrb[0].mxu0
        %3286 = vmatprep.mubr.f32.mxu0 0.0
        %3287 = vmatmul.mubr.f32.gmra.mrb[0].mxu0 %v1715
        %v3288 = vpop.f32.mrb[0].mxu0
        %v3289 = vadd.f32 0.0, %v3288
        %v3290 = vpop.f32.mrb[0].mxu0
        %3291 = vmatprep.mubr.f32.mxu0 0.0
        %3292 = vmatmul.mubr.f32.gmra.mrb[0].mxu0 %v1733
        %v3293 = vpop.f32.mrb[0].mxu0
        %v3294 = vadd.f32 0.0, %v3293
        %v3295 = vpop.f32.mrb[0].mxu0
        %3296 = vmatprep.mubr.f32.mxu0 0.0
        %3297 = vmatmul.mubr.f32.gmra.mrb[0].mxu0 %v1735
        %v3298 = vpop.f32.mrb[0].mxu0
        %v3299 = vadd.f32 0.0, %v3298
        %v3300 = vpop.f32.mrb[0].mxu0
        %3301 = vmatprep.mubr.f32.mxu0 0.0
        %3302 = vmatmul.mubr.f32.gmra.mrb[0].mxu0 %v1737
        %v3303 = vpop.f32.mrb[0].mxu0
        %v3304 = vadd.f32 0.0, %v3303
        %v3305 = vpop.f32.mrb[0].mxu0
        %3306 = vmatprep.mubr.f32.mxu0 0.0
        %3307 = vmatmul.mubr.f32.gmra.mrb[0].mxu0 %v1739
        %v3308 = vpop.f32.mrb[0].mxu0
        %v3309 = vadd.f32 0.0, %v3308
        %v3310 = vpop.f32.mrb[0].mxu0
        %3311 = vmatprep.mubr.f32.mxu0 0.0
        %3312 = vmatmul.mubr.f32.gmra.mrb[0].mxu0 %v1741
        %v3313 = vpop.f32.mrb[0].mxu0
        %v3314 = vadd.f32 0.0, %v3313
        %v3315 = vpop.f32.mrb[0].mxu0
        %3316 = vmatprep.mubr.f32.mxu0 0.0
        %3317 = vmatmul.mubr.f32.gmra.mrb[0].mxu0 %v1743
        %v3318 = vpop.f32.mrb[0].mxu0
        %v3319 = vadd.f32 0.0, %v3318
        %v3320 = vpop.f32.mrb[0].mxu0
        %3321 = vmatprep.mubr.f32.mxu0 0.0
        %3322 = vmatmul.mubr.f32.gmra.mrb[0].mxu0 %v2386
        %v3323 = vpop.f32.mrb[0].mxu0
        %v3324 = vadd.f32 0.0, %v3323
        %v3325 = vpop.f32.mrb[0].mxu0
        %3326 = vmatprep.mubr.f32.mxu0 0.0
        %3327 = vmatmul.mubr.f32.gmra.mrb[0].mxu0 %v1715
        %v3328 = vpop.f32.mrb[0].mxu0
        %v3329 = vadd.f32 0.0, %v3328
        %v3330 = vpop.f32.mrb[0].mxu0
        %3331 = vmatprep.mubr.f32.mxu0 0.0
        %3332 = vmatmul.mubr.f32.gmra.mrb[0].mxu0 %v1747
        %v3333 = vpop.f32.mrb[0].mxu0
        %v3334 = vadd.f32 0.0, %v3333
        %v3335 = vpop.f32.mrb[0].mxu0
        %3336 = vmatprep.mubr.f32.mxu0 0.0
        %3337 = vmatmul.mubr.f32.gmra.mrb[0].mxu0 %v1749
        %v3338 = vpop.f32.mrb[0].mxu0
        %v3339 = vadd.f32 0.0, %v3338
        %v3340 = vpop.f32.mrb[0].mxu0
        %3341 = vmatprep.mubr.f32.mxu0 0.0
        %3342 = vmatmul.mubr.f32.gmra.mrb[0].mxu0 %v1751
        %v3343 = vpop.f32.mrb[0].mxu0
        %v3344 = vadd.f32 0.0, %v3343
        %v3345 = vpop.f32.mrb[0].mxu0
        %3346 = vmatprep.mubr.f32.mxu0 0.0
        %3347 = vmatmul.mubr.f32.gmra.mrb[0].mxu0 %v1753
        %v3348 = vpop.f32.mrb[0].mxu0
        %v3349 = vadd.f32 0.0, %v3348
        %v3350 = vpop.f32.mrb[0].mxu0
        %3351 = vmatprep.mubr.f32.mxu0 0.0
        %3352 = vmatmul.mubr.f32.gmra.mrb[0].mxu0 %v1755
        %v3353 = vpop.f32.mrb[0].mxu0
        %v3354 = vadd.f32 0.0, %v3353
        %v3355 = vpop.f32.mrb[0].mxu0
        %3356 = vmatprep.mubr.f32.mxu0 0.0
        %3357 = vmatmul.mubr.f32.gmra.mrb[0].mxu0 %v1757
        %v3358 = vpop.f32.mrb[0].mxu0
        %v3359 = vadd.f32 0.0, %v3358
        %v3360 = vpop.f32.mrb[0].mxu0
        %3361 = vmatprep.mubr.f32.mxu0 0.0
        %3362 = vmatmul.mubr.f32.gmra.mrb[0].mxu0 %v2388
        %v3363 = vpop.f32.mrb[0].mxu0
        %v3364 = vadd.f32 0.0, %v3363
        %v3365 = vpop.f32.mrb[0].mxu0
        %3366 = vmatprep.mubr.f32.mxu0 0.0
        %3367 = vmatmul.mubr.f32.gmra.mrb[0].mxu0 %v1715
        %v3368 = vpop.f32.mrb[0].mxu0
        %v3369 = vadd.f32 0.0, %v3368
        %v3370 = vpop.f32.mrb[0].mxu0
        %3371 = vmatprep.mubr.f32.mxu0 0.0
        %3372 = vmatmul.mubr.f32.gmra.mrb[0].mxu0 %v1761
        %v3373 = vpop.f32.mrb[0].mxu0
        %v3374 = vadd.f32 0.0, %v3373
        %v3375 = vpop.f32.mrb[0].mxu0
        %3376 = vmatprep.mubr.f32.mxu0 0.0
        %3377 = vmatmul.mubr.f32.gmra.mrb[0].mxu0 %v1763
        %v3378 = vpop.f32.mrb[0].mxu0
        %v3379 = vadd.f32 0.0, %v3378
        %v3380 = vpop.f32.mrb[0].mxu0
        %3381 = vmatprep.mubr.f32.mxu0 0.0
        %3382 = vmatmul.mubr.f32.gmra.mrb[0].mxu0 %v1765
        %v3383 = vpop.f32.mrb[0].mxu0
        %v3384 = vadd.f32 0.0, %v3383
        %v3385 = vpop.f32.mrb[0].mxu0
        %3386 = vmatprep.mubr.f32.mxu0 0.0
        %3387 = vmatmul.mubr.f32.gmra.mrb[0].mxu0 %v1767
        %v3388 = vpop.f32.mrb[0].mxu0
        %v3389 = vadd.f32 0.0, %v3388
        %v3390 = vpop.f32.mrb[0].mxu0
        %3391 = vmatprep.mubr.f32.mxu0 0.0
        %3392 = vmatmul.mubr.f32.gmra.mrb[0].mxu0 %v1769
        %v3393 = vpop.f32.mrb[0].mxu0
        %v3394 = vadd.f32 0.0, %v3393
        %v3395 = vpop.f32.mrb[0].mxu0
        %3396 = vmatprep.mubr.f32.mxu0 0.0
        %3397 = vmatmul.mubr.f32.gmra.mrb[0].mxu0 %v1771
        %v3398 = vpop.f32.mrb[0].mxu0
        %v3399 = vadd.f32 0.0, %v3398
        %v3400 = vpop.f32.mrb[0].mxu0
        %3401 = vmatprep.mubr.f32.mxu0 0.0
        %3402 = vmatmul.mubr.f32.gmra.mrb[0].mxu0 %v2390
        %v3403 = vpop.f32.mrb[0].mxu0
        %v3404 = vadd.f32 0.0, %v3403
        %v3405 = vpop.f32.mrb[0].mxu0
        %3406 = vmatprep.mubr.f32.mxu0 0.0
        %3407 = vmatmul.mubr.f32.gmra.mrb[0].mxu0 %v1715
        %v3408 = vpop.f32.mrb[0].mxu0
        %v3409 = vadd.f32 0.0, %v3408
        %v3410 = vpop.f32.mrb[0].mxu0
        %3411 = vdwg.mxu0
        %v3412 = vadd.f32 %v3155, %v3254
        %v3413 = vadd.f32 %v3156, %v3259
        %v3414 = vadd.f32 %v3157, %v3264
        %v3415 = vadd.f32 %v3158, %v3269
        %v3416 = vadd.f32 %v3159, %v3274
        %v3417 = vadd.f32 %v3160, %v3279
        %v3418 = vadd.f32 %v3161, %v3284
        %v3419 = vadd.f32 %v3162, %v3289
        %v3420 = vadd.f32 %v3163, %v3294
        %v3421 = vadd.f32 %v3164, %v3299
        %v3422 = vadd.f32 %v3165, %v3304
        %v3423 = vadd.f32 %v3166, %v3309
        %v3424 = vadd.f32 %v3167, %v3314
        %v3425 = vadd.f32 %v3168, %v3319
        %v3426 = vadd.f32 %v3169, %v3324
        %v3427 = vadd.f32 %v3170, %v3329
        %v3428 = vadd.f32 %v3171, %v3334
        %v3429 = vadd.f32 %v3172, %v3339
        %v3430 = vadd.f32 %v3173, %v3344
        %v3431 = vadd.f32 %v3174, %v3349
        %v3432 = vadd.f32 %v3175, %v3354
        %v3433 = vadd.f32 %v3176, %v3359
        %v3434 = vadd.f32 %v3177, %v3364
        %v3435 = vadd.f32 %v3178, %v3369
        %v3436 = vadd.f32 %v3179, %v3374
        %v3437 = vadd.f32 %v3180, %v3379
        %v3438 = vadd.f32 %v3181, %v3384
        %v3439 = vadd.f32 %v3182, %v3389
        %v3440 = vadd.f32 %v3183, %v3394
        %v3441 = vadd.f32 %v3184, %v3399
        %v3442 = vadd.f32 %v3185, %v3404
        %v3443 = vadd.f32 %v3186, %v3409
        %3444 = vmatprep.subr.mxu0 0.0
        %3445 = vmatpush1.msra.mxu0 %v1340
        %3446 = vmatprep.subr.mxu0 0.0
        %3447 = vmatpush1.msra.mxu0 %v1341
        %3448 = vmatprep.subr.mxu0 0.0
        %3449 = vmatpush1.msra.mxu0 0.0
        %3450 = vmatprep.subr.mxu0 0.0
        %3451 = vmatpush1.msra.mxu0 0.0
        %3452 = vmatprep.subr.mxu0 0.0
        %3453 = vmatpush1.msra.mxu0 0.0
        %3454 = vmatprep.subr.mxu0 0.0
        %3455 = vmatpush1.msra.mxu0 0.0
        %3456 = vmatprep.subr.mxu0 0.0
        %3457 = vmatpush1.msra.mxu0 0.0
        %3458 = vmatprep.subr.mxu0 0.0
        %3459 = vmatpush1.msra.mxu0 0.0
        %3460 = vmatprep.subr.mxu0 0.0
        %3461 = vmatpush1.msra.mxu0 0.0
        %3462 = vmatprep.subr.mxu0 0.0
        %3463 = vmatpush1.msra.mxu0 0.0
        %3464 = vmatprep.subr.mxu0 0.0
        %3465 = vmatpush1.msra.mxu0 0.0
        %3466 = vmatprep.subr.mxu0 0.0
        %3467 = vmatpush1.msra.mxu0 0.0
        %3468 = vmatprep.subr.mxu0 0.0
        %3469 = vmatpush1.msra.mxu0 0.0
        %3470 = vmatprep.subr.mxu0 0.0
        %3471 = vmatpush1.msra.mxu0 0.0
        %3472 = vmatprep.subr.mxu0 0.0
        %3473 = vmatpush1.msra.mxu0 0.0
        %3474 = vmatprep.subr.mxu0 0.0
        %3475 = vmatpush1.msra.mxu0 0.0
        %3476 = vmatprep.subr.mxu0 0.0
        %3477 = vmatpush1.msra.mxu0 0.0
        %3478 = vmatprep.subr.mxu0 0.0
        %3479 = vmatpush1.msra.mxu0 0.0
        %3480 = vmatprep.subr.mxu0 0.0
        %3481 = vmatpush1.msra.mxu0 0.0
        %3482 = vmatprep.subr.mxu0 0.0
        %3483 = vmatpush1.msra.mxu0 0.0
        %3484 = vmatprep.subr.mxu0 0.0
        %3485 = vmatpush1.msra.mxu0 0.0
        %3486 = vmatprep.subr.mxu0 0.0
        %3487 = vmatpush1.msra.mxu0 0.0
        %3488 = vmatprep.subr.mxu0 0.0
        %3489 = vmatpush1.msra.mxu0 0.0
        %3490 = vmatprep.subr.mxu0 0.0
        %3491 = vmatpush1.msra.mxu0 0.0
        %3492 = vmatprep.subr.mxu0 0.0
        %3493 = vmatpush1.msra.mxu0 0.0
        %3494 = vmatprep.subr.mxu0 0.0
        %3495 = vmatpush1.msra.mxu0 0.0
        %3496 = vmatprep.subr.mxu0 0.0
        %3497 = vmatpush1.msra.mxu0 0.0
        %3498 = vmatprep.subr.mxu0 0.0
        %3499 = vmatpush1.msra.mxu0 0.0
        %3500 = vmatprep.subr.mxu0 0.0
        %3501 = vmatpush1.msra.mxu0 0.0
        %3502 = vmatprep.subr.mxu0 0.0
        %3503 = vmatpush1.msra.mxu0 0.0
        %3504 = vmatprep.subr.mxu0 0.0
        %3505 = vmatpush1.msra.mxu0 0.0
        %3506 = vmatprep.subr.mxu0 0.0
        %3507 = vmatpush1.msra.mxu0 0.0
        %3508 = vmatprep.mubr.f32.mxu0 0.0
        %3509 = vmatmul.mubr.f32.gmra.mrb[0].mxu0 %v1436
        %v3510 = vpop.f32.mrb[0].mxu0
        %v3511 = vadd.f32 0.0, %v3510
        %v3512 = vpop.f32.mrb[0].mxu0
        %3513 = vmatprep.mubr.f32.mxu0 0.0
        %3514 = vmatmul.mubr.f32.gmra.mrb[0].mxu0 %v1438
        %v3515 = vpop.f32.mrb[0].mxu0
        %v3516 = vadd.f32 0.0, %v3515
        %v3517 = vpop.f32.mrb[0].mxu0
        %3518 = vmatprep.mubr.f32.mxu0 0.0
        %3519 = vmatmul.mubr.f32.gmra.mrb[0].mxu0 %v1440
        %v3520 = vpop.f32.mrb[0].mxu0
        %v3521 = vadd.f32 0.0, %v3520
        %v3522 = vpop.f32.mrb[0].mxu0
        %3523 = vmatprep.mubr.f32.mxu0 0.0
        %3524 = vmatmul.mubr.f32.gmra.mrb[0].mxu0 %v1442
        %v3525 = vpop.f32.mrb[0].mxu0
        %v3526 = vadd.f32 0.0, %v3525
        %v3527 = vpop.f32.mrb[0].mxu0
        %3528 = vmatprep.mubr.f32.mxu0 0.0
        %3529 = vmatmul.mubr.f32.gmra.mrb[0].mxu0 %v1444
        %v3530 = vpop.f32.mrb[0].mxu0
        %v3531 = vadd.f32 0.0, %v3530
        %v3532 = vpop.f32.mrb[0].mxu0
        %3533 = vmatprep.mubr.f32.mxu0 0.0
        %3534 = vmatmul.mubr.f32.gmra.mrb[0].mxu0 %v1446
        %v3535 = vpop.f32.mrb[0].mxu0
        %v3536 = vadd.f32 0.0, %v3535
        %v3537 = vpop.f32.mrb[0].mxu0
        %3538 = vmatprep.mubr.f32.mxu0 0.0
        %3539 = vmatmul.mubr.f32.gmra.mrb[0].mxu0 %v2649
        %v3540 = vpop.f32.mrb[0].mxu0
        %v3541 = vadd.f32 0.0, %v3540
        %v3542 = vpop.f32.mrb[0].mxu0
        %3543 = vmatprep.mubr.f32.mxu0 0.0
        %3544 = vmatmul.mubr.f32.gmra.mrb[0].mxu0 %v1432
        %v3545 = vpop.f32.mrb[0].mxu0
        %v3546 = vadd.f32 0.0, %v3545
        %v3547 = vpop.f32.mrb[0].mxu0
        %3548 = vmatprep.mubr.f32.mxu0 0.0
        %3549 = vmatmul.mubr.f32.gmra.mrb[0].mxu0 %v1450
        %v3550 = vpop.f32.mrb[0].mxu0
        %v3551 = vadd.f32 0.0, %v3550
        %v3552 = vpop.f32.mrb[0].mxu0
        %3553 = vmatprep.mubr.f32.mxu0 0.0
        %3554 = vmatmul.mubr.f32.gmra.mrb[0].mxu0 %v1452
        %v3555 = vpop.f32.mrb[0].mxu0
        %v3556 = vadd.f32 0.0, %v3555
        %v3557 = vpop.f32.mrb[0].mxu0
        %3558 = vmatprep.mubr.f32.mxu0 0.0
        %3559 = vmatmul.mubr.f32.gmra.mrb[0].mxu0 %v1454
        %v3560 = vpop.f32.mrb[0].mxu0
        %v3561 = vadd.f32 0.0, %v3560
        %v3562 = vpop.f32.mrb[0].mxu0
        %3563 = vmatprep.mubr.f32.mxu0 0.0
        %3564 = vmatmul.mubr.f32.gmra.mrb[0].mxu0 %v1456
        %v3565 = vpop.f32.mrb[0].mxu0
        %v3566 = vadd.f32 0.0, %v3565
        %v3567 = vpop.f32.mrb[0].mxu0
        %3568 = vmatprep.mubr.f32.mxu0 0.0
        %3569 = vmatmul.mubr.f32.gmra.mrb[0].mxu0 %v1458
        %v3570 = vpop.f32.mrb[0].mxu0
        %v3571 = vadd.f32 0.0, %v3570
        %v3572 = vpop.f32.mrb[0].mxu0
        %3573 = vmatprep.mubr.f32.mxu0 0.0
        %3574 = vmatmul.mubr.f32.gmra.mrb[0].mxu0 %v1460
        %v3575 = vpop.f32.mrb[0].mxu0
        %v3576 = vadd.f32 0.0, %v3575
        %v3577 = vpop.f32.mrb[0].mxu0
        %3578 = vmatprep.mubr.f32.mxu0 0.0
        %3579 = vmatmul.mubr.f32.gmra.mrb[0].mxu0 %v2651
        %v3580 = vpop.f32.mrb[0].mxu0
        %v3581 = vadd.f32 0.0, %v3580
        %v3582 = vpop.f32.mrb[0].mxu0
        %3583 = vmatprep.mubr.f32.mxu0 0.0
        %3584 = vmatmul.mubr.f32.gmra.mrb[0].mxu0 %v1432
        %v3585 = vpop.f32.mrb[0].mxu0
        %v3586 = vadd.f32 0.0, %v3585
        %v3587 = vpop.f32.mrb[0].mxu0
        %3588 = vmatprep.mubr.f32.mxu0 0.0
        %3589 = vmatmul.mubr.f32.gmra.mrb[0].mxu0 %v1464
        %v3590 = vpop.f32.mrb[0].mxu0
        %v3591 = vadd.f32 0.0, %v3590
        %v3592 = vpop.f32.mrb[0].mxu0
        %3593 = vmatprep.mubr.f32.mxu0 0.0
        %3594 = vmatmul.mubr.f32.gmra.mrb[0].mxu0 %v1466
        %v3595 = vpop.f32.mrb[0].mxu0
        %v3596 = vadd.f32 0.0, %v3595
        %v3597 = vpop.f32.mrb[0].mxu0
        %3598 = vmatprep.mubr.f32.mxu0 0.0
        %3599 = vmatmul.mubr.f32.gmra.mrb[0].mxu0 %v1468
        %v3600 = vpop.f32.mrb[0].mxu0
        %v3601 = vadd.f32 0.0, %v3600
        %v3602 = vpop.f32.mrb[0].mxu0
        %3603 = vmatprep.mubr.f32.mxu0 0.0
        %3604 = vmatmul.mubr.f32.gmra.mrb[0].mxu0 %v1470
        %v3605 = vpop.f32.mrb[0].mxu0
        %v3606 = vadd.f32 0.0, %v3605
        %v3607 = vpop.f32.mrb[0].mxu0
        %3608 = vmatprep.mubr.f32.mxu0 0.0
        %3609 = vmatmul.mubr.f32.gmra.mrb[0].mxu0 %v1472
        %v3610 = vpop.f32.mrb[0].mxu0
        %v3611 = vadd.f32 0.0, %v3610
        %v3612 = vpop.f32.mrb[0].mxu0
        %3613 = vmatprep.mubr.f32.mxu0 0.0
        %3614 = vmatmul.mubr.f32.gmra.mrb[0].mxu0 %v1474
        %v3615 = vpop.f32.mrb[0].mxu0
        %v3616 = vadd.f32 0.0, %v3615
        %v3617 = vpop.f32.mrb[0].mxu0
        %3618 = vmatprep.mubr.f32.mxu0 0.0
        %3619 = vmatmul.mubr.f32.gmra.mrb[0].mxu0 %v2653
        %v3620 = vpop.f32.mrb[0].mxu0
        %v3621 = vadd.f32 0.0, %v3620
        %v3622 = vpop.f32.mrb[0].mxu0
        %3623 = vmatprep.mubr.f32.mxu0 0.0
        %3624 = vmatmul.mubr.f32.gmra.mrb[0].mxu0 %v1432
        %v3625 = vpop.f32.mrb[0].mxu0
        %v3626 = vadd.f32 0.0, %v3625
        %v3627 = vpop.f32.mrb[0].mxu0
        %3628 = vmatprep.mubr.f32.mxu0 0.0
        %3629 = vmatmul.mubr.f32.gmra.mrb[0].mxu0 %v1478
        %v3630 = vpop.f32.mrb[0].mxu0
        %v3631 = vadd.f32 0.0, %v3630
        %v3632 = vpop.f32.mrb[0].mxu0
        %3633 = vmatprep.mubr.f32.mxu0 0.0
        %3634 = vmatmul.mubr.f32.gmra.mrb[0].mxu0 %v1480
        %v3635 = vpop.f32.mrb[0].mxu0
        %v3636 = vadd.f32 0.0, %v3635
        %v3637 = vpop.f32.mrb[0].mxu0
        %3638 = vmatprep.mubr.f32.mxu0 0.0
        %3639 = vmatmul.mubr.f32.gmra.mrb[0].mxu0 %v1482
        %v3640 = vpop.f32.mrb[0].mxu0
        %v3641 = vadd.f32 0.0, %v3640
        %v3642 = vpop.f32.mrb[0].mxu0
        %3643 = vmatprep.mubr.f32.mxu0 0.0
        %3644 = vmatmul.mubr.f32.gmra.mrb[0].mxu0 %v1484
        %v3645 = vpop.f32.mrb[0].mxu0
        %v3646 = vadd.f32 0.0, %v3645
        %v3647 = vpop.f32.mrb[0].mxu0
        %3648 = vmatprep.mubr.f32.mxu0 0.0
        %3649 = vmatmul.mubr.f32.gmra.mrb[0].mxu0 %v1486
        %v3650 = vpop.f32.mrb[0].mxu0
        %v3651 = vadd.f32 0.0, %v3650
        %v3652 = vpop.f32.mrb[0].mxu0
        %3653 = vmatprep.mubr.f32.mxu0 0.0
        %3654 = vmatmul.mubr.f32.gmra.mrb[0].mxu0 %v1488
        %v3655 = vpop.f32.mrb[0].mxu0
        %v3656 = vadd.f32 0.0, %v3655
        %v3657 = vpop.f32.mrb[0].mxu0
        %3658 = vmatprep.mubr.f32.mxu0 0.0
        %3659 = vmatmul.mubr.f32.gmra.mrb[0].mxu0 %v2655
        %v3660 = vpop.f32.mrb[0].mxu0
        %v3661 = vadd.f32 0.0, %v3660
        %v3662 = vpop.f32.mrb[0].mxu0
        %3663 = vmatprep.mubr.f32.mxu0 0.0
        %3664 = vmatmul.mubr.f32.gmra.mrb[0].mxu0 %v1432
        %v3665 = vpop.f32.mrb[0].mxu0
        %v3666 = vadd.f32 0.0, %v3665
        %v3667 = vpop.f32.mrb[0].mxu0
        %3668 = vdwg.mxu0
        %v3669 = vadd.f32 %v3412, %v3511
        %v3670 = vadd.f32 %v3413, %v3516
        %v3671 = vadd.f32 %v3414, %v3521
        %v3672 = vadd.f32 %v3415, %v3526
        %v3673 = vadd.f32 %v3416, %v3531
        %v3674 = vadd.f32 %v3417, %v3536
        %v3675 = vadd.f32 %v3418, %v3541
        %v3676 = vadd.f32 %v3419, %v3546
        %v3677 = vadd.f32 %v3420, %v3551
        %v3678 = vadd.f32 %v3421, %v3556
        %v3679 = vadd.f32 %v3422, %v3561
        %v3680 = vadd.f32 %v3423, %v3566
        %v3681 = vadd.f32 %v3424, %v3571
        %v3682 = vadd.f32 %v3425, %v3576
        %v3683 = vadd.f32 %v3426, %v3581
        %v3684 = vadd.f32 %v3427, %v3586
        %v3685 = vadd.f32 %v3428, %v3591
        %v3686 = vadd.f32 %v3429, %v3596
        %v3687 = vadd.f32 %v3430, %v3601
        %v3688 = vadd.f32 %v3431, %v3606
        %v3689 = vadd.f32 %v3432, %v3611
        %v3690 = vadd.f32 %v3433, %v3616
        %v3691 = vadd.f32 %v3434, %v3621
        %v3692 = vadd.f32 %v3435, %v3626
        %v3693 = vadd.f32 %v3436, %v3631
        %v3694 = vadd.f32 %v3437, %v3636
        %v3695 = vadd.f32 %v3438, %v3641
        %v3696 = vadd.f32 %v3439, %v3646
        %v3697 = vadd.f32 %v3440, %v3651
        %v3698 = vadd.f32 %v3441, %v3656
        %v3699 = vadd.f32 %v3442, %v3661
        %v3700 = vadd.f32 %v3443, %v3666
        %3701 = vmatprep.subr.mxu0 0.0
        %3702 = vmatpush1.msra.mxu0 %v1342
        %3703 = vmatprep.subr.mxu0 0.0
        %3704 = vmatpush1.msra.mxu0 %v1343
        %3705 = vmatprep.subr.mxu0 0.0
        %3706 = vmatpush1.msra.mxu0 0.0
        %3707 = vmatprep.subr.mxu0 0.0
        %3708 = vmatpush1.msra.mxu0 0.0
        %3709 = vmatprep.subr.mxu0 0.0
        %3710 = vmatpush1.msra.mxu0 0.0
        %3711 = vmatprep.subr.mxu0 0.0
        %3712 = vmatpush1.msra.mxu0 0.0
        %3713 = vmatprep.subr.mxu0 0.0
        %3714 = vmatpush1.msra.mxu0 0.0
        %3715 = vmatprep.subr.mxu0 0.0
        %3716 = vmatpush1.msra.mxu0 0.0
        %3717 = vmatprep.subr.mxu0 0.0
        %3718 = vmatpush1.msra.mxu0 0.0
        %3719 = vmatprep.subr.mxu0 0.0
        %3720 = vmatpush1.msra.mxu0 0.0
        %3721 = vmatprep.subr.mxu0 0.0
        %3722 = vmatpush1.msra.mxu0 0.0
        %3723 = vmatprep.subr.mxu0 0.0
        %3724 = vmatpush1.msra.mxu0 0.0
        %3725 = vmatprep.subr.mxu0 0.0
        %3726 = vmatpush1.msra.mxu0 0.0
        %3727 = vmatprep.subr.mxu0 0.0
        %3728 = vmatpush1.msra.mxu0 0.0
        %3729 = vmatprep.subr.mxu0 0.0
        %3730 = vmatpush1.msra.mxu0 0.0
        %3731 = vmatprep.subr.mxu0 0.0
        %3732 = vmatpush1.msra.mxu0 0.0
        %3733 = vmatprep.subr.mxu0 0.0
        %3734 = vmatpush1.msra.mxu0 0.0
        %3735 = vmatprep.subr.mxu0 0.0
        %3736 = vmatpush1.msra.mxu0 0.0
        %3737 = vmatprep.subr.mxu0 0.0
        %3738 = vmatpush1.msra.mxu0 0.0
        %3739 = vmatprep.subr.mxu0 0.0
        %3740 = vmatpush1.msra.mxu0 0.0
        %3741 = vmatprep.subr.mxu0 0.0
        %3742 = vmatpush1.msra.mxu0 0.0
        %3743 = vmatprep.subr.mxu0 0.0
        %3744 = vmatpush1.msra.mxu0 0.0
        %3745 = vmatprep.subr.mxu0 0.0
        %3746 = vmatpush1.msra.mxu0 0.0
        %3747 = vmatprep.subr.mxu0 0.0
        %3748 = vmatpush1.msra.mxu0 0.0
        %3749 = vmatprep.subr.mxu0 0.0
        %3750 = vmatpush1.msra.mxu0 0.0
        %3751 = vmatprep.subr.mxu0 0.0
        %3752 = vmatpush1.msra.mxu0 0.0
        %3753 = vmatprep.subr.mxu0 0.0
        %3754 = vmatpush1.msra.mxu0 0.0
        %3755 = vmatprep.subr.mxu0 0.0
        %3756 = vmatpush1.msra.mxu0 0.0
        %3757 = vmatprep.subr.mxu0 0.0
        %3758 = vmatpush1.msra.mxu0 0.0
        %3759 = vmatprep.subr.mxu0 0.0
        %3760 = vmatpush1.msra.mxu0 0.0
        %3761 = vmatprep.subr.mxu0 0.0
        %3762 = vmatpush1.msra.mxu0 0.0
        %3763 = vmatprep.subr.mxu0 0.0
        %3764 = vmatpush1.msra.mxu0 0.0
        %3765 = vmatprep.mubr.f32.mxu0 0.0
        %3766 = vmatmul.mubr.f32.gmra.mrb[0].mxu0 %v2061
        %v3767 = vpop.f32.mrb[0].mxu0
        %v3768 = vadd.f32 0.0, %v3767
        %v3769 = vpop.f32.mrb[0].mxu0
        %3770 = vmatprep.mubr.f32.mxu0 0.0
        %3771 = vmatmul.mubr.f32.gmra.mrb[0].mxu0 %v2063
        %v3772 = vpop.f32.mrb[0].mxu0
        %v3773 = vadd.f32 0.0, %v3772
        %v3774 = vpop.f32.mrb[0].mxu0
        %3775 = vmatprep.mubr.f32.mxu0 0.0
        %3776 = vmatmul.mubr.f32.gmra.mrb[0].mxu0 %v2065
        %v3777 = vpop.f32.mrb[0].mxu0
        %v3778 = vadd.f32 0.0, %v3777
        %v3779 = vpop.f32.mrb[0].mxu0
        %3780 = vmatprep.mubr.f32.mxu0 0.0
        %3781 = vmatmul.mubr.f32.gmra.mrb[0].mxu0 %v2067
        %v3782 = vpop.f32.mrb[0].mxu0
        %v3783 = vadd.f32 0.0, %v3782
        %v3784 = vpop.f32.mrb[0].mxu0
        %3785 = vmatprep.mubr.f32.mxu0 0.0
        %3786 = vmatmul.mubr.f32.gmra.mrb[0].mxu0 %v2069
        %v3787 = vpop.f32.mrb[0].mxu0
        %v3788 = vadd.f32 0.0, %v3787
        %v3789 = vpop.f32.mrb[0].mxu0
        %3790 = vmatprep.mubr.f32.mxu0 0.0
        %3791 = vmatmul.mubr.f32.gmra.mrb[0].mxu0 %v2071
        %v3792 = vpop.f32.mrb[0].mxu0
        %v3793 = vadd.f32 0.0, %v3792
        %v3794 = vpop.f32.mrb[0].mxu0
        %3795 = vmatprep.mubr.f32.mxu0 0.0
        %3796 = vmatmul.mubr.f32.gmra.mrb[0].mxu0 %v2922
        %v3797 = vpop.f32.mrb[0].mxu0
        %v3798 = vadd.f32 0.0, %v3797
        %v3799 = vpop.f32.mrb[0].mxu0
        %3800 = vmatprep.mubr.f32.mxu0 0.0
        %3801 = vmatmul.mubr.f32.gmra.mrb[0].mxu0 %v2057
        %v3802 = vpop.f32.mrb[0].mxu0
        %v3803 = vadd.f32 0.0, %v3802
        %v3804 = vpop.f32.mrb[0].mxu0
        %3805 = vmatprep.mubr.f32.mxu0 0.0
        %3806 = vmatmul.mubr.f32.gmra.mrb[0].mxu0 %v2075
        %v3807 = vpop.f32.mrb[0].mxu0
        %v3808 = vadd.f32 0.0, %v3807
        %v3809 = vpop.f32.mrb[0].mxu0
        %3810 = vmatprep.mubr.f32.mxu0 0.0
        %3811 = vmatmul.mubr.f32.gmra.mrb[0].mxu0 %v2077
        %v3812 = vpop.f32.mrb[0].mxu0
        %v3813 = vadd.f32 0.0, %v3812
        %v3814 = vpop.f32.mrb[0].mxu0
        %3815 = vmatprep.mubr.f32.mxu0 0.0
        %3816 = vmatmul.mubr.f32.gmra.mrb[0].mxu0 %v2079
        %v3817 = vpop.f32.mrb[0].mxu0
        %v3818 = vadd.f32 0.0, %v3817
        %v3819 = vpop.f32.mrb[0].mxu0
        %3820 = vmatprep.mubr.f32.mxu0 0.0
        %3821 = vmatmul.mubr.f32.gmra.mrb[0].mxu0 %v2081
        %v3822 = vpop.f32.mrb[0].mxu0
        %v3823 = vadd.f32 0.0, %v3822
        %v3824 = vpop.f32.mrb[0].mxu0
        %3825 = vmatprep.mubr.f32.mxu0 0.0
        %3826 = vmatmul.mubr.f32.gmra.mrb[0].mxu0 %v2083
        %v3827 = vpop.f32.mrb[0].mxu0
        %v3828 = vadd.f32 0.0, %v3827
        %v3829 = vpop.f32.mrb[0].mxu0
        %3830 = vmatprep.mubr.f32.mxu0 0.0
        %3831 = vmatmul.mubr.f32.gmra.mrb[0].mxu0 %v2085
        %v3832 = vpop.f32.mrb[0].mxu0
        %v3833 = vadd.f32 0.0, %v3832
        %v3834 = vpop.f32.mrb[0].mxu0
        %3835 = vmatprep.mubr.f32.mxu0 0.0
        %3836 = vmatmul.mubr.f32.gmra.mrb[0].mxu0 %v2924
        %v3837 = vpop.f32.mrb[0].mxu0
        %v3838 = vadd.f32 0.0, %v3837
        %v3839 = vpop.f32.mrb[0].mxu0
        %3840 = vmatprep.mubr.f32.mxu0 0.0
        %3841 = vmatmul.mubr.f32.gmra.mrb[0].mxu0 %v2057
        %v3842 = vpop.f32.mrb[0].mxu0
        %v3843 = vadd.f32 0.0, %v3842
        %v3844 = vpop.f32.mrb[0].mxu0
        %3845 = vmatprep.mubr.f32.mxu0 0.0
        %3846 = vmatmul.mubr.f32.gmra.mrb[0].mxu0 %v2089
        %v3847 = vpop.f32.mrb[0].mxu0
        %v3848 = vadd.f32 0.0, %v3847
        %v3849 = vpop.f32.mrb[0].mxu0
        %3850 = vmatprep.mubr.f32.mxu0 0.0
        %3851 = vmatmul.mubr.f32.gmra.mrb[0].mxu0 %v2091
        %v3852 = vpop.f32.mrb[0].mxu0
        %v3853 = vadd.f32 0.0, %v3852
        %v3854 = vpop.f32.mrb[0].mxu0
        %3855 = vmatprep.mubr.f32.mxu0 0.0
        %3856 = vmatmul.mubr.f32.gmra.mrb[0].mxu0 %v2093
        %v3857 = vpop.f32.mrb[0].mxu0
        %v3858 = vadd.f32 0.0, %v3857
        %v3859 = vpop.f32.mrb[0].mxu0
        %3860 = vmatprep.mubr.f32.mxu0 0.0
        %3861 = vmatmul.mubr.f32.gmra.mrb[0].mxu0 %v2095
        %v3862 = vpop.f32.mrb[0].mxu0
        %v3863 = vadd.f32 0.0, %v3862
        %v3864 = vpop.f32.mrb[0].mxu0
        %3865 = vmatprep.mubr.f32.mxu0 0.0
        %3866 = vmatmul.mubr.f32.gmra.mrb[0].mxu0 %v2097
        %v3867 = vpop.f32.mrb[0].mxu0
        %v3868 = vadd.f32 0.0, %v3867
        %v3869 = vpop.f32.mrb[0].mxu0
        %3870 = vmatprep.mubr.f32.mxu0 0.0
        %3871 = vmatmul.mubr.f32.gmra.mrb[0].mxu0 %v2099
        %v3872 = vpop.f32.mrb[0].mxu0
        %v3873 = vadd.f32 0.0, %v3872
        %v3874 = vpop.f32.mrb[0].mxu0
        %3875 = vmatprep.mubr.f32.mxu0 0.0
        %3876 = vmatmul.mubr.f32.gmra.mrb[0].mxu0 %v2926
        %v3877 = vpop.f32.mrb[0].mxu0
        %v3878 = vadd.f32 0.0, %v3877
        %v3879 = vpop.f32.mrb[0].mxu0
        %3880 = vmatprep.mubr.f32.mxu0 0.0
        %3881 = vmatmul.mubr.f32.gmra.mrb[0].mxu0 %v2057
        %v3882 = vpop.f32.mrb[0].mxu0
        %v3883 = vadd.f32 0.0, %v3882
        %v3884 = vpop.f32.mrb[0].mxu0
        %3885 = vmatprep.mubr.f32.mxu0 0.0
        %3886 = vmatmul.mubr.f32.gmra.mrb[0].mxu0 %v2103
        %v3887 = vpop.f32.mrb[0].mxu0
        %v3888 = vadd.f32 0.0, %v3887
        %v3889 = vpop.f32.mrb[0].mxu0
        %3890 = vmatprep.mubr.f32.mxu0 0.0
        %3891 = vmatmul.mubr.f32.gmra.mrb[0].mxu0 %v2105
        %v3892 = vpop.f32.mrb[0].mxu0
        %v3893 = vadd.f32 0.0, %v3892
        %v3894 = vpop.f32.mrb[0].mxu0
        %3895 = vmatprep.mubr.f32.mxu0 0.0
        %3896 = vmatmul.mubr.f32.gmra.mrb[0].mxu0 %v2107
        %v3897 = vpop.f32.mrb[0].mxu0
        %v3898 = vadd.f32 0.0, %v3897
        %v3899 = vpop.f32.mrb[0].mxu0
        %3900 = vmatprep.mubr.f32.mxu0 0.0
        %3901 = vmatmul.mubr.f32.gmra.mrb[0].mxu0 %v2109
        %v3902 = vpop.f32.mrb[0].mxu0
        %v3903 = vadd.f32 0.0, %v3902
        %v3904 = vpop.f32.mrb[0].mxu0
        %3905 = vmatprep.mubr.f32.mxu0 0.0
        %3906 = vmatmul.mubr.f32.gmra.mrb[0].mxu0 %v2111
        %v3907 = vpop.f32.mrb[0].mxu0
        %v3908 = vadd.f32 0.0, %v3907
        %v3909 = vpop.f32.mrb[0].mxu0
        %3910 = vmatprep.mubr.f32.mxu0 0.0
        %3911 = vmatmul.mubr.f32.gmra.mrb[0].mxu0 %v2113
        %v3912 = vpop.f32.mrb[0].mxu0
        %v3913 = vadd.f32 0.0, %v3912
        %v3914 = vpop.f32.mrb[0].mxu0
        %3915 = vmatprep.mubr.f32.mxu0 0.0
        %3916 = vmatmul.mubr.f32.gmra.mrb[0].mxu0 %v2928
        %v3917 = vpop.f32.mrb[0].mxu0
        %v3918 = vadd.f32 0.0, %v3917
        %v3919 = vpop.f32.mrb[0].mxu0
        %3920 = vmatprep.mubr.f32.mxu0 0.0
        %3921 = vmatmul.mubr.f32.gmra.mrb[0].mxu0 %v2057
        %v3922 = vpop.f32.mrb[0].mxu0
        %v3923 = vadd.f32 0.0, %v3922
        %v3924 = vpop.f32.mrb[0].mxu0
        %3925 = vdwg.mxu0
        %v3926 = vadd.f32 %v3669, %v3768
        %v3927 = vadd.f32 %v3670, %v3773
        %v3928 = vadd.f32 %v3671, %v3778
        %v3929 = vadd.f32 %v3672, %v3783
        %v3930 = vadd.f32 %v3673, %v3788
        %v3931 = vadd.f32 %v3674, %v3793
        %v3932 = vadd.f32 %v3675, %v3798
        %v3933 = vadd.f32 %v3676, %v3803
        %v3934 = vadd.f32 %v3677, %v3808
        %v3935 = vadd.f32 %v3678, %v3813
        %v3936 = vadd.f32 %v3679, %v3818
        %v3937 = vadd.f32 %v3680, %v3823
        %v3938 = vadd.f32 %v3681, %v3828
        %v3939 = vadd.f32 %v3682, %v3833
        %v3940 = vadd.f32 %v3683, %v3838
        %v3941 = vadd.f32 %v3684, %v3843
        %v3942 = vadd.f32 %v3685, %v3848
        %v3943 = vadd.f32 %v3686, %v3853
        %v3944 = vadd.f32 %v3687, %v3858
        %v3945 = vadd.f32 %v3688, %v3863
        %v3946 = vadd.f32 %v3689, %v3868
        %v3947 = vadd.f32 %v3690, %v3873
        %v3948 = vadd.f32 %v3691, %v3878
        %v3949 = vadd.f32 %v3692, %v3883
        %v3950 = vadd.f32 %v3693, %v3888
        %v3951 = vadd.f32 %v3694, %v3893
        %v3952 = vadd.f32 %v3695, %v3898
        %v3953 = vadd.f32 %v3696, %v3903
        %v3954 = vadd.f32 %v3697, %v3908
        %v3955 = vadd.f32 %v3698, %v3913
        %v3956 = vadd.f32 %v3699, %v3918
        %v3957 = vadd.f32 %v3700, %v3923
        %v3958 = vld [vmem:[%s4] sm:$0x1]
        %v3960 = vlaneseq
        %v3961 = vshrl.u32 %v3960, 7
        %v3962 = vsub.s32 0, %v3961
        %v3963 = vrot.slane %v3958, %v3962
        %v3965 = vadd.f32 %v3926, %v3963
        %v3966 = vadd.f32 %v3927, %v3963
        %v3967 = vadd.f32 %v3928, %v3963
        %v3968 = vadd.f32 %v3929, %v3963
        %v3969 = vadd.f32 %v3930, %v3963
        %v3970 = vadd.f32 %v3931, %v3963
        %v3971 = vadd.f32 %v3932, %v3963
        %v3972 = vadd.f32 %v3933, %v3963
        %v3973 = vadd.f32 %v3934, %v3963
        %v3974 = vadd.f32 %v3935, %v3963
        %v3975 = vadd.f32 %v3936, %v3963
        %v3976 = vadd.f32 %v3937, %v3963
        %v3977 = vadd.f32 %v3938, %v3963
        %v3978 = vadd.f32 %v3939, %v3963
        %v3979 = vadd.f32 %v3940, %v3963
        %v3980 = vadd.f32 %v3941, %v3963
        %v3981 = vadd.f32 %v3942, %v3963
        %v3982 = vadd.f32 %v3943, %v3963
        %v3983 = vadd.f32 %v3944, %v3963
        %v3984 = vadd.f32 %v3945, %v3963
        %v3985 = vadd.f32 %v3946, %v3963
        %v3986 = vadd.f32 %v3947, %v3963
        %v3987 = vadd.f32 %v3948, %v3963
        %v3988 = vadd.f32 %v3949, %v3963
        %v3989 = vadd.f32 %v3950, %v3963
        %v3990 = vadd.f32 %v3951, %v3963
        %v3991 = vadd.f32 %v3952, %v3963
        %v3992 = vadd.f32 %v3953, %v3963
        %v3993 = vadd.f32 %v3954, %v3963
        %v3994 = vadd.f32 %v3955, %v3963
        %v3995 = vadd.f32 %v3956, %v3963
        %v3996 = vadd.f32 %v3957, %v3963
        %vm3997 = vcmask 261120
        %3998 = vst.msk [vmem:[%s243] sm:$0xff] %vm3997, %v3965
        %3999 = vst.msk [vmem:[%s243 + $0x8] sm:$0xff] %vm3997, %v3966
        %4000 = vst.msk [vmem:[%s243 + $0x10] sm:$0xff] %vm3997, %v3967
        %4001 = vst.msk [vmem:[%s243 + $0x18] sm:$0xff] %vm3997, %v3968
        %4002 = vst.msk [vmem:[%s243 + $0x20] sm:$0xff] %vm3997, %v3969
        %4003 = vst.msk [vmem:[%s243 + $0x28] sm:$0xff] %vm3997, %v3970
        %4004 = vst.msk [vmem:[%s243 + $0x30] sm:$0xff] %vm3997, %v3971
        %4005 = vst.msk [vmem:[%s243 + $0x38] sm:$0xff] %vm3997, %v3972
        %4006 = vst.msk [vmem:[%s243 + $0x40] sm:$0xff] %vm3997, %v3973
        %4007 = vst.msk [vmem:[%s243 + $0x48] sm:$0xff] %vm3997, %v3974
        %4008 = vst.msk [vmem:[%s243 + $0x50] sm:$0xff] %vm3997, %v3975
        %4009 = vst.msk [vmem:[%s243 + $0x58] sm:$0xff] %vm3997, %v3976
        %4010 = vst.msk [vmem:[%s243 + $0x60] sm:$0xff] %vm3997, %v3977
        %4011 = vst.msk [vmem:[%s243 + $0x68] sm:$0xff] %vm3997, %v3978
        %4012 = vst.msk [vmem:[%s243 + $0x70] sm:$0xff] %vm3997, %v3979
        %4013 = vst.msk [vmem:[%s243 + $0x78] sm:$0xff] %vm3997, %v3980
        %4014 = vst.msk [vmem:[%s243 + $0x80] sm:$0xff] %vm3997, %v3981
        %4015 = vst.msk [vmem:[%s243 + $0x88] sm:$0xff] %vm3997, %v3982
        %4016 = vst.msk [vmem:[%s243 + $0x90] sm:$0xff] %vm3997, %v3983
        %4017 = vst.msk [vmem:[%s243 + $0x98] sm:$0xff] %vm3997, %v3984
        %4018 = vst.msk [vmem:[%s243 + $0xa0] sm:$0xff] %vm3997, %v3985
        %4019 = vst.msk [vmem:[%s243 + $0xa8] sm:$0xff] %vm3997, %v3986
        %4020 = vst.msk [vmem:[%s243 + $0xb0] sm:$0xff] %vm3997, %v3987
        %4021 = vst.msk [vmem:[%s243 + $0xb8] sm:$0xff] %vm3997, %v3988
        %4022 = vst.msk [vmem:[%s243 + $0xc0] sm:$0xff] %vm3997, %v3989
        %4023 = vst.msk [vmem:[%s243 + $0xc8] sm:$0xff] %vm3997, %v3990
        %4024 = vst.msk [vmem:[%s243 + $0xd0] sm:$0xff] %vm3997, %v3991
        %4025 = vst.msk [vmem:[%s243 + $0xd8] sm:$0xff] %vm3997, %v3992
        %4026 = vst.msk [vmem:[%s243 + $0xe0] sm:$0xff] %vm3997, %v3993
        %4027 = vst.msk [vmem:[%s243 + $0xe8] sm:$0xff] %vm3997, %v3994
        %4028 = vst.msk [vmem:[%s243 + $0xf0] sm:$0xff] %vm3997, %v3995
        %4029 = vst.msk [vmem:[%s243 + $0xf8] sm:$0xff] %vm3997, %v3996
        %s4030 = sand.u32 %s140, 1
        %s4031 = scalar_lea.sflag [#allocation4], %s4030
        %s4032 = sand.u32 %s140, 1
        %s4033 = smul.addr %s4032, 256
        %s4034 = scalar_lea.vmem [#allocation5], %s4033
        // Predicated region
        $region45: #{tpu_custom_call.1} parent=39 // pred_check
          %p4035 = pneg %p150
        $region46: #{tpu_custom_call.1} parent=39 // pred_check_branch
          %4037 = sbr.rel (%p4035) target = $region48
        $region47: #{tpu_custom_call.1} parent=39 // pred_region
          %s4038 = smul.u32 4, %s22
          %s4040 = ssub.s32 4096, 4096
          %4041 = vsyncadd %s4031, %s4040
          %s4042 = smul.addr %s4038, 8
          %s4043 = smul.addr %s4042, 128
          %s4044 = scalar_lea.hbm %s5, %s4043
          %s4045 = sshll.u32 %s4034, 4
          %s4046 = int_to_ptr.vmem [resolvable:$true] %s4045
          %4051 = dma.vmem_to_hbm [thread:$0]  %s4046, 4096, %s4044, %s4031, 128, 128, 8
        $region48: #{tpu_custom_call.1} parent=39 // pred_fallthru
          _
      $region40: #{tpu_custom_call.1} parent=5 // pred_fallthru
        _
      %p4052 = scmp.le.s32.totalorder 2, %s17
      // Predicated region
      $region49: #{tpu_custom_call.1} parent=5 // pred_check
        %p4053 = pneg %p4052
      $region50: #{tpu_custom_call.1} parent=5 // pred_check_branch
        %4055 = sbr.rel (%p4053) target = $region52
      $region51: #{tpu_custom_call.1} parent=5 // pred_region
        %s4056 = ssub.s32 %s17, 2
        // Predicated region
        $region53: #{tpu_custom_call.1} parent=51 // pred_check
          %p4057 = pneg %p156
        $region54: #{tpu_custom_call.1} parent=51 // pred_check_branch
          %4059 = sbr.rel (%p4057) target = $region56
        $region55: #{tpu_custom_call.1} parent=51 // pred_region
          %s4060 = sand.u32 %s141, 1
          %s4061 = scalar_lea.sflag [#allocation4], %s4060
          %s4062 = sand.u32 %s141, 1
          %s4063 = smul.addr %s4062, 256
          %s4064 = scalar_lea.vmem [#allocation5], %s4063
          %4065 = dma.done %s4061, 4096
        $region56: #{tpu_custom_call.1} parent=51 // pred_fallthru
          _
      $region52: #{tpu_custom_call.1} parent=5 // pred_fallthru
        _
    $region6: #{tpu_custom_call.1} parent=1 // loop_footer
      %s21 = sadd.s32 1, %s17
    $region7: #{tpu_custom_call.1} parent=1 // loop_footer_branch
      %16 = sbr.rel target = $region3
    $region8: #{tpu_custom_call.1} parent=1 // loop_exit
      _
    %4066 = vsyncpa [#allocation3], 1
    %s4067 = scalar_lea.sflag [#allocation3], 1
    %4068 = vsyncpa %s4067, 1
    %4069 = vsyncpa [#allocation4], 1
    %s4070 = scalar_lea.sflag [#allocation4], 1
    %4071 = vsyncpa %s4070, 1

</llo_original>
